<compile_context>
chip_gen: v5e
topology: v5e:2x2
jax: 0.10.0
libtpu: 0.0.40
codegen_flags: <defaults>
</compile_context>

<pallas_src>
import jax
import jax.numpy as jnp
from jax import lax
from jax.experimental import pallas as pl
from jax.experimental.pallas import tpu as pltpu

INITRANGE = 0.04

# Synthetic DARTS genotype (name, predecessor-state index); concat = states
# averaged for the cell output.  Static Python -> fully unrolled in-kernel.
GENOTYPE_RECURRENT = (
    ("relu", 0),
    ("tanh", 1),
    ("sigmoid", 1),
    ("identity", 2),
)
GENOTYPE_CONCAT = (1, 2, 3, 4)

_ACTIVATIONS = {
    "tanh": jnp.tanh,
    "relu": lambda v: jnp.maximum(v, 0.0),
    "sigmoid": jax.nn.sigmoid,
    "identity": lambda v: v,
}

_UNROLL_THRESHOLD = 8   # chunk_t above this -> bounded-unroll fori_loop


# --------------------------------------------------------------------------
# Genotype / hardware helpers
# --------------------------------------------------------------------------
def _group_nodes(genotype):
    """Group consecutive DAG nodes that share the same predecessor state.

    A node's predecessor index never points at another node in the same group
    (pred <= node position), so each group's matmuls can be fused into one
    wide sp @ [W_i | W_j | ...] MXU op.
    """
    groups = []
    for idx, (name, pred) in enumerate(genotype):
        if groups and groups[-1][0] == pred:
            groups[-1][1].append((idx, name))
        else:
            groups.append((pred, [(idx, name)]))
    return groups


def _vmem_capacity_bytes():
    cap = None
    try:
        cap = int(pltpu.get_tpu_info().vmem_capacity_bytes)
    except Exception:
        cap = None
    if not cap or cap <= 0:
        cap = 64 * 1024 * 1024          # conservative (v7x-sized) default
    return min(cap, 128 * 1024 * 1024)


def _num_tensorcores():
    try:
        info = pltpu.get_tpu_info()
    except Exception:
        return 1
    for attr in ("num_cores", "tensorcores_per_chip", "num_tensor_cores",
                 "core_count"):
        v = getattr(info, attr, None)
        if isinstance(v, int) and v > 0:
            return v
    return 1


def _pick_chunk_t(T, batch_block, H, in_itemsize, vmem_budget_bytes):
    """Largest divisor of T giving nt >= 3 whose streamed slabs fit the budget."""
    best_fit = None
    for d in range(T, 0, -1):
        if T % d:
            continue
        # double-buffered streamed slabs per grid step:
        #   xw0 input (2H wide, proj dtype) + f32 output (H wide)
        stream = 2 * d * batch_block * (2 * H * in_itemsize + H * 4)
        if stream > vmem_budget_bytes:
            continue
        if best_fit is None:
            best_fit = d
        if T // d >= 3:
            return d
    return best_fit if best_fit is not None else 1


# --------------------------------------------------------------------------
# Kernels
# --------------------------------------------------------------------------
def _make_fused_kernel(*, chunk_t, H, mm_dtype, groups, num_groups):
    """Fused-weight kernel (H multiple of 128): fewer, fatter MXU ops."""

    def kernel(xw0_ref, w0h_ref, *rest):
        group_w_refs = rest[:num_groups]
        hid_ref = rest[num_groups]
        h_scratch = rest[num_groups + 1]

        tc = pl.program_id(1)   # time-chunk axis (axis 0 is the parallel batch axis)

        # hidden == None in the PyTorch forward -> zeros at sequence start,
        # keyed on the (innermost, sequential) time axis per batch block.
        @pl.when(tc == 0)
        def _():
            h_scratch[...] = jnp.zeros_like(h_scratch)

        # Hoist invariant weight reads out of the timestep loop.
        w0h = w0h_ref[...]                       # (H, 2H)
        gw = [r[...] for r in group_w_refs]      # (H, 2*len(group)*H) each

        def step(tt, h_prev):
            h_mm = h_prev.astype(mm_dtype)       # cast once per timestep
            # _compute_init_state: x @ W0[:E] was hoisted; add h @ W0[E:].
            pre = xw0_ref[tt].astype(jnp.float32) + jnp.dot(
                h_mm, w0h, preferred_element_type=jnp.float32)      # (Bb, 2H)
            c0 = jax.nn.sigmoid(pre[:, :H])
            h0 = jnp.tanh(pre[:, H:])
            states = [h_prev + c0 * (h0 - h_prev)]

            mm_cache = {}
            def as_mm(idx):
                v = mm_cache.get(idx)
                if v is None:
                    v = states[idx].astype(mm_dtype)
                    mm_cache[idx] = v
                return v

            # DAG: one wide matmul per predecessor group; slices at k*H are
            # lane-aligned (H % 128 == 0) and therefore free.
            for g, (pred, nodes) in enumerate(groups):
                sp = states[pred]
                ch = jnp.dot(as_mm(pred), gw[g],
                             preferred_element_type=jnp.float32)
                for k, (_, name) in enumerate(nodes):
                    c = jax.nn.sigmoid(ch[:, 2 * k * H:(2 * k + 1) * H])
                    hh = _ACTIVATIONS[name](ch[:, (2 * k + 1) * H:(2 * k + 2) * H])
                    states.append(sp + c * (hh - sp))

            out = states[GENOTYPE_CONCAT[0]]
            for idx in GENOTYPE_CONCAT[1:]:
                out = out + states[idx]
            out = out * (1.0 / float(len(GENOTYPE_CONCAT)))
            hid_ref[tt] = out
            return out

        h = h_scratch[...]
        if chunk_t <= _UNROLL_THRESHOLD:
            for tt in range(chunk_t):            # short static unroll
                h = step(tt, h)
        else:
            unroll = next(u for u in (4, 2, 1) if chunk_t % u == 0)
            h = lax.fori_loop(0, chunk_t, step, h, unroll=unroll)
        h_scratch[...] = h                       # carry hidden to next chunk

    return kernel


def _make_split_kernel(*, chunk_t, H, mm_dtype, steps):
    """Pre-split c/h weight kernel for H < 128 (avoids sub-128 lane slicing)."""

    def kernel(xw0c_ref, xw0h_ref, w0hc_ref, w0hh_ref, wsc_ref, wsh_ref,
               hid_ref, h_scratch):
        tc = pl.program_id(1)

        @pl.when(tc == 0)
        def _():
            h_scratch[...] = jnp.zeros_like(h_scratch)

        # Hoist invariant weight reads out of the timestep loop.
        w0hc = w0hc_ref[...]
        w0hh = w0hh_ref[...]
        wsc = [wsc_ref[i] for i in range(steps)]
        wsh = [wsh_ref[i] for i in range(steps)]

        def step(tt, h_prev):
            h_mm = h_prev.astype(mm_dtype)
            pre_c = xw0c_ref[tt].astype(jnp.float32) + jnp.dot(
                h_mm, w0hc, preferred_element_type=jnp.float32)
            pre_h = xw0h_ref[tt].astype(jnp.float32) + jnp.dot(
                h_mm, w0hh, preferred_element_type=jnp.float32)
            c0 = jax.nn.sigmoid(pre_c)
            h0 = jnp.tanh(pre_h)
            states = [h_prev + c0 * (h0 - h_prev)]

            mm_cache = {}
            def as_mm(idx):
                v = mm_cache.get(idx)
                if v is None:
                    v = states[idx].astype(mm_dtype)
                    mm_cache[idx] = v
                return v

            for i, (name, pred) in enumerate(GENOTYPE_RECURRENT):
                sp = states[pred]
                sp_mm = as_mm(pred)
                c = jax.nn.sigmoid(jnp.dot(sp_mm, wsc[i],
                                           preferred_element_type=jnp.float32))
                hh = _ACTIVATIONS[name](jnp.dot(sp_mm, wsh[i],
                                                preferred_element_type=jnp.float32))
                states.append(sp + c * (hh - sp))

            out = states[GENOTYPE_CONCAT[0]]
            for idx in GENOTYPE_CONCAT[1:]:
                out = out + states[idx]
            out = out * (1.0 / float(len(GENOTYPE_CONCAT)))
            hid_ref[tt] = out
            return out

        h = h_scratch[...]
        if chunk_t <= _UNROLL_THRESHOLD:
            for tt in range(chunk_t):
                h = step(tt, h)
        else:
            unroll = next(u for u in (4, 2, 1) if chunk_t % u == 0)
            h = lax.fori_loop(0, chunk_t, step, h, unroll=unroll)
        h_scratch[...] = h

    return kernel


# --------------------------------------------------------------------------
# Wrapper
# --------------------------------------------------------------------------
def darts_cell_forward(inputs, w0, ws, *, chunk_t=None, batch_block=None,
                       mm_dtype=jnp.float32, proj_dtype=None, fuse=None):
    """inputs: (T, B, E) f32; w0: (E+H, 2H); ws: (steps, H, 2H).

    Returns (hiddens (T,B,H), last_hidden (1,B,H)) matching DARTSCell.forward
    in eval mode with hidden=None.
    """
    T, B, E = inputs.shape
    steps, _, two_h = ws.shape
    H = two_h // 2
    assert E == H, "PyTorch module initializes hidden like inputs -> E must == H"
    assert steps == len(GENOTYPE_RECURRENT)

    if fuse is None:
        fuse = (H % 128 == 0)        # fused result slices need 128-lane alignment
    if proj_dtype is None:
        proj_dtype = jnp.float32     # set bfloat16 on v5e to halve the xw0 stream

    # Per-generation VMEM budget (v7x: 64 MiB physical; v5e/v6e: 128 MiB).
    vmem_cap = _vmem_capacity_bytes()
    vmem_limit = max(32 * 1024 * 1024,
                     min(int(vmem_cap * 0.85), vmem_cap - 8 * 1024 * 1024))

    if batch_block is None:
        batch_block = B
        # On a 2-TensorCore chip (v7x) split the batch so the "parallel" grid
        # axis actually has >= 2 programs; keep one fat block on v5e/v6e.
        if _num_tensorcores() >= 2 and B % 2 == 0 and (B // 2) % 8 == 0:
            batch_block = B // 2
    assert B % batch_block == 0
    nb = B // batch_block

    if chunk_t is None:
        # nt >= 3 so the BlockSpec pipeline hides HBM traffic under compute.
        chunk_t = _pick_chunk_t(T, batch_block, H,
                                jnp.dtype(proj_dtype).itemsize,
                                vmem_budget_bytes=vmem_limit // 2)
    assert T % chunk_t == 0
    nt = T // chunk_t

    w0x = w0[:E, :]                  # (E, 2H)
    w0h = w0[E:, :]                  # (H, 2H)

    # Hoisted, h-independent input projection: one large MXU matmul instead of
    # T tiny per-step matmuls on the serial chain.
    xw0 = jnp.dot(inputs.reshape(T * B, E).astype(mm_dtype),
                  w0x.astype(mm_dtype),
                  preferred_element_type=jnp.float32).reshape(T, B, two_h)

    out_shape = jax.ShapeDtypeStruct((T, B, H), jnp.float32)

    def _call(weight_pipeline_mode):
        def wspec(shape):
            # Grid-invariant weights: optionally single-buffer them.
            if weight_pipeline_mode is None:
                return pl.BlockSpec(shape, lambda b, t: (0,) * len(shape))
            return pl.BlockSpec(shape, lambda b, t: (0,) * len(shape),
                                pipeline_mode=weight_pipeline_mode)

        if fuse:
            groups = _group_nodes(GENOTYPE_RECURRENT)
            group_ws = [jnp.concatenate([ws[i] for i, _ in nodes], axis=1)
                          .astype(mm_dtype)
                        for _, nodes in groups]
            kernel = _make_fused_kernel(chunk_t=chunk_t, H=H, mm_dtype=mm_dtype,
                                        groups=groups, num_groups=len(groups))
            in_specs = [pl.BlockSpec((chunk_t, batch_block, two_h),
                                     lambda b, t: (t, b, 0)),          # xw0 slab
                        wspec((H, two_h))]                              # W0[E:]
            in_specs += [wspec(gw.shape) for gw in group_ws]            # fused Ws
            args = [xw0.astype(proj_dtype), w0h.astype(mm_dtype)] + group_ws
        else:
            kernel = _make_split_kernel(chunk_t=chunk_t, H=H, mm_dtype=mm_dtype,
                                        steps=steps)
            in_specs = [
                pl.BlockSpec((chunk_t, batch_block, H),
                             lambda b, t: (t, b, 0)),                   # xw0 c-half
                pl.BlockSpec((chunk_t, batch_block, H),
                             lambda b, t: (t, b, 0)),                   # xw0 h-half
                wspec((H, H)), wspec((H, H)),                           # W0[E:] c/h
                wspec((steps, H, H)), wspec((steps, H, H)),             # Ws c/h
            ]
            args = [xw0[..., :H].astype(proj_dtype),
                    xw0[..., H:].astype(proj_dtype),
                    w0h[:, :H].astype(mm_dtype), w0h[:, H:].astype(mm_dtype),
                    ws[:, :, :H].astype(mm_dtype), ws[:, :, H:].astype(mm_dtype)]

        return pl.pallas_call(
            kernel,
            out_shape=out_shape,
            grid_spec=pltpu.PrefetchScalarGridSpec(
                num_scalar_prefetch=0,
                grid=(nb, nt),                                          # (batch, time)
                in_specs=in_specs,
                out_specs=pl.BlockSpec((chunk_t, batch_block, H),
                                       lambda b, t: (t, b, 0)),         # dense slab
                scratch_shapes=[pltpu.VMEM((batch_block, H), jnp.float32)],
            ),
            compiler_params=pltpu.CompilerParams(
                # batch blocks are independent (v7x megacore); time is sequential
                dimension_semantics=("parallel", "arbitrary"),
                vmem_limit_bytes=vmem_limit,
            ),
        )(*args)

    try:
        # Weights are grid-invariant -> single-buffer them to reclaim VMEM.
        hiddens = _call(pl.Buffered(1))
    except Exception:
        # Fallback if this Pallas build rejects buffer_count=1 / pipeline_mode.
        hiddens = _call(None)

    return hiddens, hiddens[-1][None]   # (T,B,H), (1,B,H)


# --------------------------------------------------------------------------
# Pure-JAX reference (mirrors the PyTorch eval-mode forward)
# --------------------------------------------------------------------------
def _reference_forward(inputs, w0, ws):
    T, B, E = inputs.shape
    H = w0.shape[1] // 2
    h = jnp.zeros((B, H), jnp.float32)
    outs = []
    for t in range(T):
        ch0 = jnp.concatenate([inputs[t], h], axis=-1) @ w0
        c0 = jax.nn.sigmoid(ch0[:, :H])
        h0 = jnp.tanh(ch0[:, H:])
        states = [h + c0 * (h0 - h)]
        for i, (name, pred) in enumerate(GENOTYPE_RECURRENT):
            sp = states[pred]
            ch = sp @ ws[i]
            c = jax.nn.sigmoid(ch[:, :H])
            hh = _ACTIVATIONS[name](ch[:, H:])
            states.append(sp + c * (hh - sp))
        h = jnp.mean(jnp.stack([states[i] for i in GENOTYPE_CONCAT], -1), -1)
        outs.append(h)
    outs = jnp.stack(outs)
    return outs, outs[-1][None]


if __name__ == "__main__":
    steps = len(GENOTYPE_RECURRENT)
    key = jax.random.PRNGKey(0)
    k1, k2, k3, k4, k5, k6 = jax.random.split(key, 6)

    # --- Test 1: toy sizes (H < 128) -> pre-split weight path, exact f32 check.
    T, B = 8, 2
    E = H = 32
    inputs = jax.random.normal(k1, (T, B, E), jnp.float32)
    w0 = jax.random.uniform(k2, (E + H, 2 * H), jnp.float32,
                            minval=-INITRANGE, maxval=INITRANGE)
    ws = jax.random.uniform(k3, (steps, H, 2 * H), jnp.float32,
                            minval=-INITRANGE, maxval=INITRANGE)
    hiddens, last = darts_cell_forward(inputs, w0, ws)
    jax.block_until_ready((hiddens, last))
    ref_h, ref_last = _reference_forward(inputs, w0, ws)
    assert hiddens.shape == (T, B, H) and last.shape == (1, B, H)
    assert jnp.allclose(hiddens, ref_h, atol=1e-5, rtol=1e-5)
    assert jnp.allclose(last, ref_last, atol=1e-5, rtol=1e-5)

    # --- Test 2: lane-aligned H (=128) -> fused-weight path (fewer, fatter
    #     dependent MXU ops on the serial chain).  Still small; f32 matmuls.
    T2, B2 = 8, 8
    E2 = H2 = 128
    inputs2 = jax.random.normal(k4, (T2, B2, E2), jnp.float32)
    w02 = jax.random.uniform(k5, (E2 + H2, 2 * H2), jnp.float32,
                             minval=-INITRANGE, maxval=INITRANGE)
    ws2 = jax.random.uniform(k6, (steps, H2, 2 * H2), jnp.float32,
                             minval=-INITRANGE, maxval=INITRANGE)
    hiddens2, last2 = darts_cell_forward(inputs2, w02, ws2)
    jax.block_until_ready((hiddens2, last2))
    ref_h2, ref_last2 = _reference_forward(inputs2, w02, ws2)
    assert hiddens2.shape == (T2, B2, H2) and last2.shape == (1, B2, H2)
    assert jnp.allclose(hiddens2, ref_h2, atol=1e-4, rtol=1e-4)
    assert jnp.allclose(last2, ref_last2, atol=1e-4, rtol=1e-4)

    print("KERNEL_OK")
</pallas_src>

<mosaic_0001>
module attributes {stable_mosaic.version = 11 : i64} {
  func.func @kernel(%arg0: i32, %arg1: i32, %arg2: memref<2x2x32xf32, #tpu.memory_space<vmem>>, %arg3: memref<2x2x32xf32, #tpu.memory_space<vmem>>, %arg4: memref<32x32xf32, #tpu.memory_space<vmem>>, %arg5: memref<32x32xf32, #tpu.memory_space<vmem>>, %arg6: memref<4x32x32xf32, #tpu.memory_space<vmem>>, %arg7: memref<4x32x32xf32, #tpu.memory_space<vmem>>, %arg8: memref<2x2x32xf32, #tpu.memory_space<vmem>>, %arg9: memref<2x32xf32, #tpu.memory_space<vmem>>) attributes {dimension_semantics = [#tpu.dimension_semantics<parallel>, #tpu.dimension_semantics<arbitrary>], iteration_bounds = array<i64: 1, 4>, scalar_prefetch = 0 : i64, scratch_operands = 1 : i64, tpu.core_type = #tpu.core_type<tc>, window_params = [{transform_indices = @transform_0, window_bounds = array<i64: 2, 2, 32>}, {transform_indices = @transform_1, window_bounds = array<i64: 2, 2, 32>}, {pipeline_mode = #tpu.pipeline_mode<synchronous>, transform_indices = @transform_2, window_bounds = array<i64: 32, 32>}, {pipeline_mode = #tpu.pipeline_mode<synchronous>, transform_indices = @transform_3, window_bounds = array<i64: 32, 32>}, {pipeline_mode = #tpu.pipeline_mode<synchronous>, transform_indices = @transform_4, window_bounds = array<i64: 4, 32, 32>}, {pipeline_mode = #tpu.pipeline_mode<synchronous>, transform_indices = @transform_5, window_bounds = array<i64: 4, 32, 32>}, {transform_indices = @transform_6, window_bounds = array<i64: 2, 2, 32>}]} {
    %c0_i32 = arith.constant 0 : i32
    %0 = arith.cmpi eq, %arg1, %c0_i32 : i32
    %1 = arith.extui %0 : i1 to i32
    %c0_i32_0 = arith.constant 0 : i32
    %2 = arith.cmpi ne, %1, %c0_i32_0 : i32
    scf.if %2 {
      %cst_82 = arith.constant 0.000000e+00 : f32
      %169 = vector.broadcast %cst_82 : f32 to vector<2x32xf32>
      %c0_83 = arith.constant 0 : index
      %c0_84 = arith.constant 0 : index
      %170 = vector.load %arg9[%c0_83, %c0_84] : memref<2x32xf32, #tpu.memory_space<vmem>>, vector<2x32xf32>
      tpu.vector_store %arg9[%c0_83, %c0_84], %169 {strides = array<i32>} : memref<2x32xf32, #tpu.memory_space<vmem>>, vector<2x32xf32>,
    } else {
    }
    %c0 = arith.constant 0 : index
    %c0_1 = arith.constant 0 : index
    %3 = vector.load %arg4[%c0, %c0_1] : memref<32x32xf32, #tpu.memory_space<vmem>>, vector<32x32xf32>
    %c0_2 = arith.constant 0 : index
    %c0_3 = arith.constant 0 : index
    %4 = vector.load %arg5[%c0_2, %c0_3] : memref<32x32xf32, #tpu.memory_space<vmem>>, vector<32x32xf32>
    %c0_4 = arith.constant 0 : index
    %c0_5 = arith.constant 0 : index
    %c0_6 = arith.constant 0 : index
    %5 = vector.load %arg6[%c0_4, %c0_5, %c0_6] : memref<4x32x32xf32, #tpu.memory_space<vmem>>, vector<1x32x32xf32>
    %6 = vector.shape_cast %5 : vector<1x32x32xf32> to vector<32x32xf32>
    %c1 = arith.constant 1 : index
    %c0_7 = arith.constant 0 : index
    %c0_8 = arith.constant 0 : index
    %7 = vector.load %arg6[%c1, %c0_7, %c0_8] : memref<4x32x32xf32, #tpu.memory_space<vmem>>, vector<1x32x32xf32>
    %8 = vector.shape_cast %7 : vector<1x32x32xf32> to vector<32x32xf32>
    %c2 = arith.constant 2 : index
    %c0_9 = arith.constant 0 : index
    %c0_10 = arith.constant 0 : index
    %9 = vector.load %arg6[%c2, %c0_9, %c0_10] : memref<4x32x32xf32, #tpu.memory_space<vmem>>, vector<1x32x32xf32>
    %10 = vector.shape_cast %9 : vector<1x32x32xf32> to vector<32x32xf32>
    %c3 = arith.constant 3 : index
    %c0_11 = arith.constant 0 : index
    %c0_12 = arith.constant 0 : index
    %11 = vector.load %arg6[%c3, %c0_11, %c0_12] : memref<4x32x32xf32, #tpu.memory_space<vmem>>, vector<1x32x32xf32>
    %12 = vector.shape_cast %11 : vector<1x32x32xf32> to vector<32x32xf32>
    %c0_13 = arith.constant 0 : index
    %c0_14 = arith.constant 0 : index
    %c0_15 = arith.constant 0 : index
    %13 = vector.load %arg7[%c0_13, %c0_14, %c0_15] : memref<4x32x32xf32, #tpu.memory_space<vmem>>, vector<1x32x32xf32>
    %14 = vector.shape_cast %13 : vector<1x32x32xf32> to vector<32x32xf32>
    %c1_16 = arith.constant 1 : index
    %c0_17 = arith.constant 0 : index
    %c0_18 = arith.constant 0 : index
    %15 = vector.load %arg7[%c1_16, %c0_17, %c0_18] : memref<4x32x32xf32, #tpu.memory_space<vmem>>, vector<1x32x32xf32>
    %16 = vector.shape_cast %15 : vector<1x32x32xf32> to vector<32x32xf32>
    %c2_19 = arith.constant 2 : index
    %c0_20 = arith.constant 0 : index
    %c0_21 = arith.constant 0 : index
    %17 = vector.load %arg7[%c2_19, %c0_20, %c0_21] : memref<4x32x32xf32, #tpu.memory_space<vmem>>, vector<1x32x32xf32>
    %18 = vector.shape_cast %17 : vector<1x32x32xf32> to vector<32x32xf32>
    %c3_22 = arith.constant 3 : index
    %c0_23 = arith.constant 0 : index
    %c0_24 = arith.constant 0 : index
    %19 = vector.load %arg7[%c3_22, %c0_23, %c0_24] : memref<4x32x32xf32, #tpu.memory_space<vmem>>, vector<1x32x32xf32>
    %20 = vector.shape_cast %19 : vector<1x32x32xf32> to vector<32x32xf32>
    %c0_25 = arith.constant 0 : index
    %c0_26 = arith.constant 0 : index
    %21 = vector.load %arg9[%c0_25, %c0_26] : memref<2x32xf32, #tpu.memory_space<vmem>>, vector<2x32xf32>
    %c0_27 = arith.constant 0 : index
    %c0_28 = arith.constant 0 : index
    %c0_29 = arith.constant 0 : index
    %22 = vector.load %arg2[%c0_27, %c0_28, %c0_29] : memref<2x2x32xf32, #tpu.memory_space<vmem>>, vector<1x2x32xf32>
    %23 = vector.shape_cast %22 : vector<1x2x32xf32> to vector<2x32xf32>
    %cst = arith.constant dense<0.000000e+00> : vector<2x32xf32>
    %24 = tpu.matmul %21, %3, %cst {dimension_numbers = #tpu.dot_dimension_numbers<[1], [0], [0], [1], [0, 0, 1, 1], [], []>} : vector<2x32xf32>, vector<32x32xf32>, vector<2x32xf32> -> vector<2x32xf32>
    %25 = arith.addf %23, %24 : vector<2x32xf32>
    %c0_30 = arith.constant 0 : index
    %c0_31 = arith.constant 0 : index
    %c0_32 = arith.constant 0 : index
    %26 = vector.load %arg3[%c0_30, %c0_31, %c0_32] : memref<2x2x32xf32, #tpu.memory_space<vmem>>, vector<1x2x32xf32>
    %27 = vector.shape_cast %26 : vector<1x2x32xf32> to vector<2x32xf32>
    %cst_33 = arith.constant dense<0.000000e+00> : vector<2x32xf32>
    %28 = tpu.matmul %21, %4, %cst_33 {dimension_numbers = #tpu.dot_dimension_numbers<[1], [0], [0], [1], [0, 0, 1, 1], [], []>} : vector<2x32xf32>, vector<32x32xf32>, vector<2x32xf32> -> vector<2x32xf32>
    %29 = arith.addf %27, %28 : vector<2x32xf32>
    %30 = arith.negf %25 : vector<2x32xf32>
    %31 = math.exp %30 : vector<2x32xf32>
    %cst_34 = arith.constant 1.000000e+00 : f32
    %32 = vector.broadcast %cst_34 : f32 to vector<2x32xf32>
    %33 = arith.addf %32, %31 : vector<2x32xf32>
    %34 = arith.divf %32, %33 : vector<2x32xf32>
    %35 = math.tanh %29 : vector<2x32xf32>
    %36 = arith.subf %35, %21 : vector<2x32xf32>
    %37 = arith.mulf %34, %36 : vector<2x32xf32>
    %38 = arith.addf %21, %37 : vector<2x32xf32>
    %cst_35 = arith.constant dense<0.000000e+00> : vector<2x32xf32>
    %39 = tpu.matmul %38, %6, %cst_35 {dimension_numbers = #tpu.dot_dimension_numbers<[1], [0], [0], [1], [0, 0, 1, 1], [], []>} : vector<2x32xf32>, vector<32x32xf32>, vector<2x32xf32> -> vector<2x32xf32>
    %40 = arith.negf %39 : vector<2x32xf32>
    %41 = math.exp %40 : vector<2x32xf32>
    %cst_36 = arith.constant 1.000000e+00 : f32
    %42 = vector.broadcast %cst_36 : f32 to vector<2x32xf32>
    %43 = arith.addf %42, %41 : vector<2x32xf32>
    %44 = arith.divf %42, %43 : vector<2x32xf32>
    %cst_37 = arith.constant dense<0.000000e+00> : vector<2x32xf32>
    %45 = tpu.matmul %38, %14, %cst_37 {dimension_numbers = #tpu.dot_dimension_numbers<[1], [0], [0], [1], [0, 0, 1, 1], [], []>} : vector<2x32xf32>, vector<32x32xf32>, vector<2x32xf32> -> vector<2x32xf32>
    %cst_38 = arith.constant 0.000000e+00 : f32
    %46 = vector.broadcast %cst_38 : f32 to vector<2x32xf32>
    %47 = arith.maximumf %45, %46 : vector<2x32xf32>
    %48 = arith.subf %47, %38 : vector<2x32xf32>
    %49 = arith.mulf %44, %48 : vector<2x32xf32>
    %50 = arith.addf %38, %49 : vector<2x32xf32>
    %cst_39 = arith.constant dense<0.000000e+00> : vector<2x32xf32>
    %51 = tpu.matmul %50, %8, %cst_39 {dimension_numbers = #tpu.dot_dimension_numbers<[1], [0], [0], [1], [0, 0, 1, 1], [], []>} : vector<2x32xf32>, vector<32x32xf32>, vector<2x32xf32> -> vector<2x32xf32>
    %52 = arith.negf %51 : vector<2x32xf32>
    %53 = math.exp %52 : vector<2x32xf32>
    %cst_40 = arith.constant 1.000000e+00 : f32
    %54 = vector.broadcast %cst_40 : f32 to vector<2x32xf32>
    %55 = arith.addf %54, %53 : vector<2x32xf32>
    %56 = arith.divf %54, %55 : vector<2x32xf32>
    %cst_41 = arith.constant dense<0.000000e+00> : vector<2x32xf32>
    %57 = tpu.matmul %50, %16, %cst_41 {dimension_numbers = #tpu.dot_dimension_numbers<[1], [0], [0], [1], [0, 0, 1, 1], [], []>} : vector<2x32xf32>, vector<32x32xf32>, vector<2x32xf32> -> vector<2x32xf32>
    %58 = math.tanh %57 : vector<2x32xf32>
    %59 = arith.subf %58, %50 : vector<2x32xf32>
    %60 = arith.mulf %56, %59 : vector<2x32xf32>
    %61 = arith.addf %50, %60 : vector<2x32xf32>
    %cst_42 = arith.constant dense<0.000000e+00> : vector<2x32xf32>
    %62 = tpu.matmul %50, %10, %cst_42 {dimension_numbers = #tpu.dot_dimension_numbers<[1], [0], [0], [1], [0, 0, 1, 1], [], []>} : vector<2x32xf32>, vector<32x32xf32>, vector<2x32xf32> -> vector<2x32xf32>
    %63 = arith.negf %62 : vector<2x32xf32>
    %64 = math.exp %63 : vector<2x32xf32>
    %cst_43 = arith.constant 1.000000e+00 : f32
    %65 = vector.broadcast %cst_43 : f32 to vector<2x32xf32>
    %66 = arith.addf %65, %64 : vector<2x32xf32>
    %67 = arith.divf %65, %66 : vector<2x32xf32>
    %cst_44 = arith.constant dense<0.000000e+00> : vector<2x32xf32>
    %68 = tpu.matmul %50, %18, %cst_44 {dimension_numbers = #tpu.dot_dimension_numbers<[1], [0], [0], [1], [0, 0, 1, 1], [], []>} : vector<2x32xf32>, vector<32x32xf32>, vector<2x32xf32> -> vector<2x32xf32>
    %69 = arith.negf %68 : vector<2x32xf32>
    %70 = math.exp %69 : vector<2x32xf32>
    %cst_45 = arith.constant 1.000000e+00 : f32
    %71 = vector.broadcast %cst_45 : f32 to vector<2x32xf32>
    %72 = arith.addf %71, %70 : vector<2x32xf32>
    %73 = arith.divf %71, %72 : vector<2x32xf32>
    %74 = arith.subf %73, %50 : vector<2x32xf32>
    %75 = arith.mulf %67, %74 : vector<2x32xf32>
    %76 = arith.addf %50, %75 : vector<2x32xf32>
    %cst_46 = arith.constant dense<0.000000e+00> : vector<2x32xf32>
    %77 = tpu.matmul %61, %12, %cst_46 {dimension_numbers = #tpu.dot_dimension_numbers<[1], [0], [0], [1], [0, 0, 1, 1], [], []>} : vector<2x32xf32>, vector<32x32xf32>, vector<2x32xf32> -> vector<2x32xf32>
    %78 = arith.negf %77 : vector<2x32xf32>
    %79 = math.exp %78 : vector<2x32xf32>
    %cst_47 = arith.constant 1.000000e+00 : f32
    %80 = vector.broadcast %cst_47 : f32 to vector<2x32xf32>
    %81 = arith.addf %80, %79 : vector<2x32xf32>
    %82 = arith.divf %80, %81 : vector<2x32xf32>
    %cst_48 = arith.constant dense<0.000000e+00> : vector<2x32xf32>
    %83 = tpu.matmul %61, %20, %cst_48 {dimension_numbers = #tpu.dot_dimension_numbers<[1], [0], [0], [1], [0, 0, 1, 1], [], []>} : vector<2x32xf32>, vector<32x32xf32>, vector<2x32xf32> -> vector<2x32xf32>
    %84 = arith.subf %83, %61 : vector<2x32xf32>
    %85 = arith.mulf %82, %84 : vector<2x32xf32>
    %86 = arith.addf %61, %85 : vector<2x32xf32>
    %87 = arith.addf %50, %61 : vector<2x32xf32>
    %88 = arith.addf %87, %76 : vector<2x32xf32>
    %89 = arith.addf %88, %86 : vector<2x32xf32>
    %cst_49 = arith.constant 2.500000e-01 : f32
    %90 = vector.broadcast %cst_49 : f32 to vector<2x32xf32>
    %91 = arith.mulf %89, %90 : vector<2x32xf32>
    %c0_50 = arith.constant 0 : index
    %c0_51 = arith.constant 0 : index
    %c0_52 = arith.constant 0 : index
    %92 = vector.load %arg8[%c0_50, %c0_51, %c0_52] : memref<2x2x32xf32, #tpu.memory_space<vmem>>, vector<1x2x32xf32>
    %93 = vector.shape_cast %92 : vector<1x2x32xf32> to vector<2x32xf32>
    %94 = vector.shape_cast %91 : vector<2x32xf32> to vector<1x2x32xf32>
    tpu.vector_store %arg8[%c0_50, %c0_51, %c0_52], %94 {strides = array<i32>} : memref<2x2x32xf32, #tpu.memory_space<vmem>>, vector<1x2x32xf32>,
    %c1_53 = arith.constant 1 : index
    %c0_54 = arith.constant 0 : index
    %c0_55 = arith.constant 0 : index
    %95 = vector.load %arg2[%c1_53, %c0_54, %c0_55] : memref<2x2x32xf32, #tpu.memory_space<vmem>>, vector<1x2x32xf32>
    %96 = vector.shape_cast %95 : vector<1x2x32xf32> to vector<2x32xf32>
    %cst_56 = arith.constant dense<0.000000e+00> : vector<2x32xf32>
    %97 = tpu.matmul %91, %3, %cst_56 {dimension_numbers = #tpu.dot_dimension_numbers<[1], [0], [0], [1], [0, 0, 1, 1], [], []>} : vector<2x32xf32>, vector<32x32xf32>, vector<2x32xf32> -> vector<2x32xf32>
    %98 = arith.addf %96, %97 : vector<2x32xf32>
    %c1_57 = arith.constant 1 : index
    %c0_58 = arith.constant 0 : index
    %c0_59 = arith.constant 0 : index
    %99 = vector.load %arg3[%c1_57, %c0_58, %c0_59] : memref<2x2x32xf32, #tpu.memory_space<vmem>>, vector<1x2x32xf32>
    %100 = vector.shape_cast %99 : vector<1x2x32xf32> to vector<2x32xf32>
    %cst_60 = arith.constant dense<0.000000e+00> : vector<2x32xf32>
    %101 = tpu.matmul %91, %4, %cst_60 {dimension_numbers = #tpu.dot_dimension_numbers<[1], [0], [0], [1], [0, 0, 1, 1], [], []>} : vector<2x32xf32>, vector<32x32xf32>, vector<2x32xf32> -> vector<2x32xf32>
    %102 = arith.addf %100, %101 : vector<2x32xf32>
    %103 = arith.negf %98 : vector<2x32xf32>
    %104 = math.exp %103 : vector<2x32xf32>
    %cst_61 = arith.constant 1.000000e+00 : f32
    %105 = vector.broadcast %cst_61 : f32 to vector<2x32xf32>
    %106 = arith.addf %105, %104 : vector<2x32xf32>
    %107 = arith.divf %105, %106 : vector<2x32xf32>
    %108 = math.tanh %102 : vector<2x32xf32>
    %109 = arith.subf %108, %91 : vector<2x32xf32>
    %110 = arith.mulf %107, %109 : vector<2x32xf32>
    %111 = arith.addf %91, %110 : vector<2x32xf32>
    %cst_62 = arith.constant dense<0.000000e+00> : vector<2x32xf32>
    %112 = tpu.matmul %111, %6, %cst_62 {dimension_numbers = #tpu.dot_dimension_numbers<[1], [0], [0], [1], [0, 0, 1, 1], [], []>} : vector<2x32xf32>, vector<32x32xf32>, vector<2x32xf32> -> vector<2x32xf32>
    %113 = arith.negf %112 : vector<2x32xf32>
    %114 = math.exp %113 : vector<2x32xf32>
    %cst_63 = arith.constant 1.000000e+00 : f32
    %115 = vector.broadcast %cst_63 : f32 to vector<2x32xf32>
    %116 = arith.addf %115, %114 : vector<2x32xf32>
    %117 = arith.divf %115, %116 : vector<2x32xf32>
    %cst_64 = arith.constant dense<0.000000e+00> : vector<2x32xf32>
    %118 = tpu.matmul %111, %14, %cst_64 {dimension_numbers = #tpu.dot_dimension_numbers<[1], [0], [0], [1], [0, 0, 1, 1], [], []>} : vector<2x32xf32>, vector<32x32xf32>, vector<2x32xf32> -> vector<2x32xf32>
    %cst_65 = arith.constant 0.000000e+00 : f32
    %119 = vector.broadcast %cst_65 : f32 to vector<2x32xf32>
    %120 = arith.maximumf %118, %119 : vector<2x32xf32>
    %121 = arith.subf %120, %111 : vector<2x32xf32>
    %122 = arith.mulf %117, %121 : vector<2x32xf32>
    %123 = arith.addf %111, %122 : vector<2x32xf32>
    %cst_66 = arith.constant dense<0.000000e+00> : vector<2x32xf32>
    %124 = tpu.matmul %123, %8, %cst_66 {dimension_numbers = #tpu.dot_dimension_numbers<[1], [0], [0], [1], [0, 0, 1, 1], [], []>} : vector<2x32xf32>, vector<32x32xf32>, vector<2x32xf32> -> vector<2x32xf32>
    %125 = arith.negf %124 : vector<2x32xf32>
    %126 = math.exp %125 : vector<2x32xf32>
    %cst_67 = arith.constant 1.000000e+00 : f32
    %127 = vector.broadcast %cst_67 : f32 to vector<2x32xf32>
    %128 = arith.addf %127, %126 : vector<2x32xf32>
    %129 = arith.divf %127, %128 : vector<2x32xf32>
    %cst_68 = arith.constant dense<0.000000e+00> : vector<2x32xf32>
    %130 = tpu.matmul %123, %16, %cst_68 {dimension_numbers = #tpu.dot_dimension_numbers<[1], [0], [0], [1], [0, 0, 1, 1], [], []>} : vector<2x32xf32>, vector<32x32xf32>, vector<2x32xf32> -> vector<2x32xf32>
    %131 = math.tanh %130 : vector<2x32xf32>
    %132 = arith.subf %131, %123 : vector<2x32xf32>
    %133 = arith.mulf %129, %132 : vector<2x32xf32>
    %134 = arith.addf %123, %133 : vector<2x32xf32>
    %cst_69 = arith.constant dense<0.000000e+00> : vector<2x32xf32>
    %135 = tpu.matmul %123, %10, %cst_69 {dimension_numbers = #tpu.dot_dimension_numbers<[1], [0], [0], [1], [0, 0, 1, 1], [], []>} : vector<2x32xf32>, vector<32x32xf32>, vector<2x32xf32> -> vector<2x32xf32>
    %136 = arith.negf %135 : vector<2x32xf32>
    %137 = math.exp %136 : vector<2x32xf32>
    %cst_70 = arith.constant 1.000000e+00 : f32
    %138 = vector.broadcast %cst_70 : f32 to vector<2x32xf32>
    %139 = arith.addf %138, %137 : vector<2x32xf32>
    %140 = arith.divf %138, %139 : vector<2x32xf32>
    %cst_71 = arith.constant dense<0.000000e+00> : vector<2x32xf32>
    %141 = tpu.matmul %123, %18, %cst_71 {dimension_numbers = #tpu.dot_dimension_numbers<[1], [0], [0], [1], [0, 0, 1, 1], [], []>} : vector<2x32xf32>, vector<32x32xf32>, vector<2x32xf32> -> vector<2x32xf32>
    %142 = arith.negf %141 : vector<2x32xf32>
    %143 = math.exp %142 : vector<2x32xf32>
    %cst_72 = arith.constant 1.000000e+00 : f32
    %144 = vector.broadcast %cst_72 : f32 to vector<2x32xf32>
    %145 = arith.addf %144, %143 : vector<2x32xf32>
    %146 = arith.divf %144, %145 : vector<2x32xf32>
    %147 = arith.subf %146, %123 : vector<2x32xf32>
    %148 = arith.mulf %140, %147 : vector<2x32xf32>
    %149 = arith.addf %123, %148 : vector<2x32xf32>
    %cst_73 = arith.constant dense<0.000000e+00> : vector<2x32xf32>
    %150 = tpu.matmul %134, %12, %cst_73 {dimension_numbers = #tpu.dot_dimension_numbers<[1], [0], [0], [1], [0, 0, 1, 1], [], []>} : vector<2x32xf32>, vector<32x32xf32>, vector<2x32xf32> -> vector<2x32xf32>
    %151 = arith.negf %150 : vector<2x32xf32>
    %152 = math.exp %151 : vector<2x32xf32>
    %cst_74 = arith.constant 1.000000e+00 : f32
    %153 = vector.broadcast %cst_74 : f32 to vector<2x32xf32>
    %154 = arith.addf %153, %152 : vector<2x32xf32>
    %155 = arith.divf %153, %154 : vector<2x32xf32>
    %cst_75 = arith.constant dense<0.000000e+00> : vector<2x32xf32>
    %156 = tpu.matmul %134, %20, %cst_75 {dimension_numbers = #tpu.dot_dimension_numbers<[1], [0], [0], [1], [0, 0, 1, 1], [], []>} : vector<2x32xf32>, vector<32x32xf32>, vector<2x32xf32> -> vector<2x32xf32>
    %157 = arith.subf %156, %134 : vector<2x32xf32>
    %158 = arith.mulf %155, %157 : vector<2x32xf32>
    %159 = arith.addf %134, %158 : vector<2x32xf32>
    %160 = arith.addf %123, %134 : vector<2x32xf32>
    %161 = arith.addf %160, %149 : vector<2x32xf32>
    %162 = arith.addf %161, %159 : vector<2x32xf32>
    %cst_76 = arith.constant 2.500000e-01 : f32
    %163 = vector.broadcast %cst_76 : f32 to vector<2x32xf32>
    %164 = arith.mulf %162, %163 : vector<2x32xf32>
    %c1_77 = arith.constant 1 : index
    %c0_78 = arith.constant 0 : index
    %c0_79 = arith.constant 0 : index
    %165 = vector.load %arg8[%c1_77, %c0_78, %c0_79] : memref<2x2x32xf32, #tpu.memory_space<vmem>>, vector<1x2x32xf32>
    %166 = vector.shape_cast %165 : vector<1x2x32xf32> to vector<2x32xf32>
    %167 = vector.shape_cast %164 : vector<2x32xf32> to vector<1x2x32xf32>
    tpu.vector_store %arg8[%c1_77, %c0_78, %c0_79], %167 {strides = array<i32>} : memref<2x2x32xf32, #tpu.memory_space<vmem>>, vector<1x2x32xf32>,
    %c0_80 = arith.constant 0 : index
    %c0_81 = arith.constant 0 : index
    %168 = vector.load %arg9[%c0_80, %c0_81] : memref<2x32xf32, #tpu.memory_space<vmem>>, vector<2x32xf32>
    tpu.vector_store %arg9[%c0_80, %c0_81], %164 {strides = array<i32>} : memref<2x32xf32, #tpu.memory_space<vmem>>, vector<2x32xf32>,
    return
  }
  func.func @transform_0(%arg0: i32, %arg1: i32) -> (i32, i32, i32) {
    %c0_i32 = arith.constant 0 : i32
    %c0_i32_0 = arith.constant 0 : i32
    return %arg1, %arg0, %c0_i32 : i32, i32, i32
  }
  func.func @transform_1(%arg0: i32, %arg1: i32) -> (i32, i32, i32) {
    %c0_i32 = arith.constant 0 : i32
    %c0_i32_0 = arith.constant 0 : i32
    return %arg1, %arg0, %c0_i32 : i32, i32, i32
  }
  func.func @transform_2(%arg0: i32, %arg1: i32) -> (i32, i32) {
    %c0_i32 = arith.constant 0 : i32
    %c0_i32_0 = arith.constant 0 : i32
    %c0_i32_1 = arith.constant 0 : i32
    return %c0_i32, %c0_i32_0 : i32, i32
  }
  func.func @transform_3(%arg0: i32, %arg1: i32) -> (i32, i32) {
    %c0_i32 = arith.constant 0 : i32
    %c0_i32_0 = arith.constant 0 : i32
    %c0_i32_1 = arith.constant 0 : i32
    return %c0_i32, %c0_i32_0 : i32, i32
  }
  func.func @transform_4(%arg0: i32, %arg1: i32) -> (i32, i32, i32) {
    %c0_i32 = arith.constant 0 : i32
    %c0_i32_0 = arith.constant 0 : i32
    %c0_i32_1 = arith.constant 0 : i32
    %c0_i32_2 = arith.constant 0 : i32
    return %c0_i32, %c0_i32_0, %c0_i32_1 : i32, i32, i32
  }
  func.func @transform_5(%arg0: i32, %arg1: i32) -> (i32, i32, i32) {
    %c0_i32 = arith.constant 0 : i32
    %c0_i32_0 = arith.constant 0 : i32
    %c0_i32_1 = arith.constant 0 : i32
    %c0_i32_2 = arith.constant 0 : i32
    return %c0_i32, %c0_i32_0, %c0_i32_1 : i32, i32, i32
  }
  func.func @transform_6(%arg0: i32, %arg1: i32) -> (i32, i32, i32) {
    %c0_i32 = arith.constant 0 : i32
    %c0_i32_0 = arith.constant 0 : i32
    return %arg1, %arg0, %c0_i32 : i32, i32, i32
  }
}

module attributes {stable_mosaic.version = 11 : i64} {
  func.func @kernel(%arg0: i32, %arg1: i32, %arg2: memref<2x2x32xf32, #tpu.memory_space<vmem>>, %arg3: memref<2x2x32xf32, #tpu.memory_space<vmem>>, %arg4: memref<32x32xf32, #tpu.memory_space<vmem>>, %arg5: memref<32x32xf32, #tpu.memory_space<vmem>>, %arg6: memref<4x32x32xf32, #tpu.memory_space<vmem>>, %arg7: memref<4x32x32xf32, #tpu.memory_space<vmem>>, %arg8: memref<2x2x32xf32, #tpu.memory_space<vmem>>, %arg9: memref<2x32xf32, #tpu.memory_space<vmem>>) attributes {dimension_semantics = [#tpu.dimension_semantics<parallel>, #tpu.dimension_semantics<arbitrary>], iteration_bounds = array<i64: 1, 4>, scalar_prefetch = 0 : i64, scratch_operands = 1 : i64, tpu.core_type = #tpu.core_type<tc>, window_params = [{transform_indices = @transform_0, window_bounds = array<i64: 2, 2, 32>}, {transform_indices = @transform_1, window_bounds = array<i64: 2, 2, 32>}, {pipeline_mode = #tpu.pipeline_mode<synchronous>, transform_indices = @transform_2, window_bounds = array<i64: 32, 32>}, {pipeline_mode = #tpu.pipeline_mode<synchronous>, transform_indices = @transform_3, window_bounds = array<i64: 32, 32>}, {pipeline_mode = #tpu.pipeline_mode<synchronous>, transform_indices = @transform_4, window_bounds = array<i64: 4, 32, 32>}, {pipeline_mode = #tpu.pipeline_mode<synchronous>, transform_indices = @transform_5, window_bounds = array<i64: 4, 32, 32>}, {transform_indices = @transform_6, window_bounds = array<i64: 2, 2, 32>}]} {
    %c0_i32 = arith.constant 0 : i32
    %0 = arith.cmpi eq, %arg1, %c0_i32 : i32
    %1 = arith.extui %0 : i1 to i32
    %c0_i32_0 = arith.constant 0 : i32
    %2 = arith.cmpi ne, %1, %c0_i32_0 : i32
    scf.if %2 {
      %cst_82 = arith.constant 0.000000e+00 : f32
      %169 = vector.broadcast %cst_82 : f32 to vector<2x32xf32>
      %c0_83 = arith.constant 0 : index
      %c0_84 = arith.constant 0 : index
      %170 = vector.load %arg9[%c0_83, %c0_84] : memref<2x32xf32, #tpu.memory_space<vmem>>, vector<2x32xf32>
      tpu.vector_store %arg9[%c0_83, %c0_84], %169 {strides = array<i32>} : memref<2x32xf32, #tpu.memory_space<vmem>>, vector<2x32xf32>,
    } else {
    }
    %c0 = arith.constant 0 : index
    %c0_1 = arith.constant 0 : index
    %3 = vector.load %arg4[%c0, %c0_1] : memref<32x32xf32, #tpu.memory_space<vmem>>, vector<32x32xf32>
    %c0_2 = arith.constant 0 : index
    %c0_3 = arith.constant 0 : index
    %4 = vector.load %arg5[%c0_2, %c0_3] : memref<32x32xf32, #tpu.memory_space<vmem>>, vector<32x32xf32>
    %c0_4 = arith.constant 0 : index
    %c0_5 = arith.constant 0 : index
    %c0_6 = arith.constant 0 : index
    %5 = vector.load %arg6[%c0_4, %c0_5, %c0_6] : memref<4x32x32xf32, #tpu.memory_space<vmem>>, vector<1x32x32xf32>
    %6 = vector.shape_cast %5 : vector<1x32x32xf32> to vector<32x32xf32>
    %c1 = arith.constant 1 : index
    %c0_7 = arith.constant 0 : index
    %c0_8 = arith.constant 0 : index
    %7 = vector.load %arg6[%c1, %c0_7, %c0_8] : memref<4x32x32xf32, #tpu.memory_space<vmem>>, vector<1x32x32xf32>
    %8 = vector.shape_cast %7 : vector<1x32x32xf32> to vector<32x32xf32>
    %c2 = arith.constant 2 : index
    %c0_9 = arith.constant 0 : index
    %c0_10 = arith.constant 0 : index
    %9 = vector.load %arg6[%c2, %c0_9, %c0_10] : memref<4x32x32xf32, #tpu.memory_space<vmem>>, vector<1x32x32xf32>
    %10 = vector.shape_cast %9 : vector<1x32x32xf32> to vector<32x32xf32>
    %c3 = arith.constant 3 : index
    %c0_11 = arith.constant 0 : index
    %c0_12 = arith.constant 0 : index
    %11 = vector.load %arg6[%c3, %c0_11, %c0_12] : memref<4x32x32xf32, #tpu.memory_space<vmem>>, vector<1x32x32xf32>
    %12 = vector.shape_cast %11 : vector<1x32x32xf32> to vector<32x32xf32>
    %c0_13 = arith.constant 0 : index
    %c0_14 = arith.constant 0 : index
    %c0_15 = arith.constant 0 : index
    %13 = vector.load %arg7[%c0_13, %c0_14, %c0_15] : memref<4x32x32xf32, #tpu.memory_space<vmem>>, vector<1x32x32xf32>
    %14 = vector.shape_cast %13 : vector<1x32x32xf32> to vector<32x32xf32>
    %c1_16 = arith.constant 1 : index
    %c0_17 = arith.constant 0 : index
    %c0_18 = arith.constant 0 : index
    %15 = vector.load %arg7[%c1_16, %c0_17, %c0_18] : memref<4x32x32xf32, #tpu.memory_space<vmem>>, vector<1x32x32xf32>
    %16 = vector.shape_cast %15 : vector<1x32x32xf32> to vector<32x32xf32>
    %c2_19 = arith.constant 2 : index
    %c0_20 = arith.constant 0 : index
    %c0_21 = arith.constant 0 : index
    %17 = vector.load %arg7[%c2_19, %c0_20, %c0_21] : memref<4x32x32xf32, #tpu.memory_space<vmem>>, vector<1x32x32xf32>
    %18 = vector.shape_cast %17 : vector<1x32x32xf32> to vector<32x32xf32>
    %c3_22 = arith.constant 3 : index
    %c0_23 = arith.constant 0 : index
    %c0_24 = arith.constant 0 : index
    %19 = vector.load %arg7[%c3_22, %c0_23, %c0_24] : memref<4x32x32xf32, #tpu.memory_space<vmem>>, vector<1x32x32xf32>
    %20 = vector.shape_cast %19 : vector<1x32x32xf32> to vector<32x32xf32>
    %c0_25 = arith.constant 0 : index
    %c0_26 = arith.constant 0 : index
    %21 = vector.load %arg9[%c0_25, %c0_26] : memref<2x32xf32, #tpu.memory_space<vmem>>, vector<2x32xf32>
    %c0_27 = arith.constant 0 : index
    %c0_28 = arith.constant 0 : index
    %c0_29 = arith.constant 0 : index
    %22 = vector.load %arg2[%c0_27, %c0_28, %c0_29] : memref<2x2x32xf32, #tpu.memory_space<vmem>>, vector<1x2x32xf32>
    %23 = vector.shape_cast %22 : vector<1x2x32xf32> to vector<2x32xf32>
    %cst = arith.constant dense<0.000000e+00> : vector<2x32xf32>
    %24 = tpu.matmul %21, %3, %cst {dimension_numbers = #tpu.dot_dimension_numbers<[1], [0], [0], [1], [0, 0, 1, 1], [], []>} : vector<2x32xf32>, vector<32x32xf32>, vector<2x32xf32> -> vector<2x32xf32>
    %25 = arith.addf %23, %24 : vector<2x32xf32>
    %c0_30 = arith.constant 0 : index
    %c0_31 = arith.constant 0 : index
    %c0_32 = arith.constant 0 : index
    %26 = vector.load %arg3[%c0_30, %c0_31, %c0_32] : memref<2x2x32xf32, #tpu.memory_space<vmem>>, vector<1x2x32xf32>
    %27 = vector.shape_cast %26 : vector<1x2x32xf32> to vector<2x32xf32>
    %cst_33 = arith.constant dense<0.000000e+00> : vector<2x32xf32>
    %28 = tpu.matmul %21, %4, %cst_33 {dimension_numbers = #tpu.dot_dimension_numbers<[1], [0], [0], [1], [0, 0, 1, 1], [], []>} : vector<2x32xf32>, vector<32x32xf32>, vector<2x32xf32> -> vector<2x32xf32>
    %29 = arith.addf %27, %28 : vector<2x32xf32>
    %30 = arith.negf %25 : vector<2x32xf32>
    %31 = math.exp %30 : vector<2x32xf32>
    %cst_34 = arith.constant 1.000000e+00 : f32
    %32 = vector.broadcast %cst_34 : f32 to vector<2x32xf32>
    %33 = arith.addf %32, %31 : vector<2x32xf32>
    %34 = arith.divf %32, %33 : vector<2x32xf32>
    %35 = math.tanh %29 : vector<2x32xf32>
    %36 = arith.subf %35, %21 : vector<2x32xf32>
    %37 = arith.mulf %34, %36 : vector<2x32xf32>
    %38 = arith.addf %21, %37 : vector<2x32xf32>
    %cst_35 = arith.constant dense<0.000000e+00> : vector<2x32xf32>
    %39 = tpu.matmul %38, %6, %cst_35 {dimension_numbers = #tpu.dot_dimension_numbers<[1], [0], [0], [1], [0, 0, 1, 1], [], []>} : vector<2x32xf32>, vector<32x32xf32>, vector<2x32xf32> -> vector<2x32xf32>
    %40 = arith.negf %39 : vector<2x32xf32>
    %41 = math.exp %40 : vector<2x32xf32>
    %cst_36 = arith.constant 1.000000e+00 : f32
    %42 = vector.broadcast %cst_36 : f32 to vector<2x32xf32>
    %43 = arith.addf %42, %41 : vector<2x32xf32>
    %44 = arith.divf %42, %43 : vector<2x32xf32>
    %cst_37 = arith.constant dense<0.000000e+00> : vector<2x32xf32>
    %45 = tpu.matmul %38, %14, %cst_37 {dimension_numbers = #tpu.dot_dimension_numbers<[1], [0], [0], [1], [0, 0, 1, 1], [], []>} : vector<2x32xf32>, vector<32x32xf32>, vector<2x32xf32> -> vector<2x32xf32>
    %cst_38 = arith.constant 0.000000e+00 : f32
    %46 = vector.broadcast %cst_38 : f32 to vector<2x32xf32>
    %47 = arith.maximumf %45, %46 : vector<2x32xf32>
    %48 = arith.subf %47, %38 : vector<2x32xf32>
    %49 = arith.mulf %44, %48 : vector<2x32xf32>
    %50 = arith.addf %38, %49 : vector<2x32xf32>
    %cst_39 = arith.constant dense<0.000000e+00> : vector<2x32xf32>
    %51 = tpu.matmul %50, %8, %cst_39 {dimension_numbers = #tpu.dot_dimension_numbers<[1], [0], [0], [1], [0, 0, 1, 1], [], []>} : vector<2x32xf32>, vector<32x32xf32>, vector<2x32xf32> -> vector<2x32xf32>
    %52 = arith.negf %51 : vector<2x32xf32>
    %53 = math.exp %52 : vector<2x32xf32>
    %cst_40 = arith.constant 1.000000e+00 : f32
    %54 = vector.broadcast %cst_40 : f32 to vector<2x32xf32>
    %55 = arith.addf %54, %53 : vector<2x32xf32>
    %56 = arith.divf %54, %55 : vector<2x32xf32>
    %cst_41 = arith.constant dense<0.000000e+00> : vector<2x32xf32>
    %57 = tpu.matmul %50, %16, %cst_41 {dimension_numbers = #tpu.dot_dimension_numbers<[1], [0], [0], [1], [0, 0, 1, 1], [], []>} : vector<2x32xf32>, vector<32x32xf32>, vector<2x32xf32> -> vector<2x32xf32>
    %58 = math.tanh %57 : vector<2x32xf32>
    %59 = arith.subf %58, %50 : vector<2x32xf32>
    %60 = arith.mulf %56, %59 : vector<2x32xf32>
    %61 = arith.addf %50, %60 : vector<2x32xf32>
    %cst_42 = arith.constant dense<0.000000e+00> : vector<2x32xf32>
    %62 = tpu.matmul %50, %10, %cst_42 {dimension_numbers = #tpu.dot_dimension_numbers<[1], [0], [0], [1], [0, 0, 1, 1], [], []>} : vector<2x32xf32>, vector<32x32xf32>, vector<2x32xf32> -> vector<2x32xf32>
    %63 = arith.negf %62 : vector<2x32xf32>
    %64 = math.exp %63 : vector<2x32xf32>
    %cst_43 = arith.constant 1.000000e+00 : f32
    %65 = vector.broadcast %cst_43 : f32 to vector<2x32xf32>
    %66 = arith.addf %65, %64 : vector<2x32xf32>
    %67 = arith.divf %65, %66 : vector<2x32xf32>
    %cst_44 = arith.constant dense<0.000000e+00> : vector<2x32xf32>
    %68 = tpu.matmul %50, %18, %cst_44 {dimension_numbers = #tpu.dot_dimension_numbers<[1], [0], [0], [1], [0, 0, 1, 1], [], []>} : vector<2x32xf32>, vector<32x32xf32>, vector<2x32xf32> -> vector<2x32xf32>
    %69 = arith.negf %68 : vector<2x32xf32>
    %70 = math.exp %69 : vector<2x32xf32>
    %cst_45 = arith.constant 1.000000e+00 : f32
    %71 = vector.broadcast %cst_45 : f32 to vector<2x32xf32>
    %72 = arith.addf %71, %70 : vector<2x32xf32>
    %73 = arith.divf %71, %72 : vector<2x32xf32>
    %74 = arith.subf %73, %50 : vector<2x32xf32>
    %75 = arith.mulf %67, %74 : vector<2x32xf32>
    %76 = arith.addf %50, %75 : vector<2x32xf32>
    %cst_46 = arith.constant dense<0.000000e+00> : vector<2x32xf32>
    %77 = tpu.matmul %61, %12, %cst_46 {dimension_numbers = #tpu.dot_dimension_numbers<[1], [0], [0], [1], [0, 0, 1, 1], [], []>} : vector<2x32xf32>, vector<32x32xf32>, vector<2x32xf32> -> vector<2x32xf32>
    %78 = arith.negf %77 : vector<2x32xf32>
    %79 = math.exp %78 : vector<2x32xf32>
    %cst_47 = arith.constant 1.000000e+00 : f32
    %80 = vector.broadcast %cst_47 : f32 to vector<2x32xf32>
    %81 = arith.addf %80, %79 : vector<2x32xf32>
    %82 = arith.divf %80, %81 : vector<2x32xf32>
    %cst_48 = arith.constant dense<0.000000e+00> : vector<2x32xf32>
    %83 = tpu.matmul %61, %20, %cst_48 {dimension_numbers = #tpu.dot_dimension_numbers<[1], [0], [0], [1], [0, 0, 1, 1], [], []>} : vector<2x32xf32>, vector<32x32xf32>, vector<2x32xf32> -> vector<2x32xf32>
    %84 = arith.subf %83, %61 : vector<2x32xf32>
    %85 = arith.mulf %82, %84 : vector<2x32xf32>
    %86 = arith.addf %61, %85 : vector<2x32xf32>
    %87 = arith.addf %50, %61 : vector<2x32xf32>
    %88 = arith.addf %87, %76 : vector<2x32xf32>
    %89 = arith.addf %88, %86 : vector<2x32xf32>
    %cst_49 = arith.constant 2.500000e-01 : f32
    %90 = vector.broadcast %cst_49 : f32 to vector<2x32xf32>
    %91 = arith.mulf %89, %90 : vector<2x32xf32>
    %c0_50 = arith.constant 0 : index
    %c0_51 = arith.constant 0 : index
    %c0_52 = arith.constant 0 : index
    %92 = vector.load %arg8[%c0_50, %c0_51, %c0_52] : memref<2x2x32xf32, #tpu.memory_space<vmem>>, vector<1x2x32xf32>
    %93 = vector.shape_cast %92 : vector<1x2x32xf32> to vector<2x32xf32>
    %94 = vector.shape_cast %91 : vector<2x32xf32> to vector<1x2x32xf32>
    tpu.vector_store %arg8[%c0_50, %c0_51, %c0_52], %94 {strides = array<i32>} : memref<2x2x32xf32, #tpu.memory_space<vmem>>, vector<1x2x32xf32>,
    %c1_53 = arith.constant 1 : index
    %c0_54 = arith.constant 0 : index
    %c0_55 = arith.constant 0 : index
    %95 = vector.load %arg2[%c1_53, %c0_54, %c0_55] : memref<2x2x32xf32, #tpu.memory_space<vmem>>, vector<1x2x32xf32>
    %96 = vector.shape_cast %95 : vector<1x2x32xf32> to vector<2x32xf32>
    %cst_56 = arith.constant dense<0.000000e+00> : vector<2x32xf32>
    %97 = tpu.matmul %91, %3, %cst_56 {dimension_numbers = #tpu.dot_dimension_numbers<[1], [0], [0], [1], [0, 0, 1, 1], [], []>} : vector<2x32xf32>, vector<32x32xf32>, vector<2x32xf32> -> vector<2x32xf32>
    %98 = arith.addf %96, %97 : vector<2x32xf32>
    %c1_57 = arith.constant 1 : index
    %c0_58 = arith.constant 0 : index
    %c0_59 = arith.constant 0 : index
    %99 = vector.load %arg3[%c1_57, %c0_58, %c0_59] : memref<2x2x32xf32, #tpu.memory_space<vmem>>, vector<1x2x32xf32>
    %100 = vector.shape_cast %99 : vector<1x2x32xf32> to vector<2x32xf32>
    %cst_60 = arith.constant dense<0.000000e+00> : vector<2x32xf32>
    %101 = tpu.matmul %91, %4, %cst_60 {dimension_numbers = #tpu.dot_dimension_numbers<[1], [0], [0], [1], [0, 0, 1, 1], [], []>} : vector<2x32xf32>, vector<32x32xf32>, vector<2x32xf32> -> vector<2x32xf32>
    %102 = arith.addf %100, %101 : vector<2x32xf32>
    %103 = arith.negf %98 : vector<2x32xf32>
    %104 = math.exp %103 : vector<2x32xf32>
    %cst_61 = arith.constant 1.000000e+00 : f32
    %105 = vector.broadcast %cst_61 : f32 to vector<2x32xf32>
    %106 = arith.addf %105, %104 : vector<2x32xf32>
    %107 = arith.divf %105, %106 : vector<2x32xf32>
    %108 = math.tanh %102 : vector<2x32xf32>
    %109 = arith.subf %108, %91 : vector<2x32xf32>
    %110 = arith.mulf %107, %109 : vector<2x32xf32>
    %111 = arith.addf %91, %110 : vector<2x32xf32>
    %cst_62 = arith.constant dense<0.000000e+00> : vector<2x32xf32>
    %112 = tpu.matmul %111, %6, %cst_62 {dimension_numbers = #tpu.dot_dimension_numbers<[1], [0], [0], [1], [0, 0, 1, 1], [], []>} : vector<2x32xf32>, vector<32x32xf32>, vector<2x32xf32> -> vector<2x32xf32>
    %113 = arith.negf %112 : vector<2x32xf32>
    %114 = math.exp %113 : vector<2x32xf32>
    %cst_63 = arith.constant 1.000000e+00 : f32
    %115 = vector.broadcast %cst_63 : f32 to vector<2x32xf32>
    %116 = arith.addf %115, %114 : vector<2x32xf32>
    %117 = arith.divf %115, %116 : vector<2x32xf32>
    %cst_64 = arith.constant dense<0.000000e+00> : vector<2x32xf32>
    %118 = tpu.matmul %111, %14, %cst_64 {dimension_numbers = #tpu.dot_dimension_numbers<[1], [0], [0], [1], [0, 0, 1, 1], [], []>} : vector<2x32xf32>, vector<32x32xf32>, vector<2x32xf32> -> vector<2x32xf32>
    %cst_65 = arith.constant 0.000000e+00 : f32
    %119 = vector.broadcast %cst_65 : f32 to vector<2x32xf32>
    %120 = arith.maximumf %118, %119 : vector<2x32xf32>
    %121 = arith.subf %120, %111 : vector<2x32xf32>
    %122 = arith.mulf %117, %121 : vector<2x32xf32>
    %123 = arith.addf %111, %122 : vector<2x32xf32>
    %cst_66 = arith.constant dense<0.000000e+00> : vector<2x32xf32>
    %124 = tpu.matmul %123, %8, %cst_66 {dimension_numbers = #tpu.dot_dimension_numbers<[1], [0], [0], [1], [0, 0, 1, 1], [], []>} : vector<2x32xf32>, vector<32x32xf32>, vector<2x32xf32> -> vector<2x32xf32>
    %125 = arith.negf %124 : vector<2x32xf32>
    %126 = math.exp %125 : vector<2x32xf32>
    %cst_67 = arith.constant 1.000000e+00 : f32
    %127 = vector.broadcast %cst_67 : f32 to vector<2x32xf32>
    %128 = arith.addf %127, %126 : vector<2x32xf32>
    %129 = arith.divf %127, %128 : vector<2x32xf32>
    %cst_68 = arith.constant dense<0.000000e+00> : vector<2x32xf32>
    %130 = tpu.matmul %123, %16, %cst_68 {dimension_numbers = #tpu.dot_dimension_numbers<[1], [0], [0], [1], [0, 0, 1, 1], [], []>} : vector<2x32xf32>, vector<32x32xf32>, vector<2x32xf32> -> vector<2x32xf32>
    %131 = math.tanh %130 : vector<2x32xf32>
    %132 = arith.subf %131, %123 : vector<2x32xf32>
    %133 = arith.mulf %129, %132 : vector<2x32xf32>
    %134 = arith.addf %123, %133 : vector<2x32xf32>
    %cst_69 = arith.constant dense<0.000000e+00> : vector<2x32xf32>
    %135 = tpu.matmul %123, %10, %cst_69 {dimension_numbers = #tpu.dot_dimension_numbers<[1], [0], [0], [1], [0, 0, 1, 1], [], []>} : vector<2x32xf32>, vector<32x32xf32>, vector<2x32xf32> -> vector<2x32xf32>
    %136 = arith.negf %135 : vector<2x32xf32>
    %137 = math.exp %136 : vector<2x32xf32>
    %cst_70 = arith.constant 1.000000e+00 : f32
    %138 = vector.broadcast %cst_70 : f32 to vector<2x32xf32>
    %139 = arith.addf %138, %137 : vector<2x32xf32>
    %140 = arith.divf %138, %139 : vector<2x32xf32>
    %cst_71 = arith.constant dense<0.000000e+00> : vector<2x32xf32>
    %141 = tpu.matmul %123, %18, %cst_71 {dimension_numbers = #tpu.dot_dimension_numbers<[1], [0], [0], [1], [0, 0, 1, 1], [], []>} : vector<2x32xf32>, vector<32x32xf32>, vector<2x32xf32> -> vector<2x32xf32>
    %142 = arith.negf %141 : vector<2x32xf32>
    %143 = math.exp %142 : vector<2x32xf32>
    %cst_72 = arith.constant 1.000000e+00 : f32
    %144 = vector.broadcast %cst_72 : f32 to vector<2x32xf32>
    %145 = arith.addf %144, %143 : vector<2x32xf32>
    %146 = arith.divf %144, %145 : vector<2x32xf32>
    %147 = arith.subf %146, %123 : vector<2x32xf32>
    %148 = arith.mulf %140, %147 : vector<2x32xf32>
    %149 = arith.addf %123, %148 : vector<2x32xf32>
    %cst_73 = arith.constant dense<0.000000e+00> : vector<2x32xf32>
    %150 = tpu.matmul %134, %12, %cst_73 {dimension_numbers = #tpu.dot_dimension_numbers<[1], [0], [0], [1], [0, 0, 1, 1], [], []>} : vector<2x32xf32>, vector<32x32xf32>, vector<2x32xf32> -> vector<2x32xf32>
    %151 = arith.negf %150 : vector<2x32xf32>
    %152 = math.exp %151 : vector<2x32xf32>
    %cst_74 = arith.constant 1.000000e+00 : f32
    %153 = vector.broadcast %cst_74 : f32 to vector<2x32xf32>
    %154 = arith.addf %153, %152 : vector<2x32xf32>
    %155 = arith.divf %153, %154 : vector<2x32xf32>
    %cst_75 = arith.constant dense<0.000000e+00> : vector<2x32xf32>
    %156 = tpu.matmul %134, %20, %cst_75 {dimension_numbers = #tpu.dot_dimension_numbers<[1], [0], [0], [1], [0, 0, 1, 1], [], []>} : vector<2x32xf32>, vector<32x32xf32>, vector<2x32xf32> -> vector<2x32xf32>
    %157 = arith.subf %156, %134 : vector<2x32xf32>
    %158 = arith.mulf %155, %157 : vector<2x32xf32>
    %159 = arith.addf %134, %158 : vector<2x32xf32>
    %160 = arith.addf %123, %134 : vector<2x32xf32>
    %161 = arith.addf %160, %149 : vector<2x32xf32>
    %162 = arith.addf %161, %159 : vector<2x32xf32>
    %cst_76 = arith.constant 2.500000e-01 : f32
    %163 = vector.broadcast %cst_76 : f32 to vector<2x32xf32>
    %164 = arith.mulf %162, %163 : vector<2x32xf32>
    %c1_77 = arith.constant 1 : index
    %c0_78 = arith.constant 0 : index
    %c0_79 = arith.constant 0 : index
    %165 = vector.load %arg8[%c1_77, %c0_78, %c0_79] : memref<2x2x32xf32, #tpu.memory_space<vmem>>, vector<1x2x32xf32>
    %166 = vector.shape_cast %165 : vector<1x2x32xf32> to vector<2x32xf32>
    %167 = vector.shape_cast %164 : vector<2x32xf32> to vector<1x2x32xf32>
    tpu.vector_store %arg8[%c1_77, %c0_78, %c0_79], %167 {strides = array<i32>} : memref<2x2x32xf32, #tpu.memory_space<vmem>>, vector<1x2x32xf32>,
    %c0_80 = arith.constant 0 : index
    %c0_81 = arith.constant 0 : index
    %168 = vector.load %arg9[%c0_80, %c0_81] : memref<2x32xf32, #tpu.memory_space<vmem>>, vector<2x32xf32>
    tpu.vector_store %arg9[%c0_80, %c0_81], %164 {strides = array<i32>} : memref<2x32xf32, #tpu.memory_space<vmem>>, vector<2x32xf32>,
    return
  }
  func.func @transform_0(%arg0: i32, %arg1: i32) -> (i32, i32, i32) {
    %c0_i32 = arith.constant 0 : i32
    %c0_i32_0 = arith.constant 0 : i32
    return %arg1, %arg0, %c0_i32 : i32, i32, i32
  }
  func.func @transform_1(%arg0: i32, %arg1: i32) -> (i32, i32, i32) {
    %c0_i32 = arith.constant 0 : i32
    %c0_i32_0 = arith.constant 0 : i32
    return %arg1, %arg0, %c0_i32 : i32, i32, i32
  }
  func.func @transform_2(%arg0: i32, %arg1: i32) -> (i32, i32) {
    %c0_i32 = arith.constant 0 : i32
    %c0_i32_0 = arith.constant 0 : i32
    %c0_i32_1 = arith.constant 0 : i32
    return %c0_i32, %c0_i32_0 : i32, i32
  }
  func.func @transform_3(%arg0: i32, %arg1: i32) -> (i32, i32) {
    %c0_i32 = arith.constant 0 : i32
    %c0_i32_0 = arith.constant 0 : i32
    %c0_i32_1 = arith.constant 0 : i32
    return %c0_i32, %c0_i32_0 : i32, i32
  }
  func.func @transform_4(%arg0: i32, %arg1: i32) -> (i32, i32, i32) {
    %c0_i32 = arith.constant 0 : i32
    %c0_i32_0 = arith.constant 0 : i32
    %c0_i32_1 = arith.constant 0 : i32
    %c0_i32_2 = arith.constant 0 : i32
    return %c0_i32, %c0_i32_0, %c0_i32_1 : i32, i32, i32
  }
  func.func @transform_5(%arg0: i32, %arg1: i32) -> (i32, i32, i32) {
    %c0_i32 = arith.constant 0 : i32
    %c0_i32_0 = arith.constant 0 : i32
    %c0_i32_1 = arith.constant 0 : i32
    %c0_i32_2 = arith.constant 0 : i32
    return %c0_i32, %c0_i32_0, %c0_i32_1 : i32, i32, i32
  }
  func.func @transform_6(%arg0: i32, %arg1: i32) -> (i32, i32, i32) {
    %c0_i32 = arith.constant 0 : i32
    %c0_i32_0 = arith.constant 0 : i32
    return %arg1, %arg0, %c0_i32 : i32, i32, i32
  }
}

</mosaic_0001>

<llo_original>
// kernel: tpu_custom_call.1
$region0: #{tpu_custom_call.1}
  #allocation0 [shape = 'u32[]', space=smem, size = 0x4, offset = 0x4, fixed_abs, tag = 'smem constant byte address 0x4 - core index']
  #allocation1 [shape = 'u32[72,128]{1,0:T(1,128)}', space=vmem, size = 0x9000, scoped, tag = 'internal scratch']
  #allocation2 [shape = 'f32[2,32]{1,0:T(2,128)}', space=vmem, size = 0x400, scoped, tag = 'scratch operand']
  %s0 = inlined_call_operand.hbm [shape: f32[8,2,32], index: 0, kind: input, shape index: {}]
  %s1 = inlined_call_operand.hbm [shape: f32[8,2,32], index: 1, kind: input, shape index: {}]
  %s2 = inlined_call_operand.hbm [shape: f32[32,32], index: 2, kind: input, shape index: {}]
  %s3 = inlined_call_operand.hbm [shape: f32[32,32], index: 3, kind: input, shape index: {}]
  %s4 = inlined_call_operand.hbm [shape: f32[4,32,32], index: 4, kind: input, shape index: {}]
  %s5 = inlined_call_operand.hbm [shape: f32[4,32,32], index: 5, kind: input, shape index: {}]
  %s6 = inlined_call_operand.hbm [shape: f32[8,2,32], index: 6, kind: output, shape index: {}]
  %s7 = sld [smem:[#allocation0]]
  $region85: #{tpu_custom_call.1} parent=0
    _
  %s9 = ssub.s32 1, %s7
  %s10 = scalar_select 0, %s9, %s7
  $region1: #{tpu_custom_call.1} parent=0
    #allocation3 [shape = 'u8[4096]{0}', space=vmem, size = 0x1000, scoped, tag = 'input window, operand 0']
    #allocation4 [shape = 's32[2]{0}', space=sflag, size = 0x8, scoped, tag = 'scoped memory for tpu_custom_call.1']
    #allocation5 [shape = 's32[2]{0}', space=sflag, size = 0x8, scoped, tag = 'scoped memory for tpu_custom_call.1']
    #allocation6 [shape = 'u8[4096]{0}', space=vmem, size = 0x1000, scoped, tag = 'input window, operand 1']
    #allocation7 [shape = 's32[2]{0}', space=sflag, size = 0x8, scoped, tag = 'scoped memory for tpu_custom_call.1']
    #allocation8 [shape = 'u8[16384]{0}', space=vmem, size = 0x4000, scoped, tag = 'input window, operand 2, single buffered']
    #allocation9 [shape = 'u8[16384]{0}', space=vmem, size = 0x4000, scoped, tag = 'input window, operand 3, single buffered']
    #allocation10 [shape = 's32[1]{0}', space=sflag, size = 0x4, scoped, tag = 'scoped memory for tpu_custom_call.1']
    #allocation11 [shape = 'u8[65536]{0}', space=vmem, size = 0x10000, scoped, tag = 'input window, operand 4, single buffered']
    #allocation12 [shape = 'u8[65536]{0}', space=vmem, size = 0x10000, scoped, tag = 'input window, operand 5, single buffered']
    #allocation13 [shape = 's32[1]{0}', space=sflag, size = 0x4, scoped, tag = 'scoped memory for tpu_custom_call.1']
    #allocation14 [shape = 'u8[4096]{0}', space=vmem, size = 0x1000, scoped, tag = 'output window, operand 0']
    %11 = vsyncpa [#allocation4], 0
    %s12 = scalar_lea.sflag [#allocation4], 1
    %13 = vsyncpa %s12, 0
    %14 = vsyncpa [#allocation7], 0
    %s15 = scalar_lea.sflag [#allocation7], 1
    %16 = vsyncpa %s15, 0
    %17 = vsyncpa [#allocation10], 0
    %18 = vsyncpa [#allocation13], 0
    %19 = vsyncpa [#allocation5], 0
    %s20 = scalar_lea.sflag [#allocation5], 1
    %21 = vsyncpa %s20, 0
    loop: start=0, step=1, limit=6
    $region2: #{tpu_custom_call.1} parent=1 // loop_pre_header
      _
    $region3: #{tpu_custom_call.1} parent=1 // loop_header
      %s23 = sphi 0, %s27
      %p24 = scmp.ge.s32.totalorder %s23, 6
      %s30 = sphi 0, %s42
      %s31 = sphi 0, %s38
      %s32 = sphi 0, %s30
      %s33 = sphi 0, %s31
      %s34 = sphi 0, %s32
      %s35 = sphi 0, %s33
      %s47 = sphi 0, %s49
      %s50 = sphi 0, %s47
      %s51 = sphi 0, %s50
      %s67 = sphi 0, %s51
      %s75 = sphi 0, %s77
      %s78 = sphi 0, %s75
      %s79 = sphi 0, %s78
      %s95 = sphi 0, %s79
      %s99 = sphi 0, %s99
      %s101 = sphi 0, %s99
      %s102 = sphi 0, %s101
      %s116 = sphi 0, %s102
      %s120 = sphi 0, %s120
      %s122 = sphi 0, %s120
      %s123 = sphi 0, %s122
      %s137 = sphi 0, %s123
      %s141 = sphi 0, %s141
      %s143 = sphi 0, %s141
      %s144 = sphi 0, %s143
      %s158 = sphi 0, %s144
      %s162 = sphi 0, %s162
      %s164 = sphi 0, %s162
      %s165 = sphi 0, %s164
      %s179 = sphi 0, %s165
      %s187 = sphi 0, %s189
      %s190 = sphi 0, %s187
      %s191 = sphi 0, %s190
      %s207 = sphi 0, %s191
    $region4: #{tpu_custom_call.1} parent=1 // loop_header_branch
      %26 = sbr.rel (%p24) target = $region8
    $region5: #{tpu_custom_call.1} parent=1 // loop_body
      %s28 = ssub.s32 %s23, 1
      %s29 = ssub.s32 %s23, 2
      %s36 = sadd.s32 1, %s31
      %p37 = scmp.ge.s32.totalorder %s36, 4
      %s38 = scalar_select %p37, 0, %s36
      %s39 = sadd.s32 1, %s30
      %s40 = scalar_select %p37, %s39, %s30
      %p41 = scmp.ge.s32.totalorder %s40, 1
      %s42 = scalar_select %p41, 0, %s40
      %s43 = ssub.s32 %s31, %s38
      %s44 = ssub.s32 %s30, %s42
      %s45 = sor.u32 %s43, %s44
      %p46 = scmp.eq.s32.totalorder %s45, 0
      %s48 = sadd.s32 %s47, 1
      %s49 = scalar_select %p46, %s47, %s48
      %p52 = pneg %p46
      %p53 = scmp.eq.s32.totalorder %s23, 3
      %p54 = por %p52, %p53
      %p55 = scmp.ne.s32.totalorder %s47, %s50
      %p56 = scmp.eq.s32.totalorder %s23, 0
      %p57 = por %p55, %p56
      %p58 = scmp.ne.s32.totalorder %s47, %s50
      %p59 = scmp.eq.s32.totalorder %s28, 3
      %p60 = por %p58, %p59
      %p61 = scmp.ne.s32.totalorder %s50, %s51
      %p62 = scmp.eq.s32.totalorder %s28, 0
      %p63 = por %p61, %p62
      %p64 = scmp.ne.s32.totalorder %s50, %s51
      %p65 = scmp.eq.s32.totalorder %s29, 3
      %p66 = por %p64, %p65
      %p68 = scmp.ne.s32.totalorder %s51, %s67
      %p69 = scmp.eq.s32.totalorder %s29, 0
      %p70 = por %p68, %p69
      %s71 = ssub.s32 %s31, %s38
      %s72 = ssub.s32 %s30, %s42
      %s73 = sor.u32 %s71, %s72
      %p74 = scmp.eq.s32.totalorder %s73, 0
      %s76 = sadd.s32 %s75, 1
      %s77 = scalar_select %p74, %s75, %s76
      %p80 = pneg %p74
      %p81 = scmp.eq.s32.totalorder %s23, 3
      %p82 = por %p80, %p81
      %p83 = scmp.ne.s32.totalorder %s75, %s78
      %p84 = scmp.eq.s32.totalorder %s23, 0
      %p85 = por %p83, %p84
      %p86 = scmp.ne.s32.totalorder %s75, %s78
      %p87 = scmp.eq.s32.totalorder %s28, 3
      %p88 = por %p86, %p87
      %p89 = scmp.ne.s32.totalorder %s78, %s79
      %p90 = scmp.eq.s32.totalorder %s28, 0
      %p91 = por %p89, %p90
      %p92 = scmp.ne.s32.totalorder %s78, %s79
      %p93 = scmp.eq.s32.totalorder %s29, 3
      %p94 = por %p92, %p93
      %p96 = scmp.ne.s32.totalorder %s79, %s95
      %p97 = scmp.eq.s32.totalorder %s29, 0
      %p98 = por %p96, %p97
      %s100 = sadd.s32 %s99, 1
      %p103 = scmp.eq.s32.totalorder %s23, 3
      %p104 = scmp.ne.s32.totalorder %s99, %s101
      %p105 = scmp.eq.s32.totalorder %s23, 0
      %p106 = por %p104, %p105
      %p107 = scmp.ne.s32.totalorder %s99, %s101
      %p108 = scmp.eq.s32.totalorder %s28, 3
      %p109 = por %p107, %p108
      %p110 = scmp.ne.s32.totalorder %s101, %s102
      %p111 = scmp.eq.s32.totalorder %s28, 0
      %p112 = por %p110, %p111
      %p113 = scmp.ne.s32.totalorder %s101, %s102
      %p114 = scmp.eq.s32.totalorder %s29, 3
      %p115 = por %p113, %p114
      %p117 = scmp.ne.s32.totalorder %s102, %s116
      %p118 = scmp.eq.s32.totalorder %s29, 0
      %p119 = por %p117, %p118
      %s121 = sadd.s32 %s120, 1
      %p124 = scmp.eq.s32.totalorder %s23, 3
      %p125 = scmp.ne.s32.totalorder %s120, %s122
      %p126 = scmp.eq.s32.totalorder %s23, 0
      %p127 = por %p125, %p126
      %p128 = scmp.ne.s32.totalorder %s120, %s122
      %p129 = scmp.eq.s32.totalorder %s28, 3
      %p130 = por %p128, %p129
      %p131 = scmp.ne.s32.totalorder %s122, %s123
      %p132 = scmp.eq.s32.totalorder %s28, 0
      %p133 = por %p131, %p132
      %p134 = scmp.ne.s32.totalorder %s122, %s123
      %p135 = scmp.eq.s32.totalorder %s29, 3
      %p136 = por %p134, %p135
      %p138 = scmp.ne.s32.totalorder %s123, %s137
      %p139 = scmp.eq.s32.totalorder %s29, 0
      %p140 = por %p138, %p139
      %s142 = sadd.s32 %s141, 1
      %p145 = scmp.eq.s32.totalorder %s23, 3
      %p146 = scmp.ne.s32.totalorder %s141, %s143
      %p147 = scmp.eq.s32.totalorder %s23, 0
      %p148 = por %p146, %p147
      %p149 = scmp.ne.s32.totalorder %s141, %s143
      %p150 = scmp.eq.s32.totalorder %s28, 3
      %p151 = por %p149, %p150
      %p152 = scmp.ne.s32.totalorder %s143, %s144
      %p153 = scmp.eq.s32.totalorder %s28, 0
      %p154 = por %p152, %p153
      %p155 = scmp.ne.s32.totalorder %s143, %s144
      %p156 = scmp.eq.s32.totalorder %s29, 3
      %p157 = por %p155, %p156
      %p159 = scmp.ne.s32.totalorder %s144, %s158
      %p160 = scmp.eq.s32.totalorder %s29, 0
      %p161 = por %p159, %p160
      %s163 = sadd.s32 %s162, 1
      %p166 = scmp.eq.s32.totalorder %s23, 3
      %p167 = scmp.ne.s32.totalorder %s162, %s164
      %p168 = scmp.eq.s32.totalorder %s23, 0
      %p169 = por %p167, %p168
      %p170 = scmp.ne.s32.totalorder %s162, %s164
      %p171 = scmp.eq.s32.totalorder %s28, 3
      %p172 = por %p170, %p171
      %p173 = scmp.ne.s32.totalorder %s164, %s165
      %p174 = scmp.eq.s32.totalorder %s28, 0
      %p175 = por %p173, %p174
      %p176 = scmp.ne.s32.totalorder %s164, %s165
      %p177 = scmp.eq.s32.totalorder %s29, 3
      %p178 = por %p176, %p177
      %p180 = scmp.ne.s32.totalorder %s165, %s179
      %p181 = scmp.eq.s32.totalorder %s29, 0
      %p182 = por %p180, %p181
      %s183 = ssub.s32 %s31, %s38
      %s184 = ssub.s32 %s30, %s42
      %s185 = sor.u32 %s183, %s184
      %p186 = scmp.eq.s32.totalorder %s185, 0
      %s188 = sadd.s32 %s187, 1
      %s189 = scalar_select %p186, %s187, %s188
      %p192 = pneg %p186
      %p193 = scmp.eq.s32.totalorder %s23, 3
      %p194 = por %p192, %p193
      %p195 = scmp.ne.s32.totalorder %s187, %s190
      %p196 = scmp.eq.s32.totalorder %s23, 0
      %p197 = por %p195, %p196
      %p198 = scmp.ne.s32.totalorder %s187, %s190
      %p199 = scmp.eq.s32.totalorder %s28, 3
      %p200 = por %p198, %p199
      %p201 = scmp.ne.s32.totalorder %s190, %s191
      %p202 = scmp.eq.s32.totalorder %s28, 0
      %p203 = por %p201, %p202
      %p204 = scmp.ne.s32.totalorder %s190, %s191
      %p205 = scmp.eq.s32.totalorder %s29, 3
      %p206 = por %p204, %p205
      %p208 = scmp.ne.s32.totalorder %s191, %s207
      %p209 = scmp.eq.s32.totalorder %s29, 0
      %p210 = por %p208, %p209
      %p211 = scmp.le.s32.totalorder 1, %s23
      %p212 = scmp.lt.s32.totalorder %s23, 5
      %p213 = pnand %p211, %p212
      %p214 = pneg %p213
      // Predicated region
      $region9: #{tpu_custom_call.1} parent=5 // pred_check
        _
      $region10: #{tpu_custom_call.1} parent=5 // pred_check_branch
        %216 = sbr.rel (%p213) target = $region12
      $region11: #{tpu_custom_call.1} parent=5 // pred_region
        %s217 = ssub.s32 %s23, 1
        // Predicated region
        $region13: #{tpu_custom_call.1} parent=11 // pred_check
          %p218 = pneg %p112
        $region14: #{tpu_custom_call.1} parent=11 // pred_check_branch
          %220 = sbr.rel (%p218) target = $region16
        $region15: #{tpu_custom_call.1} parent=11 // pred_region
          %222 = vsyncadd [#allocation7], 0
          %s223 = sshll.u32 %s2, 4
          %s224 = int_to_ptr.hbm [resolvable:$true] %s223
          %s225 = sshll.u32 [#allocation8], 4
          %s226 = int_to_ptr.vmem [resolvable:$true] %s225
          %231 = dma.hbm_to_vmem [thread:$0]  %s224, 512, %s226, [#allocation7], 128, 128, 8
        $region16: #{tpu_custom_call.1} parent=11 // pred_fallthru
          _
        // Predicated region
        $region17: #{tpu_custom_call.1} parent=11 // pred_check
          %p232 = pneg %p133
        $region18: #{tpu_custom_call.1} parent=11 // pred_check_branch
          %234 = sbr.rel (%p232) target = $region20
        $region19: #{tpu_custom_call.1} parent=11 // pred_region
          %236 = vsyncadd [#allocation10], 0
          %s237 = sshll.u32 %s3, 4
          %s238 = int_to_ptr.hbm [resolvable:$true] %s237
          %s239 = sshll.u32 [#allocation9], 4
          %s240 = int_to_ptr.vmem [resolvable:$true] %s239
          %245 = dma.hbm_to_vmem [thread:$0]  %s238, 512, %s240, [#allocation10], 128, 128, 8
        $region20: #{tpu_custom_call.1} parent=11 // pred_fallthru
          _
        // Predicated region
        $region21: #{tpu_custom_call.1} parent=11 // pred_check
          %p246 = pneg %p154
        $region22: #{tpu_custom_call.1} parent=11 // pred_check_branch
          %248 = sbr.rel (%p246) target = $region24
        $region23: #{tpu_custom_call.1} parent=11 // pred_region
          %250 = vsyncadd [#allocation10], 0
          %s251 = sshll.u32 %s4, 4
          %s252 = int_to_ptr.hbm [resolvable:$true] %s251
          %s253 = sshll.u32 [#allocation11], 4
          %s254 = int_to_ptr.vmem [resolvable:$true] %s253
          %259 = dma.hbm_to_vmem [thread:$0]  %s252, 2048, %s254, [#allocation10], 128, 128, 8
        $region24: #{tpu_custom_call.1} parent=11 // pred_fallthru
          _
        // Predicated region
        $region25: #{tpu_custom_call.1} parent=11 // pred_check
          %p260 = pneg %p175
        $region26: #{tpu_custom_call.1} parent=11 // pred_check_branch
          %262 = sbr.rel (%p260) target = $region28
        $region27: #{tpu_custom_call.1} parent=11 // pred_region
          %264 = vsyncadd [#allocation13], 0
          %s265 = sshll.u32 %s5, 4
          %s266 = int_to_ptr.hbm [resolvable:$true] %s265
          %s267 = sshll.u32 [#allocation12], 4
          %s268 = int_to_ptr.vmem [resolvable:$true] %s267
          %273 = dma.hbm_to_vmem [thread:$0]  %s266, 2048, %s268, [#allocation13], 128, 128, 8
        $region28: #{tpu_custom_call.1} parent=11 // pred_fallthru
          _
      $region12: #{tpu_custom_call.1} parent=5 // pred_fallthru
        _
      %p274 = scmp.lt.s32.totalorder %s23, 4
      // Predicated region
      $region29: #{tpu_custom_call.1} parent=5 // pred_check
        %p275 = pneg %p274
      $region30: #{tpu_custom_call.1} parent=5 // pred_check_branch
        %277 = sbr.rel (%p275) target = $region32
      $region31: #{tpu_custom_call.1} parent=5 // pred_region
        // Predicated region
        $region33: #{tpu_custom_call.1} parent=31 // pred_check
          %p278 = pneg %p57
        $region34: #{tpu_custom_call.1} parent=31 // pred_check_branch
          %280 = sbr.rel (%p278) target = $region36
        $region35: #{tpu_custom_call.1} parent=31 // pred_region
          %s281 = sand.u32 %s47, 1
          %s282 = scalar_lea.sflag [#allocation4], %s281
          %s283 = sand.u32 %s47, 1
          %s284 = smul.addr %s283, 4
          %s285 = scalar_lea.vmem [#allocation3], %s284
          %s286 = smul.u32 2, %s31
          %288 = vsyncadd %s282, 0
          %s289 = sadd.s32 %s30, %s286
          %s290 = smul.addr %s289, 2
          %s291 = scalar_lea.hbm %s0, %s290
          %s292 = sshll.u32 %s291, 4
          %s293 = int_to_ptr.hbm [resolvable:$true] %s292
          %s294 = sshll.u32 %s285, 4
          %s295 = int_to_ptr.vmem [resolvable:$true] %s294
          %300 = dma.hbm_to_vmem [thread:$0]  %s293, 64, %s295, %s282, 32, 32, 2
        $region36: #{tpu_custom_call.1} parent=31 // pred_fallthru
          _
        // Predicated region
        $region37: #{tpu_custom_call.1} parent=31 // pred_check
          %p301 = pneg %p85
        $region38: #{tpu_custom_call.1} parent=31 // pred_check_branch
          %303 = sbr.rel (%p301) target = $region40
        $region39: #{tpu_custom_call.1} parent=31 // pred_region
          %s304 = sand.u32 %s23, 1
          %s305 = scalar_lea.sflag [#allocation7], %s304
          %s306 = sand.u32 %s75, 1
          %s307 = smul.addr %s306, 4
          %s308 = scalar_lea.vmem [#allocation6], %s307
          %s309 = smul.u32 2, %s31
          %311 = vsyncadd %s305, 0
          %s312 = sadd.s32 %s30, %s309
          %s313 = smul.addr %s312, 2
          %s314 = scalar_lea.hbm %s1, %s313
          %s315 = sshll.u32 %s314, 4
          %s316 = int_to_ptr.hbm [resolvable:$true] %s315
          %s317 = sshll.u32 %s308, 4
          %s318 = int_to_ptr.vmem [resolvable:$true] %s317
          %323 = dma.hbm_to_vmem [thread:$0]  %s316, 64, %s318, %s305, 32, 32, 2
        $region40: #{tpu_custom_call.1} parent=31 // pred_fallthru
          _
      $region32: #{tpu_custom_call.1} parent=5 // pred_fallthru
        _
      %p324 = scmp.le.s32.totalorder 1, %s23
      %p325 = scmp.lt.s32.totalorder %s23, 5
      %p326 = pnand %p324, %p325
      %p327 = pneg %p326
      // Predicated region
      $region41: #{tpu_custom_call.1} parent=5 // pred_check
        _
      $region42: #{tpu_custom_call.1} parent=5 // pred_check_branch
        %329 = sbr.rel (%p326) target = $region44
      $region43: #{tpu_custom_call.1} parent=5 // pred_region
        %s330 = ssub.s32 %s23, 1
        %s331 = sand.u32 %s50, 1
        %s332 = scalar_lea.sflag [#allocation4], %s331
        %s333 = sand.u32 %s50, 1
        %s334 = smul.addr %s333, 4
        %s335 = scalar_lea.vmem [#allocation3], %s334
        // Predicated region
        $region45: #{tpu_custom_call.1} parent=43 // pred_check
          %p336 = pneg %p63
        $region46: #{tpu_custom_call.1} parent=43 // pred_check_branch
          %338 = sbr.rel (%p336) target = $region48
        $region47: #{tpu_custom_call.1} parent=43 // pred_region
          %340 = dma.done %s332, 64
        $region48: #{tpu_custom_call.1} parent=43 // pred_fallthru
          _
        %s341 = sand.u32 %s28, 1
        %s342 = scalar_lea.sflag [#allocation7], %s341
        %s343 = sand.u32 %s78, 1
        %s344 = smul.addr %s343, 4
        %s345 = scalar_lea.vmem [#allocation6], %s344
        // Predicated region
        $region49: #{tpu_custom_call.1} parent=43 // pred_check
          %p346 = pneg %p91
        $region50: #{tpu_custom_call.1} parent=43 // pred_check_branch
          %348 = sbr.rel (%p346) target = $region52
        $region51: #{tpu_custom_call.1} parent=43 // pred_region
          %350 = dma.done %s342, 64
        $region52: #{tpu_custom_call.1} parent=43 // pred_fallthru
          _
        // Predicated region
        $region53: #{tpu_custom_call.1} parent=43 // pred_check
          %p351 = pneg %p112
        $region54: #{tpu_custom_call.1} parent=43 // pred_check_branch
          %353 = sbr.rel (%p351) target = $region56
        $region55: #{tpu_custom_call.1} parent=43 // pred_region
          %355 = dma.done [#allocation7], 512
        $region56: #{tpu_custom_call.1} parent=43 // pred_fallthru
          _
        // Predicated region
        $region57: #{tpu_custom_call.1} parent=43 // pred_check
          %p356 = pneg %p133
        $region58: #{tpu_custom_call.1} parent=43 // pred_check_branch
          %358 = sbr.rel (%p356) target = $region60
        $region59: #{tpu_custom_call.1} parent=43 // pred_region
          %360 = dma.done [#allocation10], 512
        $region60: #{tpu_custom_call.1} parent=43 // pred_fallthru
          _
        // Predicated region
        $region61: #{tpu_custom_call.1} parent=43 // pred_check
          %p361 = pneg %p154
        $region62: #{tpu_custom_call.1} parent=43 // pred_check_branch
          %363 = sbr.rel (%p361) target = $region64
        $region63: #{tpu_custom_call.1} parent=43 // pred_region
          %365 = dma.done [#allocation10], 2048
        $region64: #{tpu_custom_call.1} parent=43 // pred_fallthru
          _
        // Predicated region
        $region65: #{tpu_custom_call.1} parent=43 // pred_check
          %p366 = pneg %p175
        $region66: #{tpu_custom_call.1} parent=43 // pred_check_branch
          %368 = sbr.rel (%p366) target = $region68
        $region67: #{tpu_custom_call.1} parent=43 // pred_region
          %370 = dma.done [#allocation13], 2048
        $region68: #{tpu_custom_call.1} parent=43 // pred_fallthru
          _
        %s371 = sand.u32 %s50, 1
        %s372 = scalar_lea.sflag [#allocation4], %s371
        %s373 = sand.u32 %s50, 1
        %s374 = smul.addr %s373, 4
        %s375 = scalar_lea.vmem [#allocation3], %s374
        %p376 = pneg %p63
        %p377 = pneg %p60
        %s378 = sand.u32 %s28, 1
        %s379 = scalar_lea.sflag [#allocation7], %s378
        %s380 = sand.u32 %s78, 1
        %s381 = smul.addr %s380, 4
        %s382 = scalar_lea.vmem [#allocation6], %s381
        %p383 = pneg %p91
        %p384 = pneg %p88
        %p385 = pneg %p112
        %p386 = pneg %p109
        %p387 = pneg %p133
        %p388 = pneg %p130
        %p389 = pneg %p154
        %p390 = pneg %p151
        %p391 = pneg %p175
        %p392 = pneg %p172
        %p393 = pneg %p203
        %p394 = pneg %p200
        %s395 = sand.u32 %s190, 1
        %s396 = scalar_lea.sflag [#allocation5], %s395
        %s397 = sand.u32 %s190, 1
        %s398 = smul.addr %s397, 4
        %s399 = scalar_lea.vmem [#allocation14], %s398
        %s400 = smul.u32 2, %s33
        %s401 = smul.u32 2, %s33
        %s402 = smul.u32 2, %s33
        %p403 = scmp.eq.s32.totalorder %s33, 0
        // Predicated region
        $region69: #{tpu_custom_call.1} parent=43 // pred_check
          %p404 = pneg %p403
        $region70: #{tpu_custom_call.1} parent=43 // pred_check_branch
          %406 = sbr.rel (%p404) target = $region72
        $region71: #{tpu_custom_call.1} parent=43 // pred_region
          %vm407 = vcmask 254976
          %408 = vst.msk [vmem:[#allocation2] sm:$0x3] %vm407, 0.0
        $region72: #{tpu_custom_call.1} parent=43 // pred_fallthru
          _
        %v409 = vld [vmem:[#allocation8] sm:$0xff]
        %v410 = vld [vmem:[#allocation8 + $0x8] sm:$0xff]
        %v411 = vld [vmem:[#allocation8 + $0x10] sm:$0xff]
        %v412 = vld [vmem:[#allocation8 + $0x18] sm:$0xff]
        %v413 = vld [vmem:[#allocation9] sm:$0xff]
        %v414 = vld [vmem:[#allocation9 + $0x8] sm:$0xff]
        %v415 = vld [vmem:[#allocation9 + $0x10] sm:$0xff]
        %v416 = vld [vmem:[#allocation9 + $0x18] sm:$0xff]
        %v417 = vld [vmem:[#allocation11] sm:$0xff]
        %v418 = vld [vmem:[#allocation11 + $0x8] sm:$0xff]
        %v419 = vld [vmem:[#allocation11 + $0x10] sm:$0xff]
        %v420 = vld [vmem:[#allocation11 + $0x18] sm:$0xff]
        %s421 = scalar_lea.vmem [#allocation11], 32
        %v422 = vld [vmem:[%s421] sm:$0xff]
        %v423 = vld [vmem:[%s421 + $0x8] sm:$0xff]
        %v424 = vld [vmem:[%s421 + $0x10] sm:$0xff]
        %v425 = vld [vmem:[%s421 + $0x18] sm:$0xff]
        %s426 = scalar_lea.vmem [#allocation11], 64
        %v427 = vld [vmem:[%s426] sm:$0xff]
        %v428 = vld [vmem:[%s426 + $0x8] sm:$0xff]
        %v429 = vld [vmem:[%s426 + $0x10] sm:$0xff]
        %v430 = vld [vmem:[%s426 + $0x18] sm:$0xff]
        %s431 = scalar_lea.vmem [#allocation11], 96
        %v432 = vld [vmem:[%s431] sm:$0xff]
        %v433 = vld [vmem:[%s431 + $0x8] sm:$0xff]
        %v434 = vld [vmem:[%s431 + $0x10] sm:$0xff]
        %v435 = vld [vmem:[%s431 + $0x18] sm:$0xff]
        %v436 = vld [vmem:[#allocation12] sm:$0xff]
        %v437 = vld [vmem:[#allocation12 + $0x8] sm:$0xff]
        %v438 = vld [vmem:[#allocation12 + $0x10] sm:$0xff]
        %v439 = vld [vmem:[#allocation12 + $0x18] sm:$0xff]
        %s440 = scalar_lea.vmem [#allocation12], 32
        %v441 = vld [vmem:[%s440] sm:$0xff]
        %v442 = vld [vmem:[%s440 + $0x8] sm:$0xff]
        %v443 = vld [vmem:[%s440 + $0x10] sm:$0xff]
        %v444 = vld [vmem:[%s440 + $0x18] sm:$0xff]
        %s445 = scalar_lea.vmem [#allocation12], 64
        %v446 = vld [vmem:[%s445] sm:$0xff]
        %v447 = vld [vmem:[%s445 + $0x8] sm:$0xff]
        %v448 = vld [vmem:[%s445 + $0x10] sm:$0xff]
        %v449 = vld [vmem:[%s445 + $0x18] sm:$0xff]
        %s450 = scalar_lea.vmem [#allocation12], 96
        %v451 = vld [vmem:[%s450] sm:$0xff]
        %v452 = vld [vmem:[%s450 + $0x8] sm:$0xff]
        %v453 = vld [vmem:[%s450 + $0x10] sm:$0xff]
        %v454 = vld [vmem:[%s450 + $0x18] sm:$0xff]
        %v455 = vld [vmem:[#allocation2] sm:$0x3]
        %v456 = vld [vmem:[%s335] sm:$0x3]
        %vm457 = vcmask 261120
        %v459 = vsel %vm457, %v455, 0
        %461 = vmatpush.msra.mxu0 0.0
        %462 = vmatpush.msra.mxu0 0.0
        %463 = vmatpush.msra.mxu0 0.0
        %464 = vmatpush.msra.mxu0 0.0
        %465 = vmatpush.msra.mxu0 0.0
        %466 = vmatpush.msra.mxu0 0.0
        %467 = vmatpush.msra.mxu0 0.0
        %468 = vmatpush.msra.mxu0 0.0
        %469 = vmatpush.msra.mxu0 0.0
        %470 = vmatpush.msra.mxu0 0.0
        %471 = vmatpush.msra.mxu0 0.0
        %472 = vmatpush.msra.mxu0 0.0
        %473 = vmatpush.msra.mxu0 %v412
        %474 = vmatpush.msra.mxu0 %v411
        %475 = vmatpush.msra.mxu0 %v410
        %476 = vmatpush.msra.mxu0 %v409
        %477 = vmatmul.f32.gmra.mxu0 %v459
        %v478 = vpop.f32.mrf.mxu0
        %v479 = vadd.f32 0.0, %v478
        %480 = vdwg.mxu0
        %v481 = vadd.f32 %v456, %v479
        %v482 = vld [vmem:[%s345] sm:$0x3]
        %483 = vmatpush.msra.mxu0 0.0
        %484 = vmatpush.msra.mxu0 0.0
        %485 = vmatpush.msra.mxu0 0.0
        %486 = vmatpush.msra.mxu0 0.0
        %487 = vmatpush.msra.mxu0 0.0
        %488 = vmatpush.msra.mxu0 0.0
        %489 = vmatpush.msra.mxu0 0.0
        %490 = vmatpush.msra.mxu0 0.0
        %491 = vmatpush.msra.mxu0 0.0
        %492 = vmatpush.msra.mxu0 0.0
        %493 = vmatpush.msra.mxu0 0.0
        %494 = vmatpush.msra.mxu0 0.0
        %495 = vmatpush.msra.mxu0 %v416
        %496 = vmatpush.msra.mxu0 %v415
        %497 = vmatpush.msra.mxu0 %v414
        %498 = vmatpush.msra.mxu0 %v413
        %499 = vmatmul.f32.gmra.mxu0 %v459
        %v500 = vpop.f32.mrf.mxu0
        %v501 = vadd.f32 0.0, %v500
        %502 = vdwg.mxu0
        %v503 = vadd.f32 %v482, %v501
        %v504 = vxor.u32 %v481, 2147483648
        %v505 = vmul.f32 %v504, 1.442695
        %v506 = vpow.pop %v505
        %v507 = vadd.f32 %v506, 1.0
        %v508 = vrcp.pop %v507
        %v509 = vmul.f32 %v507, %v508
        %v510 = vsub.f32 1.0, %v509
        %v511 = vmul.f32 %v508, %v510
        %v512 = vadd.f32 %v508, %v511
        %vm513 = vweird.f32 %v507
        %vm514 = vweird.f32 %v508
        %vm515 = vmor %vm513, %vm514
        %v516 = vsel %vm515, %v508, %v512
        %v517 = vand.u32 2147483647, %v507
        %vm518 = vcmp.eq.f32.partialorder %v517, 8.507059e+37
        %v519 = vand.u32 %v507, 2147483648
        %v520 = vor.u32 1.1754944e-38, %v519
        %v521 = vsel %vm518, %v520, %v516
        %v522 = vmul.f32 1.0, %v521
        %v523 = vtanh.pop %v503
        %v524 = vsub.f32 %v523, %v455
        %v525 = vmul.f32 %v522, %v524
        %v526 = vadd.f32 %v455, %v525
        %v528 = vsel %vm457, %v526, 0
        %530 = vmatpush.msra.mxu0 0.0
        %531 = vmatpush.msra.mxu0 0.0
        %532 = vmatpush.msra.mxu0 0.0
        %533 = vmatpush.msra.mxu0 0.0
        %534 = vmatpush.msra.mxu0 0.0
        %535 = vmatpush.msra.mxu0 0.0
        %536 = vmatpush.msra.mxu0 0.0
        %537 = vmatpush.msra.mxu0 0.0
        %538 = vmatpush.msra.mxu0 0.0
        %539 = vmatpush.msra.mxu0 0.0
        %540 = vmatpush.msra.mxu0 0.0
        %541 = vmatpush.msra.mxu0 0.0
        %542 = vmatpush.msra.mxu0 %v420
        %543 = vmatpush.msra.mxu0 %v419
        %544 = vmatpush.msra.mxu0 %v418
        %545 = vmatpush.msra.mxu0 %v417
        %546 = vmatmul.f32.gmra.mxu0 %v528
        %v547 = vpop.f32.mrf.mxu0
        %v548 = vadd.f32 0.0, %v547
        %549 = vdwg.mxu0
        %v550 = vxor.u32 %v548, 2147483648
        %v551 = vmul.f32 %v550, 1.442695
        %v552 = vpow.pop %v551
        %v553 = vadd.f32 %v552, 1.0
        %v554 = vrcp.pop %v553
        %v555 = vmul.f32 %v553, %v554
        %v556 = vsub.f32 1.0, %v555
        %v557 = vmul.f32 %v554, %v556
        %v558 = vadd.f32 %v554, %v557
        %vm559 = vweird.f32 %v553
        %vm560 = vweird.f32 %v554
        %vm561 = vmor %vm559, %vm560
        %v562 = vsel %vm561, %v554, %v558
        %v563 = vand.u32 2147483647, %v553
        %vm564 = vcmp.eq.f32.partialorder %v563, 8.507059e+37
        %v565 = vand.u32 %v553, 2147483648
        %v566 = vor.u32 1.1754944e-38, %v565
        %v567 = vsel %vm564, %v566, %v562
        %v568 = vmul.f32 1.0, %v567
        %569 = vmatpush.msra.mxu0 0.0
        %570 = vmatpush.msra.mxu0 0.0
        %571 = vmatpush.msra.mxu0 0.0
        %572 = vmatpush.msra.mxu0 0.0
        %573 = vmatpush.msra.mxu0 0.0
        %574 = vmatpush.msra.mxu0 0.0
        %575 = vmatpush.msra.mxu0 0.0
        %576 = vmatpush.msra.mxu0 0.0
        %577 = vmatpush.msra.mxu0 0.0
        %578 = vmatpush.msra.mxu0 0.0
        %579 = vmatpush.msra.mxu0 0.0
        %580 = vmatpush.msra.mxu0 0.0
        %581 = vmatpush.msra.mxu0 %v439
        %582 = vmatpush.msra.mxu0 %v438
        %583 = vmatpush.msra.mxu0 %v437
        %584 = vmatpush.msra.mxu0 %v436
        %585 = vmatmul.f32.gmra.mxu0 %v528
        %v586 = vpop.f32.mrf.mxu0
        %v587 = vadd.f32 0.0, %v586
        %588 = vdwg.mxu0
        %v589 = vmax.f32 %v587, 0.0
        %v590 = vsub.f32 %v589, %v526
        %v591 = vmul.f32 %v568, %v590
        %v592 = vadd.f32 %v526, %v591
        %v594 = vsel %vm457, %v592, 0
        %596 = vmatpush.msra.mxu0 0.0
        %597 = vmatpush.msra.mxu0 0.0
        %598 = vmatpush.msra.mxu0 0.0
        %599 = vmatpush.msra.mxu0 0.0
        %600 = vmatpush.msra.mxu0 0.0
        %601 = vmatpush.msra.mxu0 0.0
        %602 = vmatpush.msra.mxu0 0.0
        %603 = vmatpush.msra.mxu0 0.0
        %604 = vmatpush.msra.mxu0 0.0
        %605 = vmatpush.msra.mxu0 0.0
        %606 = vmatpush.msra.mxu0 0.0
        %607 = vmatpush.msra.mxu0 0.0
        %608 = vmatpush.msra.mxu0 %v425
        %609 = vmatpush.msra.mxu0 %v424
        %610 = vmatpush.msra.mxu0 %v423
        %611 = vmatpush.msra.mxu0 %v422
        %612 = vmatmul.f32.gmra.mxu0 %v594
        %v613 = vpop.f32.mrf.mxu0
        %v614 = vadd.f32 0.0, %v613
        %615 = vdwg.mxu0
        %v616 = vxor.u32 %v614, 2147483648
        %v617 = vmul.f32 %v616, 1.442695
        %v618 = vpow.pop %v617
        %v619 = vadd.f32 %v618, 1.0
        %v620 = vrcp.pop %v619
        %v621 = vmul.f32 %v619, %v620
        %v622 = vsub.f32 1.0, %v621
        %v623 = vmul.f32 %v620, %v622
        %v624 = vadd.f32 %v620, %v623
        %vm625 = vweird.f32 %v619
        %vm626 = vweird.f32 %v620
        %vm627 = vmor %vm625, %vm626
        %v628 = vsel %vm627, %v620, %v624
        %v629 = vand.u32 2147483647, %v619
        %vm630 = vcmp.eq.f32.partialorder %v629, 8.507059e+37
        %v631 = vand.u32 %v619, 2147483648
        %v632 = vor.u32 1.1754944e-38, %v631
        %v633 = vsel %vm630, %v632, %v628
        %v634 = vmul.f32 1.0, %v633
        %635 = vmatpush.msra.mxu0 0.0
        %636 = vmatpush.msra.mxu0 0.0
        %637 = vmatpush.msra.mxu0 0.0
        %638 = vmatpush.msra.mxu0 0.0
        %639 = vmatpush.msra.mxu0 0.0
        %640 = vmatpush.msra.mxu0 0.0
        %641 = vmatpush.msra.mxu0 0.0
        %642 = vmatpush.msra.mxu0 0.0
        %643 = vmatpush.msra.mxu0 0.0
        %644 = vmatpush.msra.mxu0 0.0
        %645 = vmatpush.msra.mxu0 0.0
        %646 = vmatpush.msra.mxu0 0.0
        %647 = vmatpush.msra.mxu0 %v444
        %648 = vmatpush.msra.mxu0 %v443
        %649 = vmatpush.msra.mxu0 %v442
        %650 = vmatpush.msra.mxu0 %v441
        %651 = vmatmul.f32.gmra.mxu0 %v594
        %v652 = vpop.f32.mrf.mxu0
        %v653 = vadd.f32 0.0, %v652
        %654 = vdwg.mxu0
        %v655 = vtanh.pop %v653
        %v656 = vsub.f32 %v655, %v592
        %v657 = vmul.f32 %v634, %v656
        %v658 = vadd.f32 %v592, %v657
        %659 = vmatpush.msra.mxu0 0.0
        %660 = vmatpush.msra.mxu0 0.0
        %661 = vmatpush.msra.mxu0 0.0
        %662 = vmatpush.msra.mxu0 0.0
        %663 = vmatpush.msra.mxu0 0.0
        %664 = vmatpush.msra.mxu0 0.0
        %665 = vmatpush.msra.mxu0 0.0
        %666 = vmatpush.msra.mxu0 0.0
        %667 = vmatpush.msra.mxu0 0.0
        %668 = vmatpush.msra.mxu0 0.0
        %669 = vmatpush.msra.mxu0 0.0
        %670 = vmatpush.msra.mxu0 0.0
        %671 = vmatpush.msra.mxu0 %v430
        %672 = vmatpush.msra.mxu0 %v429
        %673 = vmatpush.msra.mxu0 %v428
        %674 = vmatpush.msra.mxu0 %v427
        %675 = vmatmul.f32.gmra.mxu0 %v594
        %v676 = vpop.f32.mrf.mxu0
        %v677 = vadd.f32 0.0, %v676
        %678 = vdwg.mxu0
        %v679 = vxor.u32 %v677, 2147483648
        %v680 = vmul.f32 %v679, 1.442695
        %v681 = vpow.pop %v680
        %v682 = vadd.f32 %v681, 1.0
        %v683 = vrcp.pop %v682
        %v684 = vmul.f32 %v682, %v683
        %v685 = vsub.f32 1.0, %v684
        %v686 = vmul.f32 %v683, %v685
        %v687 = vadd.f32 %v683, %v686
        %vm688 = vweird.f32 %v682
        %vm689 = vweird.f32 %v683
        %vm690 = vmor %vm688, %vm689
        %v691 = vsel %vm690, %v683, %v687
        %v692 = vand.u32 2147483647, %v682
        %vm693 = vcmp.eq.f32.partialorder %v692, 8.507059e+37
        %v694 = vand.u32 %v682, 2147483648
        %v695 = vor.u32 1.1754944e-38, %v694
        %v696 = vsel %vm693, %v695, %v691
        %v697 = vmul.f32 1.0, %v696
        %698 = vmatpush.msra.mxu0 0.0
        %699 = vmatpush.msra.mxu0 0.0
        %700 = vmatpush.msra.mxu0 0.0
        %701 = vmatpush.msra.mxu0 0.0
        %702 = vmatpush.msra.mxu0 0.0
        %703 = vmatpush.msra.mxu0 0.0
        %704 = vmatpush.msra.mxu0 0.0
        %705 = vmatpush.msra.mxu0 0.0
        %706 = vmatpush.msra.mxu0 0.0
        %707 = vmatpush.msra.mxu0 0.0
        %708 = vmatpush.msra.mxu0 0.0
        %709 = vmatpush.msra.mxu0 0.0
        %710 = vmatpush.msra.mxu0 %v449
        %711 = vmatpush.msra.mxu0 %v448
        %712 = vmatpush.msra.mxu0 %v447
        %713 = vmatpush.msra.mxu0 %v446
        %714 = vmatmul.f32.gmra.mxu0 %v594
        %v715 = vpop.f32.mrf.mxu0
        %v716 = vadd.f32 0.0, %v715
        %717 = vdwg.mxu0
        %v718 = vxor.u32 %v716, 2147483648
        %v719 = vmul.f32 %v718, 1.442695
        %v720 = vpow.pop %v719
        %v721 = vadd.f32 %v720, 1.0
        %v722 = vrcp.pop %v721
        %v723 = vmul.f32 %v721, %v722
        %v724 = vsub.f32 1.0, %v723
        %v725 = vmul.f32 %v722, %v724
        %v726 = vadd.f32 %v722, %v725
        %vm727 = vweird.f32 %v721
        %vm728 = vweird.f32 %v722
        %vm729 = vmor %vm727, %vm728
        %v730 = vsel %vm729, %v722, %v726
        %v731 = vand.u32 2147483647, %v721
        %vm732 = vcmp.eq.f32.partialorder %v731, 8.507059e+37
        %v733 = vand.u32 %v721, 2147483648
        %v734 = vor.u32 1.1754944e-38, %v733
        %v735 = vsel %vm732, %v734, %v730
        %v736 = vmul.f32 1.0, %v735
        %v737 = vsub.f32 %v736, %v592
        %v738 = vmul.f32 %v697, %v737
        %v739 = vadd.f32 %v592, %v738
        %v741 = vsel %vm457, %v658, 0
        %743 = vmatpush.msra.mxu0 0.0
        %744 = vmatpush.msra.mxu0 0.0
        %745 = vmatpush.msra.mxu0 0.0
        %746 = vmatpush.msra.mxu0 0.0
        %747 = vmatpush.msra.mxu0 0.0
        %748 = vmatpush.msra.mxu0 0.0
        %749 = vmatpush.msra.mxu0 0.0
        %750 = vmatpush.msra.mxu0 0.0
        %751 = vmatpush.msra.mxu0 0.0
        %752 = vmatpush.msra.mxu0 0.0
        %753 = vmatpush.msra.mxu0 0.0
        %754 = vmatpush.msra.mxu0 0.0
        %755 = vmatpush.msra.mxu0 %v435
        %756 = vmatpush.msra.mxu0 %v434
        %757 = vmatpush.msra.mxu0 %v433
        %758 = vmatpush.msra.mxu0 %v432
        %759 = vmatmul.f32.gmra.mxu0 %v741
        %v760 = vpop.f32.mrf.mxu0
        %v761 = vadd.f32 0.0, %v760
        %762 = vdwg.mxu0
        %v763 = vxor.u32 %v761, 2147483648
        %v764 = vmul.f32 %v763, 1.442695
        %v765 = vpow.pop %v764
        %v766 = vadd.f32 %v765, 1.0
        %v767 = vrcp.pop %v766
        %v768 = vmul.f32 %v766, %v767
        %v769 = vsub.f32 1.0, %v768
        %v770 = vmul.f32 %v767, %v769
        %v771 = vadd.f32 %v767, %v770
        %vm772 = vweird.f32 %v766
        %vm773 = vweird.f32 %v767
        %vm774 = vmor %vm772, %vm773
        %v775 = vsel %vm774, %v767, %v771
        %v776 = vand.u32 2147483647, %v766
        %vm777 = vcmp.eq.f32.partialorder %v776, 8.507059e+37
        %v778 = vand.u32 %v766, 2147483648
        %v779 = vor.u32 1.1754944e-38, %v778
        %v780 = vsel %vm777, %v779, %v775
        %v781 = vmul.f32 1.0, %v780
        %782 = vmatpush.msra.mxu0 0.0
        %783 = vmatpush.msra.mxu0 0.0
        %784 = vmatpush.msra.mxu0 0.0
        %785 = vmatpush.msra.mxu0 0.0
        %786 = vmatpush.msra.mxu0 0.0
        %787 = vmatpush.msra.mxu0 0.0
        %788 = vmatpush.msra.mxu0 0.0
        %789 = vmatpush.msra.mxu0 0.0
        %790 = vmatpush.msra.mxu0 0.0
        %791 = vmatpush.msra.mxu0 0.0
        %792 = vmatpush.msra.mxu0 0.0
        %793 = vmatpush.msra.mxu0 0.0
        %794 = vmatpush.msra.mxu0 %v454
        %795 = vmatpush.msra.mxu0 %v453
        %796 = vmatpush.msra.mxu0 %v452
        %797 = vmatpush.msra.mxu0 %v451
        %798 = vmatmul.f32.gmra.mxu0 %v741
        %v799 = vpop.f32.mrf.mxu0
        %v800 = vadd.f32 0.0, %v799
        %801 = vdwg.mxu0
        %v802 = vsub.f32 %v800, %v658
        %v803 = vmul.f32 %v781, %v802
        %v804 = vadd.f32 %v658, %v803
        %v805 = vadd.f32 %v592, %v658
        %v806 = vadd.f32 %v805, %v739
        %v807 = vadd.f32 %v806, %v804
        %v808 = vmul.f32 %v807, 0.25
        %vm809 = vcmask 254976
        %810 = vst.msk [vmem:[%s399] sm:$0x3] %vm809, %v808
        %s811 = scalar_lea.vmem %s335, 2 [#allocation3]
        %v812 = vld [vmem:[%s811] sm:$0x3]
        %v814 = vsel %vm457, %v808, 0
        %816 = vmatpush.msra.mxu0 0.0
        %817 = vmatpush.msra.mxu0 0.0
        %818 = vmatpush.msra.mxu0 0.0
        %819 = vmatpush.msra.mxu0 0.0
        %820 = vmatpush.msra.mxu0 0.0
        %821 = vmatpush.msra.mxu0 0.0
        %822 = vmatpush.msra.mxu0 0.0
        %823 = vmatpush.msra.mxu0 0.0
        %824 = vmatpush.msra.mxu0 0.0
        %825 = vmatpush.msra.mxu0 0.0
        %826 = vmatpush.msra.mxu0 0.0
        %827 = vmatpush.msra.mxu0 0.0
        %828 = vmatpush.msra.mxu0 %v412
        %829 = vmatpush.msra.mxu0 %v411
        %830 = vmatpush.msra.mxu0 %v410
        %831 = vmatpush.msra.mxu0 %v409
        %832 = vmatmul.f32.gmra.mxu0 %v814
        %v833 = vpop.f32.mrf.mxu0
        %v834 = vadd.f32 0.0, %v833
        %835 = vdwg.mxu0
        %v836 = vadd.f32 %v812, %v834
        %s837 = scalar_lea.vmem %s345, 2 [#allocation6]
        %v838 = vld [vmem:[%s837] sm:$0x3]
        %839 = vmatpush.msra.mxu0 0.0
        %840 = vmatpush.msra.mxu0 0.0
        %841 = vmatpush.msra.mxu0 0.0
        %842 = vmatpush.msra.mxu0 0.0
        %843 = vmatpush.msra.mxu0 0.0
        %844 = vmatpush.msra.mxu0 0.0
        %845 = vmatpush.msra.mxu0 0.0
        %846 = vmatpush.msra.mxu0 0.0
        %847 = vmatpush.msra.mxu0 0.0
        %848 = vmatpush.msra.mxu0 0.0
        %849 = vmatpush.msra.mxu0 0.0
        %850 = vmatpush.msra.mxu0 0.0
        %851 = vmatpush.msra.mxu0 %v416
        %852 = vmatpush.msra.mxu0 %v415
        %853 = vmatpush.msra.mxu0 %v414
        %854 = vmatpush.msra.mxu0 %v413
        %855 = vmatmul.f32.gmra.mxu0 %v814
        %v856 = vpop.f32.mrf.mxu0
        %v857 = vadd.f32 0.0, %v856
        %858 = vdwg.mxu0
        %v859 = vadd.f32 %v838, %v857
        %v860 = vxor.u32 %v836, 2147483648
        %v861 = vmul.f32 %v860, 1.442695
        %v862 = vpow.pop %v861
        %v863 = vadd.f32 %v862, 1.0
        %v864 = vrcp.pop %v863
        %v865 = vmul.f32 %v863, %v864
        %v866 = vsub.f32 1.0, %v865
        %v867 = vmul.f32 %v864, %v866
        %v868 = vadd.f32 %v864, %v867
        %vm869 = vweird.f32 %v863
        %vm870 = vweird.f32 %v864
        %vm871 = vmor %vm869, %vm870
        %v872 = vsel %vm871, %v864, %v868
        %v873 = vand.u32 2147483647, %v863
        %vm874 = vcmp.eq.f32.partialorder %v873, 8.507059e+37
        %v875 = vand.u32 %v863, 2147483648
        %v876 = vor.u32 1.1754944e-38, %v875
        %v877 = vsel %vm874, %v876, %v872
        %v878 = vmul.f32 1.0, %v877
        %v879 = vtanh.pop %v859
        %v880 = vsub.f32 %v879, %v808
        %v881 = vmul.f32 %v878, %v880
        %v882 = vadd.f32 %v808, %v881
        %v884 = vsel %vm457, %v882, 0
        %886 = vmatpush.msra.mxu0 0.0
        %887 = vmatpush.msra.mxu0 0.0
        %888 = vmatpush.msra.mxu0 0.0
        %889 = vmatpush.msra.mxu0 0.0
        %890 = vmatpush.msra.mxu0 0.0
        %891 = vmatpush.msra.mxu0 0.0
        %892 = vmatpush.msra.mxu0 0.0
        %893 = vmatpush.msra.mxu0 0.0
        %894 = vmatpush.msra.mxu0 0.0
        %895 = vmatpush.msra.mxu0 0.0
        %896 = vmatpush.msra.mxu0 0.0
        %897 = vmatpush.msra.mxu0 0.0
        %898 = vmatpush.msra.mxu0 %v420
        %899 = vmatpush.msra.mxu0 %v419
        %900 = vmatpush.msra.mxu0 %v418
        %901 = vmatpush.msra.mxu0 %v417
        %902 = vmatmul.f32.gmra.mxu0 %v884
        %v903 = vpop.f32.mrf.mxu0
        %v904 = vadd.f32 0.0, %v903
        %905 = vdwg.mxu0
        %v906 = vxor.u32 %v904, 2147483648
        %v907 = vmul.f32 %v906, 1.442695
        %v908 = vpow.pop %v907
        %v909 = vadd.f32 %v908, 1.0
        %v910 = vrcp.pop %v909
        %v911 = vmul.f32 %v909, %v910
        %v912 = vsub.f32 1.0, %v911
        %v913 = vmul.f32 %v910, %v912
        %v914 = vadd.f32 %v910, %v913
        %vm915 = vweird.f32 %v909
        %vm916 = vweird.f32 %v910
        %vm917 = vmor %vm915, %vm916
        %v918 = vsel %vm917, %v910, %v914
        %v919 = vand.u32 2147483647, %v909
        %vm920 = vcmp.eq.f32.partialorder %v919, 8.507059e+37
        %v921 = vand.u32 %v909, 2147483648
        %v922 = vor.u32 1.1754944e-38, %v921
        %v923 = vsel %vm920, %v922, %v918
        %v924 = vmul.f32 1.0, %v923
        %925 = vmatpush.msra.mxu0 0.0
        %926 = vmatpush.msra.mxu0 0.0
        %927 = vmatpush.msra.mxu0 0.0
        %928 = vmatpush.msra.mxu0 0.0
        %929 = vmatpush.msra.mxu0 0.0
        %930 = vmatpush.msra.mxu0 0.0
        %931 = vmatpush.msra.mxu0 0.0
        %932 = vmatpush.msra.mxu0 0.0
        %933 = vmatpush.msra.mxu0 0.0
        %934 = vmatpush.msra.mxu0 0.0
        %935 = vmatpush.msra.mxu0 0.0
        %936 = vmatpush.msra.mxu0 0.0
        %937 = vmatpush.msra.mxu0 %v439
        %938 = vmatpush.msra.mxu0 %v438
        %939 = vmatpush.msra.mxu0 %v437
        %940 = vmatpush.msra.mxu0 %v436
        %941 = vmatmul.f32.gmra.mxu0 %v884
        %v942 = vpop.f32.mrf.mxu0
        %v943 = vadd.f32 0.0, %v942
        %944 = vdwg.mxu0
        %v945 = vmax.f32 %v943, 0.0
        %v946 = vsub.f32 %v945, %v882
        %v947 = vmul.f32 %v924, %v946
        %v948 = vadd.f32 %v882, %v947
        %v950 = vsel %vm457, %v948, 0
        %952 = vmatpush.msra.mxu0 0.0
        %953 = vmatpush.msra.mxu0 0.0
        %954 = vmatpush.msra.mxu0 0.0
        %955 = vmatpush.msra.mxu0 0.0
        %956 = vmatpush.msra.mxu0 0.0
        %957 = vmatpush.msra.mxu0 0.0
        %958 = vmatpush.msra.mxu0 0.0
        %959 = vmatpush.msra.mxu0 0.0
        %960 = vmatpush.msra.mxu0 0.0
        %961 = vmatpush.msra.mxu0 0.0
        %962 = vmatpush.msra.mxu0 0.0
        %963 = vmatpush.msra.mxu0 0.0
        %964 = vmatpush.msra.mxu0 %v425
        %965 = vmatpush.msra.mxu0 %v424
        %966 = vmatpush.msra.mxu0 %v423
        %967 = vmatpush.msra.mxu0 %v422
        %968 = vmatmul.f32.gmra.mxu0 %v950
        %v969 = vpop.f32.mrf.mxu0
        %v970 = vadd.f32 0.0, %v969
        %971 = vdwg.mxu0
        %v972 = vxor.u32 %v970, 2147483648
        %v973 = vmul.f32 %v972, 1.442695
        %v974 = vpow.pop %v973
        %v975 = vadd.f32 %v974, 1.0
        %v976 = vrcp.pop %v975
        %v977 = vmul.f32 %v975, %v976
        %v978 = vsub.f32 1.0, %v977
        %v979 = vmul.f32 %v976, %v978
        %v980 = vadd.f32 %v976, %v979
        %vm981 = vweird.f32 %v975
        %vm982 = vweird.f32 %v976
        %vm983 = vmor %vm981, %vm982
        %v984 = vsel %vm983, %v976, %v980
        %v985 = vand.u32 2147483647, %v975
        %vm986 = vcmp.eq.f32.partialorder %v985, 8.507059e+37
        %v987 = vand.u32 %v975, 2147483648
        %v988 = vor.u32 1.1754944e-38, %v987
        %v989 = vsel %vm986, %v988, %v984
        %v990 = vmul.f32 1.0, %v989
        %991 = vmatpush.msra.mxu0 0.0
        %992 = vmatpush.msra.mxu0 0.0
        %993 = vmatpush.msra.mxu0 0.0
        %994 = vmatpush.msra.mxu0 0.0
        %995 = vmatpush.msra.mxu0 0.0
        %996 = vmatpush.msra.mxu0 0.0
        %997 = vmatpush.msra.mxu0 0.0
        %998 = vmatpush.msra.mxu0 0.0
        %999 = vmatpush.msra.mxu0 0.0
        %1000 = vmatpush.msra.mxu0 0.0
        %1001 = vmatpush.msra.mxu0 0.0
        %1002 = vmatpush.msra.mxu0 0.0
        %1003 = vmatpush.msra.mxu0 %v444
        %1004 = vmatpush.msra.mxu0 %v443
        %1005 = vmatpush.msra.mxu0 %v442
        %1006 = vmatpush.msra.mxu0 %v441
        %1007 = vmatmul.f32.gmra.mxu0 %v950
        %v1008 = vpop.f32.mrf.mxu0
        %v1009 = vadd.f32 0.0, %v1008
        %1010 = vdwg.mxu0
        %v1011 = vtanh.pop %v1009
        %v1012 = vsub.f32 %v1011, %v948
        %v1013 = vmul.f32 %v990, %v1012
        %v1014 = vadd.f32 %v948, %v1013
        %1015 = vmatpush.msra.mxu0 0.0
        %1016 = vmatpush.msra.mxu0 0.0
        %1017 = vmatpush.msra.mxu0 0.0
        %1018 = vmatpush.msra.mxu0 0.0
        %1019 = vmatpush.msra.mxu0 0.0
        %1020 = vmatpush.msra.mxu0 0.0
        %1021 = vmatpush.msra.mxu0 0.0
        %1022 = vmatpush.msra.mxu0 0.0
        %1023 = vmatpush.msra.mxu0 0.0
        %1024 = vmatpush.msra.mxu0 0.0
        %1025 = vmatpush.msra.mxu0 0.0
        %1026 = vmatpush.msra.mxu0 0.0
        %1027 = vmatpush.msra.mxu0 %v430
        %1028 = vmatpush.msra.mxu0 %v429
        %1029 = vmatpush.msra.mxu0 %v428
        %1030 = vmatpush.msra.mxu0 %v427
        %1031 = vmatmul.f32.gmra.mxu0 %v950
        %v1032 = vpop.f32.mrf.mxu0
        %v1033 = vadd.f32 0.0, %v1032
        %1034 = vdwg.mxu0
        %v1035 = vxor.u32 %v1033, 2147483648
        %v1036 = vmul.f32 %v1035, 1.442695
        %v1037 = vpow.pop %v1036
        %v1038 = vadd.f32 %v1037, 1.0
        %v1039 = vrcp.pop %v1038
        %v1040 = vmul.f32 %v1038, %v1039
        %v1041 = vsub.f32 1.0, %v1040
        %v1042 = vmul.f32 %v1039, %v1041
        %v1043 = vadd.f32 %v1039, %v1042
        %vm1044 = vweird.f32 %v1038
        %vm1045 = vweird.f32 %v1039
        %vm1046 = vmor %vm1044, %vm1045
        %v1047 = vsel %vm1046, %v1039, %v1043
        %v1048 = vand.u32 2147483647, %v1038
        %vm1049 = vcmp.eq.f32.partialorder %v1048, 8.507059e+37
        %v1050 = vand.u32 %v1038, 2147483648
        %v1051 = vor.u32 1.1754944e-38, %v1050
        %v1052 = vsel %vm1049, %v1051, %v1047
        %v1053 = vmul.f32 1.0, %v1052
        %1054 = vmatpush.msra.mxu0 0.0
        %1055 = vmatpush.msra.mxu0 0.0
        %1056 = vmatpush.msra.mxu0 0.0
        %1057 = vmatpush.msra.mxu0 0.0
        %1058 = vmatpush.msra.mxu0 0.0
        %1059 = vmatpush.msra.mxu0 0.0
        %1060 = vmatpush.msra.mxu0 0.0
        %1061 = vmatpush.msra.mxu0 0.0
        %1062 = vmatpush.msra.mxu0 0.0
        %1063 = vmatpush.msra.mxu0 0.0
        %1064 = vmatpush.msra.mxu0 0.0
        %1065 = vmatpush.msra.mxu0 0.0
        %1066 = vmatpush.msra.mxu0 %v449
        %1067 = vmatpush.msra.mxu0 %v448
        %1068 = vmatpush.msra.mxu0 %v447
        %1069 = vmatpush.msra.mxu0 %v446
        %1070 = vmatmul.f32.gmra.mxu0 %v950
        %v1071 = vpop.f32.mrf.mxu0
        %v1072 = vadd.f32 0.0, %v1071
        %1073 = vdwg.mxu0
        %v1074 = vxor.u32 %v1072, 2147483648
        %v1075 = vmul.f32 %v1074, 1.442695
        %v1076 = vpow.pop %v1075
        %v1077 = vadd.f32 %v1076, 1.0
        %v1078 = vrcp.pop %v1077
        %v1079 = vmul.f32 %v1077, %v1078
        %v1080 = vsub.f32 1.0, %v1079
        %v1081 = vmul.f32 %v1078, %v1080
        %v1082 = vadd.f32 %v1078, %v1081
        %vm1083 = vweird.f32 %v1077
        %vm1084 = vweird.f32 %v1078
        %vm1085 = vmor %vm1083, %vm1084
        %v1086 = vsel %vm1085, %v1078, %v1082
        %v1087 = vand.u32 2147483647, %v1077
        %vm1088 = vcmp.eq.f32.partialorder %v1087, 8.507059e+37
        %v1089 = vand.u32 %v1077, 2147483648
        %v1090 = vor.u32 1.1754944e-38, %v1089
        %v1091 = vsel %vm1088, %v1090, %v1086
        %v1092 = vmul.f32 1.0, %v1091
        %v1093 = vsub.f32 %v1092, %v948
        %v1094 = vmul.f32 %v1053, %v1093
        %v1095 = vadd.f32 %v948, %v1094
        %v1097 = vsel %vm457, %v1014, 0
        %1099 = vmatpush.msra.mxu0 0.0
        %1100 = vmatpush.msra.mxu0 0.0
        %1101 = vmatpush.msra.mxu0 0.0
        %1102 = vmatpush.msra.mxu0 0.0
        %1103 = vmatpush.msra.mxu0 0.0
        %1104 = vmatpush.msra.mxu0 0.0
        %1105 = vmatpush.msra.mxu0 0.0
        %1106 = vmatpush.msra.mxu0 0.0
        %1107 = vmatpush.msra.mxu0 0.0
        %1108 = vmatpush.msra.mxu0 0.0
        %1109 = vmatpush.msra.mxu0 0.0
        %1110 = vmatpush.msra.mxu0 0.0
        %1111 = vmatpush.msra.mxu0 %v435
        %1112 = vmatpush.msra.mxu0 %v434
        %1113 = vmatpush.msra.mxu0 %v433
        %1114 = vmatpush.msra.mxu0 %v432
        %1115 = vmatmul.f32.gmra.mxu0 %v1097
        %v1116 = vpop.f32.mrf.mxu0
        %v1117 = vadd.f32 0.0, %v1116
        %1118 = vdwg.mxu0
        %v1119 = vxor.u32 %v1117, 2147483648
        %v1120 = vmul.f32 %v1119, 1.442695
        %v1121 = vpow.pop %v1120
        %v1122 = vadd.f32 %v1121, 1.0
        %v1123 = vrcp.pop %v1122
        %v1124 = vmul.f32 %v1122, %v1123
        %v1125 = vsub.f32 1.0, %v1124
        %v1126 = vmul.f32 %v1123, %v1125
        %v1127 = vadd.f32 %v1123, %v1126
        %vm1128 = vweird.f32 %v1122
        %vm1129 = vweird.f32 %v1123
        %vm1130 = vmor %vm1128, %vm1129
        %v1131 = vsel %vm1130, %v1123, %v1127
        %v1132 = vand.u32 2147483647, %v1122
        %vm1133 = vcmp.eq.f32.partialorder %v1132, 8.507059e+37
        %v1134 = vand.u32 %v1122, 2147483648
        %v1135 = vor.u32 1.1754944e-38, %v1134
        %v1136 = vsel %vm1133, %v1135, %v1131
        %v1137 = vmul.f32 1.0, %v1136
        %1138 = vmatpush.msra.mxu0 0.0
        %1139 = vmatpush.msra.mxu0 0.0
        %1140 = vmatpush.msra.mxu0 0.0
        %1141 = vmatpush.msra.mxu0 0.0
        %1142 = vmatpush.msra.mxu0 0.0
        %1143 = vmatpush.msra.mxu0 0.0
        %1144 = vmatpush.msra.mxu0 0.0
        %1145 = vmatpush.msra.mxu0 0.0
        %1146 = vmatpush.msra.mxu0 0.0
        %1147 = vmatpush.msra.mxu0 0.0
        %1148 = vmatpush.msra.mxu0 0.0
        %1149 = vmatpush.msra.mxu0 0.0
        %1150 = vmatpush.msra.mxu0 %v454
        %1151 = vmatpush.msra.mxu0 %v453
        %1152 = vmatpush.msra.mxu0 %v452
        %1153 = vmatpush.msra.mxu0 %v451
        %1154 = vmatmul.f32.gmra.mxu0 %v1097
        %v1155 = vpop.f32.mrf.mxu0
        %v1156 = vadd.f32 0.0, %v1155
        %1157 = vdwg.mxu0
        %v1158 = vsub.f32 %v1156, %v1014
        %v1159 = vmul.f32 %v1137, %v1158
        %v1160 = vadd.f32 %v1014, %v1159
        %v1161 = vadd.f32 %v948, %v1014
        %v1162 = vadd.f32 %v1161, %v1095
        %v1163 = vadd.f32 %v1162, %v1160
        %v1164 = vmul.f32 %v1163, 0.25
        %s1165 = scalar_lea.vmem %s399, 2 [#allocation14]
        %1166 = vst.msk [vmem:[%s1165] sm:$0x3] %vm809, %v1164
        %1167 = vst.msk [vmem:[#allocation2] sm:$0x3] %vm809, %v1164
        %s1168 = sand.u32 %s190, 1
        %s1169 = scalar_lea.sflag [#allocation5], %s1168
        %s1170 = sand.u32 %s190, 1
        %s1171 = smul.addr %s1170, 4
        %s1172 = scalar_lea.vmem [#allocation14], %s1171
        // Predicated region
        $region73: #{tpu_custom_call.1} parent=43 // pred_check
          %p1173 = pneg %p200
        $region74: #{tpu_custom_call.1} parent=43 // pred_check_branch
          %1175 = sbr.rel (%p1173) target = $region76
        $region75: #{tpu_custom_call.1} parent=43 // pred_region
          %s1176 = smul.u32 2, %s33
          %1178 = vsyncadd %s1169, 0
          %s1179 = sadd.s32 %s32, %s1176
          %s1180 = smul.addr %s1179, 2
          %s1181 = scalar_lea.hbm %s6, %s1180
          %s1182 = sshll.u32 %s1172, 4
          %s1183 = int_to_ptr.vmem [resolvable:$true] %s1182
          %s1184 = sshll.u32 %s1181, 4
          %s1185 = int_to_ptr.hbm [resolvable:$true] %s1184
          %1190 = dma.vmem_to_hbm [thread:$0]  %s1183, 64, %s1185, %s1169, 32, 32, 2
        $region76: #{tpu_custom_call.1} parent=43 // pred_fallthru
          _
      $region44: #{tpu_custom_call.1} parent=5 // pred_fallthru
        _
      %p1191 = scmp.le.s32.totalorder 2, %s23
      // Predicated region
      $region77: #{tpu_custom_call.1} parent=5 // pred_check
        %p1192 = pneg %p1191
      $region78: #{tpu_custom_call.1} parent=5 // pred_check_branch
        %1194 = sbr.rel (%p1192) target = $region80
      $region79: #{tpu_custom_call.1} parent=5 // pred_region
        %s1195 = ssub.s32 %s23, 2
        // Predicated region
        $region81: #{tpu_custom_call.1} parent=79 // pred_check
          %p1196 = pneg %p206
        $region82: #{tpu_custom_call.1} parent=79 // pred_check_branch
          %1198 = sbr.rel (%p1196) target = $region84
        $region83: #{tpu_custom_call.1} parent=79 // pred_region
          %s1199 = sand.u32 %s191, 1
          %s1200 = scalar_lea.sflag [#allocation5], %s1199
          %s1201 = sand.u32 %s191, 1
          %s1202 = smul.addr %s1201, 4
          %s1203 = scalar_lea.vmem [#allocation14], %s1202
          %1205 = dma.done %s1200, 64
        $region84: #{tpu_custom_call.1} parent=79 // pred_fallthru
          _
      $region80: #{tpu_custom_call.1} parent=5 // pred_fallthru
        _
    $region6: #{tpu_custom_call.1} parent=1 // loop_footer
      %s27 = sadd.s32 1, %s23
    $region7: #{tpu_custom_call.1} parent=1 // loop_footer_branch
      %22 = sbr.rel target = $region3
    $region8: #{tpu_custom_call.1} parent=1 // loop_exit
      _
    %1206 = vsyncpa [#allocation4], 1
    %s1207 = scalar_lea.sflag [#allocation4], 1
    %1208 = vsyncpa %s1207, 1
    %1209 = vsyncpa [#allocation7], 1
    %s1210 = scalar_lea.sflag [#allocation7], 1
    %1211 = vsyncpa %s1210, 1
    %1212 = vsyncpa [#allocation10], 1
    %1213 = vsyncpa [#allocation13], 1
    %1214 = vsyncpa [#allocation5], 1
    %s1215 = scalar_lea.sflag [#allocation5], 1
    %1216 = vsyncpa %s1215, 1

// kernel: tpu_custom_call.1
$region0: #{tpu_custom_call.1}
  #allocation0 [shape = 'u32[]', space=smem, size = 0x4, offset = 0x4, fixed_abs, tag = 'smem constant byte address 0x4 - core index']
  #allocation1 [shape = 'u32[72,128]{1,0:T(1,128)}', space=vmem, size = 0x9000, scoped, tag = 'internal scratch']
  #allocation2 [shape = 'f32[2,32]{1,0:T(2,128)}', space=vmem, size = 0x400, scoped, tag = 'scratch operand']
  %s0 = inlined_call_operand.hbm [shape: f32[8,2,32], index: 0, kind: input, shape index: {}]
  %s1 = inlined_call_operand.hbm [shape: f32[8,2,32], index: 1, kind: input, shape index: {}]
  %s2 = inlined_call_operand.hbm [shape: f32[32,32], index: 2, kind: input, shape index: {}]
  %s3 = inlined_call_operand.hbm [shape: f32[32,32], index: 3, kind: input, shape index: {}]
  %s4 = inlined_call_operand.hbm [shape: f32[4,32,32], index: 4, kind: input, shape index: {}]
  %s5 = inlined_call_operand.hbm [shape: f32[4,32,32], index: 5, kind: input, shape index: {}]
  %s6 = inlined_call_operand.hbm [shape: f32[8,2,32], index: 6, kind: output, shape index: {}]
  %s7 = sld [smem:[#allocation0]]
  $region85: #{tpu_custom_call.1} parent=0
    _
  %s9 = ssub.s32 1, %s7
  %s10 = scalar_select 0, %s9, %s7
  $region1: #{tpu_custom_call.1} parent=0
    #allocation3 [shape = 'u8[4096]{0}', space=vmem, size = 0x1000, scoped, tag = 'input window, operand 0']
    #allocation4 [shape = 's32[2]{0}', space=sflag, size = 0x8, scoped, tag = 'scoped memory for tpu_custom_call.1']
    #allocation5 [shape = 's32[2]{0}', space=sflag, size = 0x8, scoped, tag = 'scoped memory for tpu_custom_call.1']
    #allocation6 [shape = 'u8[4096]{0}', space=vmem, size = 0x1000, scoped, tag = 'input window, operand 1']
    #allocation7 [shape = 's32[2]{0}', space=sflag, size = 0x8, scoped, tag = 'scoped memory for tpu_custom_call.1']
    #allocation8 [shape = 'u8[16384]{0}', space=vmem, size = 0x4000, scoped, tag = 'input window, operand 2, single buffered']
    #allocation9 [shape = 'u8[16384]{0}', space=vmem, size = 0x4000, scoped, tag = 'input window, operand 3, single buffered']
    #allocation10 [shape = 's32[1]{0}', space=sflag, size = 0x4, scoped, tag = 'scoped memory for tpu_custom_call.1']
    #allocation11 [shape = 'u8[65536]{0}', space=vmem, size = 0x10000, scoped, tag = 'input window, operand 4, single buffered']
    #allocation12 [shape = 'u8[65536]{0}', space=vmem, size = 0x10000, scoped, tag = 'input window, operand 5, single buffered']
    #allocation13 [shape = 's32[1]{0}', space=sflag, size = 0x4, scoped, tag = 'scoped memory for tpu_custom_call.1']
    #allocation14 [shape = 'u8[4096]{0}', space=vmem, size = 0x1000, scoped, tag = 'output window, operand 0']
    %11 = vsyncpa [#allocation4], 0
    %s12 = scalar_lea.sflag [#allocation4], 1
    %13 = vsyncpa %s12, 0
    %14 = vsyncpa [#allocation7], 0
    %s15 = scalar_lea.sflag [#allocation7], 1
    %16 = vsyncpa %s15, 0
    %17 = vsyncpa [#allocation10], 0
    %18 = vsyncpa [#allocation13], 0
    %19 = vsyncpa [#allocation5], 0
    %s20 = scalar_lea.sflag [#allocation5], 1
    %21 = vsyncpa %s20, 0
    loop: start=0, step=1, limit=6
    $region2: #{tpu_custom_call.1} parent=1 // loop_pre_header
      _
    $region3: #{tpu_custom_call.1} parent=1 // loop_header
      %s23 = sphi 0, %s27
      %p24 = scmp.ge.s32.totalorder %s23, 6
      %s30 = sphi 0, %s42
      %s31 = sphi 0, %s38
      %s32 = sphi 0, %s30
      %s33 = sphi 0, %s31
      %s34 = sphi 0, %s32
      %s35 = sphi 0, %s33
      %s47 = sphi 0, %s49
      %s50 = sphi 0, %s47
      %s51 = sphi 0, %s50
      %s67 = sphi 0, %s51
      %s75 = sphi 0, %s77
      %s78 = sphi 0, %s75
      %s79 = sphi 0, %s78
      %s95 = sphi 0, %s79
      %s99 = sphi 0, %s99
      %s101 = sphi 0, %s99
      %s102 = sphi 0, %s101
      %s116 = sphi 0, %s102
      %s120 = sphi 0, %s120
      %s122 = sphi 0, %s120
      %s123 = sphi 0, %s122
      %s137 = sphi 0, %s123
      %s141 = sphi 0, %s141
      %s143 = sphi 0, %s141
      %s144 = sphi 0, %s143
      %s158 = sphi 0, %s144
      %s162 = sphi 0, %s162
      %s164 = sphi 0, %s162
      %s165 = sphi 0, %s164
      %s179 = sphi 0, %s165
      %s187 = sphi 0, %s189
      %s190 = sphi 0, %s187
      %s191 = sphi 0, %s190
      %s207 = sphi 0, %s191
    $region4: #{tpu_custom_call.1} parent=1 // loop_header_branch
      %26 = sbr.rel (%p24) target = $region8
    $region5: #{tpu_custom_call.1} parent=1 // loop_body
      %s28 = ssub.s32 %s23, 1
      %s29 = ssub.s32 %s23, 2
      %s36 = sadd.s32 1, %s31
      %p37 = scmp.ge.s32.totalorder %s36, 4
      %s38 = scalar_select %p37, 0, %s36
      %s39 = sadd.s32 1, %s30
      %s40 = scalar_select %p37, %s39, %s30
      %p41 = scmp.ge.s32.totalorder %s40, 1
      %s42 = scalar_select %p41, 0, %s40
      %s43 = ssub.s32 %s31, %s38
      %s44 = ssub.s32 %s30, %s42
      %s45 = sor.u32 %s43, %s44
      %p46 = scmp.eq.s32.totalorder %s45, 0
      %s48 = sadd.s32 %s47, 1
      %s49 = scalar_select %p46, %s47, %s48
      %p52 = pneg %p46
      %p53 = scmp.eq.s32.totalorder %s23, 3
      %p54 = por %p52, %p53
      %p55 = scmp.ne.s32.totalorder %s47, %s50
      %p56 = scmp.eq.s32.totalorder %s23, 0
      %p57 = por %p55, %p56
      %p58 = scmp.ne.s32.totalorder %s47, %s50
      %p59 = scmp.eq.s32.totalorder %s28, 3
      %p60 = por %p58, %p59
      %p61 = scmp.ne.s32.totalorder %s50, %s51
      %p62 = scmp.eq.s32.totalorder %s28, 0
      %p63 = por %p61, %p62
      %p64 = scmp.ne.s32.totalorder %s50, %s51
      %p65 = scmp.eq.s32.totalorder %s29, 3
      %p66 = por %p64, %p65
      %p68 = scmp.ne.s32.totalorder %s51, %s67
      %p69 = scmp.eq.s32.totalorder %s29, 0
      %p70 = por %p68, %p69
      %s71 = ssub.s32 %s31, %s38
      %s72 = ssub.s32 %s30, %s42
      %s73 = sor.u32 %s71, %s72
      %p74 = scmp.eq.s32.totalorder %s73, 0
      %s76 = sadd.s32 %s75, 1
      %s77 = scalar_select %p74, %s75, %s76
      %p80 = pneg %p74
      %p81 = scmp.eq.s32.totalorder %s23, 3
      %p82 = por %p80, %p81
      %p83 = scmp.ne.s32.totalorder %s75, %s78
      %p84 = scmp.eq.s32.totalorder %s23, 0
      %p85 = por %p83, %p84
      %p86 = scmp.ne.s32.totalorder %s75, %s78
      %p87 = scmp.eq.s32.totalorder %s28, 3
      %p88 = por %p86, %p87
      %p89 = scmp.ne.s32.totalorder %s78, %s79
      %p90 = scmp.eq.s32.totalorder %s28, 0
      %p91 = por %p89, %p90
      %p92 = scmp.ne.s32.totalorder %s78, %s79
      %p93 = scmp.eq.s32.totalorder %s29, 3
      %p94 = por %p92, %p93
      %p96 = scmp.ne.s32.totalorder %s79, %s95
      %p97 = scmp.eq.s32.totalorder %s29, 0
      %p98 = por %p96, %p97
      %s100 = sadd.s32 %s99, 1
      %p103 = scmp.eq.s32.totalorder %s23, 3
      %p104 = scmp.ne.s32.totalorder %s99, %s101
      %p105 = scmp.eq.s32.totalorder %s23, 0
      %p106 = por %p104, %p105
      %p107 = scmp.ne.s32.totalorder %s99, %s101
      %p108 = scmp.eq.s32.totalorder %s28, 3
      %p109 = por %p107, %p108
      %p110 = scmp.ne.s32.totalorder %s101, %s102
      %p111 = scmp.eq.s32.totalorder %s28, 0
      %p112 = por %p110, %p111
      %p113 = scmp.ne.s32.totalorder %s101, %s102
      %p114 = scmp.eq.s32.totalorder %s29, 3
      %p115 = por %p113, %p114
      %p117 = scmp.ne.s32.totalorder %s102, %s116
      %p118 = scmp.eq.s32.totalorder %s29, 0
      %p119 = por %p117, %p118
      %s121 = sadd.s32 %s120, 1
      %p124 = scmp.eq.s32.totalorder %s23, 3
      %p125 = scmp.ne.s32.totalorder %s120, %s122
      %p126 = scmp.eq.s32.totalorder %s23, 0
      %p127 = por %p125, %p126
      %p128 = scmp.ne.s32.totalorder %s120, %s122
      %p129 = scmp.eq.s32.totalorder %s28, 3
      %p130 = por %p128, %p129
      %p131 = scmp.ne.s32.totalorder %s122, %s123
      %p132 = scmp.eq.s32.totalorder %s28, 0
      %p133 = por %p131, %p132
      %p134 = scmp.ne.s32.totalorder %s122, %s123
      %p135 = scmp.eq.s32.totalorder %s29, 3
      %p136 = por %p134, %p135
      %p138 = scmp.ne.s32.totalorder %s123, %s137
      %p139 = scmp.eq.s32.totalorder %s29, 0
      %p140 = por %p138, %p139
      %s142 = sadd.s32 %s141, 1
      %p145 = scmp.eq.s32.totalorder %s23, 3
      %p146 = scmp.ne.s32.totalorder %s141, %s143
      %p147 = scmp.eq.s32.totalorder %s23, 0
      %p148 = por %p146, %p147
      %p149 = scmp.ne.s32.totalorder %s141, %s143
      %p150 = scmp.eq.s32.totalorder %s28, 3
      %p151 = por %p149, %p150
      %p152 = scmp.ne.s32.totalorder %s143, %s144
      %p153 = scmp.eq.s32.totalorder %s28, 0
      %p154 = por %p152, %p153
      %p155 = scmp.ne.s32.totalorder %s143, %s144
      %p156 = scmp.eq.s32.totalorder %s29, 3
      %p157 = por %p155, %p156
      %p159 = scmp.ne.s32.totalorder %s144, %s158
      %p160 = scmp.eq.s32.totalorder %s29, 0
      %p161 = por %p159, %p160
      %s163 = sadd.s32 %s162, 1
      %p166 = scmp.eq.s32.totalorder %s23, 3
      %p167 = scmp.ne.s32.totalorder %s162, %s164
      %p168 = scmp.eq.s32.totalorder %s23, 0
      %p169 = por %p167, %p168
      %p170 = scmp.ne.s32.totalorder %s162, %s164
      %p171 = scmp.eq.s32.totalorder %s28, 3
      %p172 = por %p170, %p171
      %p173 = scmp.ne.s32.totalorder %s164, %s165
      %p174 = scmp.eq.s32.totalorder %s28, 0
      %p175 = por %p173, %p174
      %p176 = scmp.ne.s32.totalorder %s164, %s165
      %p177 = scmp.eq.s32.totalorder %s29, 3
      %p178 = por %p176, %p177
      %p180 = scmp.ne.s32.totalorder %s165, %s179
      %p181 = scmp.eq.s32.totalorder %s29, 0
      %p182 = por %p180, %p181
      %s183 = ssub.s32 %s31, %s38
      %s184 = ssub.s32 %s30, %s42
      %s185 = sor.u32 %s183, %s184
      %p186 = scmp.eq.s32.totalorder %s185, 0
      %s188 = sadd.s32 %s187, 1
      %s189 = scalar_select %p186, %s187, %s188
      %p192 = pneg %p186
      %p193 = scmp.eq.s32.totalorder %s23, 3
      %p194 = por %p192, %p193
      %p195 = scmp.ne.s32.totalorder %s187, %s190
      %p196 = scmp.eq.s32.totalorder %s23, 0
      %p197 = por %p195, %p196
      %p198 = scmp.ne.s32.totalorder %s187, %s190
      %p199 = scmp.eq.s32.totalorder %s28, 3
      %p200 = por %p198, %p199
      %p201 = scmp.ne.s32.totalorder %s190, %s191
      %p202 = scmp.eq.s32.totalorder %s28, 0
      %p203 = por %p201, %p202
      %p204 = scmp.ne.s32.totalorder %s190, %s191
      %p205 = scmp.eq.s32.totalorder %s29, 3
      %p206 = por %p204, %p205
      %p208 = scmp.ne.s32.totalorder %s191, %s207
      %p209 = scmp.eq.s32.totalorder %s29, 0
      %p210 = por %p208, %p209
      %p211 = scmp.le.s32.totalorder 1, %s23
      %p212 = scmp.lt.s32.totalorder %s23, 5
      %p213 = pnand %p211, %p212
      %p214 = pneg %p213
      // Predicated region
      $region9: #{tpu_custom_call.1} parent=5 // pred_check
        _
      $region10: #{tpu_custom_call.1} parent=5 // pred_check_branch
        %216 = sbr.rel (%p213) target = $region12
      $region11: #{tpu_custom_call.1} parent=5 // pred_region
        %s217 = ssub.s32 %s23, 1
        // Predicated region
        $region13: #{tpu_custom_call.1} parent=11 // pred_check
          %p218 = pneg %p112
        $region14: #{tpu_custom_call.1} parent=11 // pred_check_branch
          %220 = sbr.rel (%p218) target = $region16
        $region15: #{tpu_custom_call.1} parent=11 // pred_region
          %222 = vsyncadd [#allocation7], 0
          %s223 = sshll.u32 %s2, 4
          %s224 = int_to_ptr.hbm [resolvable:$true] %s223
          %s225 = sshll.u32 [#allocation8], 4
          %s226 = int_to_ptr.vmem [resolvable:$true] %s225
          %231 = dma.hbm_to_vmem [thread:$0]  %s224, 512, %s226, [#allocation7], 128, 128, 8
        $region16: #{tpu_custom_call.1} parent=11 // pred_fallthru
          _
        // Predicated region
        $region17: #{tpu_custom_call.1} parent=11 // pred_check
          %p232 = pneg %p133
        $region18: #{tpu_custom_call.1} parent=11 // pred_check_branch
          %234 = sbr.rel (%p232) target = $region20
        $region19: #{tpu_custom_call.1} parent=11 // pred_region
          %236 = vsyncadd [#allocation10], 0
          %s237 = sshll.u32 %s3, 4
          %s238 = int_to_ptr.hbm [resolvable:$true] %s237
          %s239 = sshll.u32 [#allocation9], 4
          %s240 = int_to_ptr.vmem [resolvable:$true] %s239
          %245 = dma.hbm_to_vmem [thread:$0]  %s238, 512, %s240, [#allocation10], 128, 128, 8
        $region20: #{tpu_custom_call.1} parent=11 // pred_fallthru
          _
        // Predicated region
        $region21: #{tpu_custom_call.1} parent=11 // pred_check
          %p246 = pneg %p154
        $region22: #{tpu_custom_call.1} parent=11 // pred_check_branch
          %248 = sbr.rel (%p246) target = $region24
        $region23: #{tpu_custom_call.1} parent=11 // pred_region
          %250 = vsyncadd [#allocation10], 0
          %s251 = sshll.u32 %s4, 4
          %s252 = int_to_ptr.hbm [resolvable:$true] %s251
          %s253 = sshll.u32 [#allocation11], 4
          %s254 = int_to_ptr.vmem [resolvable:$true] %s253
          %259 = dma.hbm_to_vmem [thread:$0]  %s252, 2048, %s254, [#allocation10], 128, 128, 8
        $region24: #{tpu_custom_call.1} parent=11 // pred_fallthru
          _
        // Predicated region
        $region25: #{tpu_custom_call.1} parent=11 // pred_check
          %p260 = pneg %p175
        $region26: #{tpu_custom_call.1} parent=11 // pred_check_branch
          %262 = sbr.rel (%p260) target = $region28
        $region27: #{tpu_custom_call.1} parent=11 // pred_region
          %264 = vsyncadd [#allocation13], 0
          %s265 = sshll.u32 %s5, 4
          %s266 = int_to_ptr.hbm [resolvable:$true] %s265
          %s267 = sshll.u32 [#allocation12], 4
          %s268 = int_to_ptr.vmem [resolvable:$true] %s267
          %273 = dma.hbm_to_vmem [thread:$0]  %s266, 2048, %s268, [#allocation13], 128, 128, 8
        $region28: #{tpu_custom_call.1} parent=11 // pred_fallthru
          _
      $region12: #{tpu_custom_call.1} parent=5 // pred_fallthru
        _
      %p274 = scmp.lt.s32.totalorder %s23, 4
      // Predicated region
      $region29: #{tpu_custom_call.1} parent=5 // pred_check
        %p275 = pneg %p274
      $region30: #{tpu_custom_call.1} parent=5 // pred_check_branch
        %277 = sbr.rel (%p275) target = $region32
      $region31: #{tpu_custom_call.1} parent=5 // pred_region
        // Predicated region
        $region33: #{tpu_custom_call.1} parent=31 // pred_check
          %p278 = pneg %p57
        $region34: #{tpu_custom_call.1} parent=31 // pred_check_branch
          %280 = sbr.rel (%p278) target = $region36
        $region35: #{tpu_custom_call.1} parent=31 // pred_region
          %s281 = sand.u32 %s47, 1
          %s282 = scalar_lea.sflag [#allocation4], %s281
          %s283 = sand.u32 %s47, 1
          %s284 = smul.addr %s283, 4
          %s285 = scalar_lea.vmem [#allocation3], %s284
          %s286 = smul.u32 2, %s31
          %288 = vsyncadd %s282, 0
          %s289 = sadd.s32 %s30, %s286
          %s290 = smul.addr %s289, 2
          %s291 = scalar_lea.hbm %s0, %s290
          %s292 = sshll.u32 %s291, 4
          %s293 = int_to_ptr.hbm [resolvable:$true] %s292
          %s294 = sshll.u32 %s285, 4
          %s295 = int_to_ptr.vmem [resolvable:$true] %s294
          %300 = dma.hbm_to_vmem [thread:$0]  %s293, 64, %s295, %s282, 32, 32, 2
        $region36: #{tpu_custom_call.1} parent=31 // pred_fallthru
          _
        // Predicated region
        $region37: #{tpu_custom_call.1} parent=31 // pred_check
          %p301 = pneg %p85
        $region38: #{tpu_custom_call.1} parent=31 // pred_check_branch
          %303 = sbr.rel (%p301) target = $region40
        $region39: #{tpu_custom_call.1} parent=31 // pred_region
          %s304 = sand.u32 %s23, 1
          %s305 = scalar_lea.sflag [#allocation7], %s304
          %s306 = sand.u32 %s75, 1
          %s307 = smul.addr %s306, 4
          %s308 = scalar_lea.vmem [#allocation6], %s307
          %s309 = smul.u32 2, %s31
          %311 = vsyncadd %s305, 0
          %s312 = sadd.s32 %s30, %s309
          %s313 = smul.addr %s312, 2
          %s314 = scalar_lea.hbm %s1, %s313
          %s315 = sshll.u32 %s314, 4
          %s316 = int_to_ptr.hbm [resolvable:$true] %s315
          %s317 = sshll.u32 %s308, 4
          %s318 = int_to_ptr.vmem [resolvable:$true] %s317
          %323 = dma.hbm_to_vmem [thread:$0]  %s316, 64, %s318, %s305, 32, 32, 2
        $region40: #{tpu_custom_call.1} parent=31 // pred_fallthru
          _
      $region32: #{tpu_custom_call.1} parent=5 // pred_fallthru
        _
      %p324 = scmp.le.s32.totalorder 1, %s23
      %p325 = scmp.lt.s32.totalorder %s23, 5
      %p326 = pnand %p324, %p325
      %p327 = pneg %p326
      // Predicated region
      $region41: #{tpu_custom_call.1} parent=5 // pred_check
        _
      $region42: #{tpu_custom_call.1} parent=5 // pred_check_branch
        %329 = sbr.rel (%p326) target = $region44
      $region43: #{tpu_custom_call.1} parent=5 // pred_region
        %s330 = ssub.s32 %s23, 1
        %s331 = sand.u32 %s50, 1
        %s332 = scalar_lea.sflag [#allocation4], %s331
        %s333 = sand.u32 %s50, 1
        %s334 = smul.addr %s333, 4
        %s335 = scalar_lea.vmem [#allocation3], %s334
        // Predicated region
        $region45: #{tpu_custom_call.1} parent=43 // pred_check
          %p336 = pneg %p63
        $region46: #{tpu_custom_call.1} parent=43 // pred_check_branch
          %338 = sbr.rel (%p336) target = $region48
        $region47: #{tpu_custom_call.1} parent=43 // pred_region
          %340 = dma.done %s332, 64
        $region48: #{tpu_custom_call.1} parent=43 // pred_fallthru
          _
        %s341 = sand.u32 %s28, 1
        %s342 = scalar_lea.sflag [#allocation7], %s341
        %s343 = sand.u32 %s78, 1
        %s344 = smul.addr %s343, 4
        %s345 = scalar_lea.vmem [#allocation6], %s344
        // Predicated region
        $region49: #{tpu_custom_call.1} parent=43 // pred_check
          %p346 = pneg %p91
        $region50: #{tpu_custom_call.1} parent=43 // pred_check_branch
          %348 = sbr.rel (%p346) target = $region52
        $region51: #{tpu_custom_call.1} parent=43 // pred_region
          %350 = dma.done %s342, 64
        $region52: #{tpu_custom_call.1} parent=43 // pred_fallthru
          _
        // Predicated region
        $region53: #{tpu_custom_call.1} parent=43 // pred_check
          %p351 = pneg %p112
        $region54: #{tpu_custom_call.1} parent=43 // pred_check_branch
          %353 = sbr.rel (%p351) target = $region56
        $region55: #{tpu_custom_call.1} parent=43 // pred_region
          %355 = dma.done [#allocation7], 512
        $region56: #{tpu_custom_call.1} parent=43 // pred_fallthru
          _
        // Predicated region
        $region57: #{tpu_custom_call.1} parent=43 // pred_check
          %p356 = pneg %p133
        $region58: #{tpu_custom_call.1} parent=43 // pred_check_branch
          %358 = sbr.rel (%p356) target = $region60
        $region59: #{tpu_custom_call.1} parent=43 // pred_region
          %360 = dma.done [#allocation10], 512
        $region60: #{tpu_custom_call.1} parent=43 // pred_fallthru
          _
        // Predicated region
        $region61: #{tpu_custom_call.1} parent=43 // pred_check
          %p361 = pneg %p154
        $region62: #{tpu_custom_call.1} parent=43 // pred_check_branch
          %363 = sbr.rel (%p361) target = $region64
        $region63: #{tpu_custom_call.1} parent=43 // pred_region
          %365 = dma.done [#allocation10], 2048
        $region64: #{tpu_custom_call.1} parent=43 // pred_fallthru
          _
        // Predicated region
        $region65: #{tpu_custom_call.1} parent=43 // pred_check
          %p366 = pneg %p175
        $region66: #{tpu_custom_call.1} parent=43 // pred_check_branch
          %368 = sbr.rel (%p366) target = $region68
        $region67: #{tpu_custom_call.1} parent=43 // pred_region
          %370 = dma.done [#allocation13], 2048
        $region68: #{tpu_custom_call.1} parent=43 // pred_fallthru
          _
        %s371 = sand.u32 %s50, 1
        %s372 = scalar_lea.sflag [#allocation4], %s371
        %s373 = sand.u32 %s50, 1
        %s374 = smul.addr %s373, 4
        %s375 = scalar_lea.vmem [#allocation3], %s374
        %p376 = pneg %p63
        %p377 = pneg %p60
        %s378 = sand.u32 %s28, 1
        %s379 = scalar_lea.sflag [#allocation7], %s378
        %s380 = sand.u32 %s78, 1
        %s381 = smul.addr %s380, 4
        %s382 = scalar_lea.vmem [#allocation6], %s381
        %p383 = pneg %p91
        %p384 = pneg %p88
        %p385 = pneg %p112
        %p386 = pneg %p109
        %p387 = pneg %p133
        %p388 = pneg %p130
        %p389 = pneg %p154
        %p390 = pneg %p151
        %p391 = pneg %p175
        %p392 = pneg %p172
        %p393 = pneg %p203
        %p394 = pneg %p200
        %s395 = sand.u32 %s190, 1
        %s396 = scalar_lea.sflag [#allocation5], %s395
        %s397 = sand.u32 %s190, 1
        %s398 = smul.addr %s397, 4
        %s399 = scalar_lea.vmem [#allocation14], %s398
        %s400 = smul.u32 2, %s33
        %s401 = smul.u32 2, %s33
        %s402 = smul.u32 2, %s33
        %p403 = scmp.eq.s32.totalorder %s33, 0
        // Predicated region
        $region69: #{tpu_custom_call.1} parent=43 // pred_check
          %p404 = pneg %p403
        $region70: #{tpu_custom_call.1} parent=43 // pred_check_branch
          %406 = sbr.rel (%p404) target = $region72
        $region71: #{tpu_custom_call.1} parent=43 // pred_region
          %vm407 = vcmask 254976
          %408 = vst.msk [vmem:[#allocation2] sm:$0x3] %vm407, 0.0
        $region72: #{tpu_custom_call.1} parent=43 // pred_fallthru
          _
        %v409 = vld [vmem:[#allocation8] sm:$0xff]
        %v410 = vld [vmem:[#allocation8 + $0x8] sm:$0xff]
        %v411 = vld [vmem:[#allocation8 + $0x10] sm:$0xff]
        %v412 = vld [vmem:[#allocation8 + $0x18] sm:$0xff]
        %v413 = vld [vmem:[#allocation9] sm:$0xff]
        %v414 = vld [vmem:[#allocation9 + $0x8] sm:$0xff]
        %v415 = vld [vmem:[#allocation9 + $0x10] sm:$0xff]
        %v416 = vld [vmem:[#allocation9 + $0x18] sm:$0xff]
        %v417 = vld [vmem:[#allocation11] sm:$0xff]
        %v418 = vld [vmem:[#allocation11 + $0x8] sm:$0xff]
        %v419 = vld [vmem:[#allocation11 + $0x10] sm:$0xff]
        %v420 = vld [vmem:[#allocation11 + $0x18] sm:$0xff]
        %s421 = scalar_lea.vmem [#allocation11], 32
        %v422 = vld [vmem:[%s421] sm:$0xff]
        %v423 = vld [vmem:[%s421 + $0x8] sm:$0xff]
        %v424 = vld [vmem:[%s421 + $0x10] sm:$0xff]
        %v425 = vld [vmem:[%s421 + $0x18] sm:$0xff]
        %s426 = scalar_lea.vmem [#allocation11], 64
        %v427 = vld [vmem:[%s426] sm:$0xff]
        %v428 = vld [vmem:[%s426 + $0x8] sm:$0xff]
        %v429 = vld [vmem:[%s426 + $0x10] sm:$0xff]
        %v430 = vld [vmem:[%s426 + $0x18] sm:$0xff]
        %s431 = scalar_lea.vmem [#allocation11], 96
        %v432 = vld [vmem:[%s431] sm:$0xff]
        %v433 = vld [vmem:[%s431 + $0x8] sm:$0xff]
        %v434 = vld [vmem:[%s431 + $0x10] sm:$0xff]
        %v435 = vld [vmem:[%s431 + $0x18] sm:$0xff]
        %v436 = vld [vmem:[#allocation12] sm:$0xff]
        %v437 = vld [vmem:[#allocation12 + $0x8] sm:$0xff]
        %v438 = vld [vmem:[#allocation12 + $0x10] sm:$0xff]
        %v439 = vld [vmem:[#allocation12 + $0x18] sm:$0xff]
        %s440 = scalar_lea.vmem [#allocation12], 32
        %v441 = vld [vmem:[%s440] sm:$0xff]
        %v442 = vld [vmem:[%s440 + $0x8] sm:$0xff]
        %v443 = vld [vmem:[%s440 + $0x10] sm:$0xff]
        %v444 = vld [vmem:[%s440 + $0x18] sm:$0xff]
        %s445 = scalar_lea.vmem [#allocation12], 64
        %v446 = vld [vmem:[%s445] sm:$0xff]
        %v447 = vld [vmem:[%s445 + $0x8] sm:$0xff]
        %v448 = vld [vmem:[%s445 + $0x10] sm:$0xff]
        %v449 = vld [vmem:[%s445 + $0x18] sm:$0xff]
        %s450 = scalar_lea.vmem [#allocation12], 96
        %v451 = vld [vmem:[%s450] sm:$0xff]
        %v452 = vld [vmem:[%s450 + $0x8] sm:$0xff]
        %v453 = vld [vmem:[%s450 + $0x10] sm:$0xff]
        %v454 = vld [vmem:[%s450 + $0x18] sm:$0xff]
        %v455 = vld [vmem:[#allocation2] sm:$0x3]
        %v456 = vld [vmem:[%s335] sm:$0x3]
        %vm457 = vcmask 261120
        %v459 = vsel %vm457, %v455, 0
        %461 = vmatpush.msra.mxu0 0.0
        %462 = vmatpush.msra.mxu0 0.0
        %463 = vmatpush.msra.mxu0 0.0
        %464 = vmatpush.msra.mxu0 0.0
        %465 = vmatpush.msra.mxu0 0.0
        %466 = vmatpush.msra.mxu0 0.0
        %467 = vmatpush.msra.mxu0 0.0
        %468 = vmatpush.msra.mxu0 0.0
        %469 = vmatpush.msra.mxu0 0.0
        %470 = vmatpush.msra.mxu0 0.0
        %471 = vmatpush.msra.mxu0 0.0
        %472 = vmatpush.msra.mxu0 0.0
        %473 = vmatpush.msra.mxu0 %v412
        %474 = vmatpush.msra.mxu0 %v411
        %475 = vmatpush.msra.mxu0 %v410
        %476 = vmatpush.msra.mxu0 %v409
        %477 = vmatmul.f32.gmra.mxu0 %v459
        %v478 = vpop.f32.mrf.mxu0
        %v479 = vadd.f32 0.0, %v478
        %480 = vdwg.mxu0
        %v481 = vadd.f32 %v456, %v479
        %v482 = vld [vmem:[%s345] sm:$0x3]
        %483 = vmatpush.msra.mxu0 0.0
        %484 = vmatpush.msra.mxu0 0.0
        %485 = vmatpush.msra.mxu0 0.0
        %486 = vmatpush.msra.mxu0 0.0
        %487 = vmatpush.msra.mxu0 0.0
        %488 = vmatpush.msra.mxu0 0.0
        %489 = vmatpush.msra.mxu0 0.0
        %490 = vmatpush.msra.mxu0 0.0
        %491 = vmatpush.msra.mxu0 0.0
        %492 = vmatpush.msra.mxu0 0.0
        %493 = vmatpush.msra.mxu0 0.0
        %494 = vmatpush.msra.mxu0 0.0
        %495 = vmatpush.msra.mxu0 %v416
        %496 = vmatpush.msra.mxu0 %v415
        %497 = vmatpush.msra.mxu0 %v414
        %498 = vmatpush.msra.mxu0 %v413
        %499 = vmatmul.f32.gmra.mxu0 %v459
        %v500 = vpop.f32.mrf.mxu0
        %v501 = vadd.f32 0.0, %v500
        %502 = vdwg.mxu0
        %v503 = vadd.f32 %v482, %v501
        %v504 = vxor.u32 %v481, 2147483648
        %v505 = vmul.f32 %v504, 1.442695
        %v506 = vpow.pop %v505
        %v507 = vadd.f32 %v506, 1.0
        %v508 = vrcp.pop %v507
        %v509 = vmul.f32 %v507, %v508
        %v510 = vsub.f32 1.0, %v509
        %v511 = vmul.f32 %v508, %v510
        %v512 = vadd.f32 %v508, %v511
        %vm513 = vweird.f32 %v507
        %vm514 = vweird.f32 %v508
        %vm515 = vmor %vm513, %vm514
        %v516 = vsel %vm515, %v508, %v512
        %v517 = vand.u32 2147483647, %v507
        %vm518 = vcmp.eq.f32.partialorder %v517, 8.507059e+37
        %v519 = vand.u32 %v507, 2147483648
        %v520 = vor.u32 1.1754944e-38, %v519
        %v521 = vsel %vm518, %v520, %v516
        %v522 = vmul.f32 1.0, %v521
        %v523 = vtanh.pop %v503
        %v524 = vsub.f32 %v523, %v455
        %v525 = vmul.f32 %v522, %v524
        %v526 = vadd.f32 %v455, %v525
        %v528 = vsel %vm457, %v526, 0
        %530 = vmatpush.msra.mxu0 0.0
        %531 = vmatpush.msra.mxu0 0.0
        %532 = vmatpush.msra.mxu0 0.0
        %533 = vmatpush.msra.mxu0 0.0
        %534 = vmatpush.msra.mxu0 0.0
        %535 = vmatpush.msra.mxu0 0.0
        %536 = vmatpush.msra.mxu0 0.0
        %537 = vmatpush.msra.mxu0 0.0
        %538 = vmatpush.msra.mxu0 0.0
        %539 = vmatpush.msra.mxu0 0.0
        %540 = vmatpush.msra.mxu0 0.0
        %541 = vmatpush.msra.mxu0 0.0
        %542 = vmatpush.msra.mxu0 %v420
        %543 = vmatpush.msra.mxu0 %v419
        %544 = vmatpush.msra.mxu0 %v418
        %545 = vmatpush.msra.mxu0 %v417
        %546 = vmatmul.f32.gmra.mxu0 %v528
        %v547 = vpop.f32.mrf.mxu0
        %v548 = vadd.f32 0.0, %v547
        %549 = vdwg.mxu0
        %v550 = vxor.u32 %v548, 2147483648
        %v551 = vmul.f32 %v550, 1.442695
        %v552 = vpow.pop %v551
        %v553 = vadd.f32 %v552, 1.0
        %v554 = vrcp.pop %v553
        %v555 = vmul.f32 %v553, %v554
        %v556 = vsub.f32 1.0, %v555
        %v557 = vmul.f32 %v554, %v556
        %v558 = vadd.f32 %v554, %v557
        %vm559 = vweird.f32 %v553
        %vm560 = vweird.f32 %v554
        %vm561 = vmor %vm559, %vm560
        %v562 = vsel %vm561, %v554, %v558
        %v563 = vand.u32 2147483647, %v553
        %vm564 = vcmp.eq.f32.partialorder %v563, 8.507059e+37
        %v565 = vand.u32 %v553, 2147483648
        %v566 = vor.u32 1.1754944e-38, %v565
        %v567 = vsel %vm564, %v566, %v562
        %v568 = vmul.f32 1.0, %v567
        %569 = vmatpush.msra.mxu0 0.0
        %570 = vmatpush.msra.mxu0 0.0
        %571 = vmatpush.msra.mxu0 0.0
        %572 = vmatpush.msra.mxu0 0.0
        %573 = vmatpush.msra.mxu0 0.0
        %574 = vmatpush.msra.mxu0 0.0
        %575 = vmatpush.msra.mxu0 0.0
        %576 = vmatpush.msra.mxu0 0.0
        %577 = vmatpush.msra.mxu0 0.0
        %578 = vmatpush.msra.mxu0 0.0
        %579 = vmatpush.msra.mxu0 0.0
        %580 = vmatpush.msra.mxu0 0.0
        %581 = vmatpush.msra.mxu0 %v439
        %582 = vmatpush.msra.mxu0 %v438
        %583 = vmatpush.msra.mxu0 %v437
        %584 = vmatpush.msra.mxu0 %v436
        %585 = vmatmul.f32.gmra.mxu0 %v528
        %v586 = vpop.f32.mrf.mxu0
        %v587 = vadd.f32 0.0, %v586
        %588 = vdwg.mxu0
        %v589 = vmax.f32 %v587, 0.0
        %v590 = vsub.f32 %v589, %v526
        %v591 = vmul.f32 %v568, %v590
        %v592 = vadd.f32 %v526, %v591
        %v594 = vsel %vm457, %v592, 0
        %596 = vmatpush.msra.mxu0 0.0
        %597 = vmatpush.msra.mxu0 0.0
        %598 = vmatpush.msra.mxu0 0.0
        %599 = vmatpush.msra.mxu0 0.0
        %600 = vmatpush.msra.mxu0 0.0
        %601 = vmatpush.msra.mxu0 0.0
        %602 = vmatpush.msra.mxu0 0.0
        %603 = vmatpush.msra.mxu0 0.0
        %604 = vmatpush.msra.mxu0 0.0
        %605 = vmatpush.msra.mxu0 0.0
        %606 = vmatpush.msra.mxu0 0.0
        %607 = vmatpush.msra.mxu0 0.0
        %608 = vmatpush.msra.mxu0 %v425
        %609 = vmatpush.msra.mxu0 %v424
        %610 = vmatpush.msra.mxu0 %v423
        %611 = vmatpush.msra.mxu0 %v422
        %612 = vmatmul.f32.gmra.mxu0 %v594
        %v613 = vpop.f32.mrf.mxu0
        %v614 = vadd.f32 0.0, %v613
        %615 = vdwg.mxu0
        %v616 = vxor.u32 %v614, 2147483648
        %v617 = vmul.f32 %v616, 1.442695
        %v618 = vpow.pop %v617
        %v619 = vadd.f32 %v618, 1.0
        %v620 = vrcp.pop %v619
        %v621 = vmul.f32 %v619, %v620
        %v622 = vsub.f32 1.0, %v621
        %v623 = vmul.f32 %v620, %v622
        %v624 = vadd.f32 %v620, %v623
        %vm625 = vweird.f32 %v619
        %vm626 = vweird.f32 %v620
        %vm627 = vmor %vm625, %vm626
        %v628 = vsel %vm627, %v620, %v624
        %v629 = vand.u32 2147483647, %v619
        %vm630 = vcmp.eq.f32.partialorder %v629, 8.507059e+37
        %v631 = vand.u32 %v619, 2147483648
        %v632 = vor.u32 1.1754944e-38, %v631
        %v633 = vsel %vm630, %v632, %v628
        %v634 = vmul.f32 1.0, %v633
        %635 = vmatpush.msra.mxu0 0.0
        %636 = vmatpush.msra.mxu0 0.0
        %637 = vmatpush.msra.mxu0 0.0
        %638 = vmatpush.msra.mxu0 0.0
        %639 = vmatpush.msra.mxu0 0.0
        %640 = vmatpush.msra.mxu0 0.0
        %641 = vmatpush.msra.mxu0 0.0
        %642 = vmatpush.msra.mxu0 0.0
        %643 = vmatpush.msra.mxu0 0.0
        %644 = vmatpush.msra.mxu0 0.0
        %645 = vmatpush.msra.mxu0 0.0
        %646 = vmatpush.msra.mxu0 0.0
        %647 = vmatpush.msra.mxu0 %v444
        %648 = vmatpush.msra.mxu0 %v443
        %649 = vmatpush.msra.mxu0 %v442
        %650 = vmatpush.msra.mxu0 %v441
        %651 = vmatmul.f32.gmra.mxu0 %v594
        %v652 = vpop.f32.mrf.mxu0
        %v653 = vadd.f32 0.0, %v652
        %654 = vdwg.mxu0
        %v655 = vtanh.pop %v653
        %v656 = vsub.f32 %v655, %v592
        %v657 = vmul.f32 %v634, %v656
        %v658 = vadd.f32 %v592, %v657
        %659 = vmatpush.msra.mxu0 0.0
        %660 = vmatpush.msra.mxu0 0.0
        %661 = vmatpush.msra.mxu0 0.0
        %662 = vmatpush.msra.mxu0 0.0
        %663 = vmatpush.msra.mxu0 0.0
        %664 = vmatpush.msra.mxu0 0.0
        %665 = vmatpush.msra.mxu0 0.0
        %666 = vmatpush.msra.mxu0 0.0
        %667 = vmatpush.msra.mxu0 0.0
        %668 = vmatpush.msra.mxu0 0.0
        %669 = vmatpush.msra.mxu0 0.0
        %670 = vmatpush.msra.mxu0 0.0
        %671 = vmatpush.msra.mxu0 %v430
        %672 = vmatpush.msra.mxu0 %v429
        %673 = vmatpush.msra.mxu0 %v428
        %674 = vmatpush.msra.mxu0 %v427
        %675 = vmatmul.f32.gmra.mxu0 %v594
        %v676 = vpop.f32.mrf.mxu0
        %v677 = vadd.f32 0.0, %v676
        %678 = vdwg.mxu0
        %v679 = vxor.u32 %v677, 2147483648
        %v680 = vmul.f32 %v679, 1.442695
        %v681 = vpow.pop %v680
        %v682 = vadd.f32 %v681, 1.0
        %v683 = vrcp.pop %v682
        %v684 = vmul.f32 %v682, %v683
        %v685 = vsub.f32 1.0, %v684
        %v686 = vmul.f32 %v683, %v685
        %v687 = vadd.f32 %v683, %v686
        %vm688 = vweird.f32 %v682
        %vm689 = vweird.f32 %v683
        %vm690 = vmor %vm688, %vm689
        %v691 = vsel %vm690, %v683, %v687
        %v692 = vand.u32 2147483647, %v682
        %vm693 = vcmp.eq.f32.partialorder %v692, 8.507059e+37
        %v694 = vand.u32 %v682, 2147483648
        %v695 = vor.u32 1.1754944e-38, %v694
        %v696 = vsel %vm693, %v695, %v691
        %v697 = vmul.f32 1.0, %v696
        %698 = vmatpush.msra.mxu0 0.0
        %699 = vmatpush.msra.mxu0 0.0
        %700 = vmatpush.msra.mxu0 0.0
        %701 = vmatpush.msra.mxu0 0.0
        %702 = vmatpush.msra.mxu0 0.0
        %703 = vmatpush.msra.mxu0 0.0
        %704 = vmatpush.msra.mxu0 0.0
        %705 = vmatpush.msra.mxu0 0.0
        %706 = vmatpush.msra.mxu0 0.0
        %707 = vmatpush.msra.mxu0 0.0
        %708 = vmatpush.msra.mxu0 0.0
        %709 = vmatpush.msra.mxu0 0.0
        %710 = vmatpush.msra.mxu0 %v449
        %711 = vmatpush.msra.mxu0 %v448
        %712 = vmatpush.msra.mxu0 %v447
        %713 = vmatpush.msra.mxu0 %v446
        %714 = vmatmul.f32.gmra.mxu0 %v594
        %v715 = vpop.f32.mrf.mxu0
        %v716 = vadd.f32 0.0, %v715
        %717 = vdwg.mxu0
        %v718 = vxor.u32 %v716, 2147483648
        %v719 = vmul.f32 %v718, 1.442695
        %v720 = vpow.pop %v719
        %v721 = vadd.f32 %v720, 1.0
        %v722 = vrcp.pop %v721
        %v723 = vmul.f32 %v721, %v722
        %v724 = vsub.f32 1.0, %v723
        %v725 = vmul.f32 %v722, %v724
        %v726 = vadd.f32 %v722, %v725
        %vm727 = vweird.f32 %v721
        %vm728 = vweird.f32 %v722
        %vm729 = vmor %vm727, %vm728
        %v730 = vsel %vm729, %v722, %v726
        %v731 = vand.u32 2147483647, %v721
        %vm732 = vcmp.eq.f32.partialorder %v731, 8.507059e+37
        %v733 = vand.u32 %v721, 2147483648
        %v734 = vor.u32 1.1754944e-38, %v733
        %v735 = vsel %vm732, %v734, %v730
        %v736 = vmul.f32 1.0, %v735
        %v737 = vsub.f32 %v736, %v592
        %v738 = vmul.f32 %v697, %v737
        %v739 = vadd.f32 %v592, %v738
        %v741 = vsel %vm457, %v658, 0
        %743 = vmatpush.msra.mxu0 0.0
        %744 = vmatpush.msra.mxu0 0.0
        %745 = vmatpush.msra.mxu0 0.0
        %746 = vmatpush.msra.mxu0 0.0
        %747 = vmatpush.msra.mxu0 0.0
        %748 = vmatpush.msra.mxu0 0.0
        %749 = vmatpush.msra.mxu0 0.0
        %750 = vmatpush.msra.mxu0 0.0
        %751 = vmatpush.msra.mxu0 0.0
        %752 = vmatpush.msra.mxu0 0.0
        %753 = vmatpush.msra.mxu0 0.0
        %754 = vmatpush.msra.mxu0 0.0
        %755 = vmatpush.msra.mxu0 %v435
        %756 = vmatpush.msra.mxu0 %v434
        %757 = vmatpush.msra.mxu0 %v433
        %758 = vmatpush.msra.mxu0 %v432
        %759 = vmatmul.f32.gmra.mxu0 %v741
        %v760 = vpop.f32.mrf.mxu0
        %v761 = vadd.f32 0.0, %v760
        %762 = vdwg.mxu0
        %v763 = vxor.u32 %v761, 2147483648
        %v764 = vmul.f32 %v763, 1.442695
        %v765 = vpow.pop %v764
        %v766 = vadd.f32 %v765, 1.0
        %v767 = vrcp.pop %v766
        %v768 = vmul.f32 %v766, %v767
        %v769 = vsub.f32 1.0, %v768
        %v770 = vmul.f32 %v767, %v769
        %v771 = vadd.f32 %v767, %v770
        %vm772 = vweird.f32 %v766
        %vm773 = vweird.f32 %v767
        %vm774 = vmor %vm772, %vm773
        %v775 = vsel %vm774, %v767, %v771
        %v776 = vand.u32 2147483647, %v766
        %vm777 = vcmp.eq.f32.partialorder %v776, 8.507059e+37
        %v778 = vand.u32 %v766, 2147483648
        %v779 = vor.u32 1.1754944e-38, %v778
        %v780 = vsel %vm777, %v779, %v775
        %v781 = vmul.f32 1.0, %v780
        %782 = vmatpush.msra.mxu0 0.0
        %783 = vmatpush.msra.mxu0 0.0
        %784 = vmatpush.msra.mxu0 0.0
        %785 = vmatpush.msra.mxu0 0.0
        %786 = vmatpush.msra.mxu0 0.0
        %787 = vmatpush.msra.mxu0 0.0
        %788 = vmatpush.msra.mxu0 0.0
        %789 = vmatpush.msra.mxu0 0.0
        %790 = vmatpush.msra.mxu0 0.0
        %791 = vmatpush.msra.mxu0 0.0
        %792 = vmatpush.msra.mxu0 0.0
        %793 = vmatpush.msra.mxu0 0.0
        %794 = vmatpush.msra.mxu0 %v454
        %795 = vmatpush.msra.mxu0 %v453
        %796 = vmatpush.msra.mxu0 %v452
        %797 = vmatpush.msra.mxu0 %v451
        %798 = vmatmul.f32.gmra.mxu0 %v741
        %v799 = vpop.f32.mrf.mxu0
        %v800 = vadd.f32 0.0, %v799
        %801 = vdwg.mxu0
        %v802 = vsub.f32 %v800, %v658
        %v803 = vmul.f32 %v781, %v802
        %v804 = vadd.f32 %v658, %v803
        %v805 = vadd.f32 %v592, %v658
        %v806 = vadd.f32 %v805, %v739
        %v807 = vadd.f32 %v806, %v804
        %v808 = vmul.f32 %v807, 0.25
        %vm809 = vcmask 254976
        %810 = vst.msk [vmem:[%s399] sm:$0x3] %vm809, %v808
        %s811 = scalar_lea.vmem %s335, 2 [#allocation3]
        %v812 = vld [vmem:[%s811] sm:$0x3]
        %v814 = vsel %vm457, %v808, 0
        %816 = vmatpush.msra.mxu0 0.0
        %817 = vmatpush.msra.mxu0 0.0
        %818 = vmatpush.msra.mxu0 0.0
        %819 = vmatpush.msra.mxu0 0.0
        %820 = vmatpush.msra.mxu0 0.0
        %821 = vmatpush.msra.mxu0 0.0
        %822 = vmatpush.msra.mxu0 0.0
        %823 = vmatpush.msra.mxu0 0.0
        %824 = vmatpush.msra.mxu0 0.0
        %825 = vmatpush.msra.mxu0 0.0
        %826 = vmatpush.msra.mxu0 0.0
        %827 = vmatpush.msra.mxu0 0.0
        %828 = vmatpush.msra.mxu0 %v412
        %829 = vmatpush.msra.mxu0 %v411
        %830 = vmatpush.msra.mxu0 %v410
        %831 = vmatpush.msra.mxu0 %v409
        %832 = vmatmul.f32.gmra.mxu0 %v814
        %v833 = vpop.f32.mrf.mxu0
        %v834 = vadd.f32 0.0, %v833
        %835 = vdwg.mxu0
        %v836 = vadd.f32 %v812, %v834
        %s837 = scalar_lea.vmem %s345, 2 [#allocation6]
        %v838 = vld [vmem:[%s837] sm:$0x3]
        %839 = vmatpush.msra.mxu0 0.0
        %840 = vmatpush.msra.mxu0 0.0
        %841 = vmatpush.msra.mxu0 0.0
        %842 = vmatpush.msra.mxu0 0.0
        %843 = vmatpush.msra.mxu0 0.0
        %844 = vmatpush.msra.mxu0 0.0
        %845 = vmatpush.msra.mxu0 0.0
        %846 = vmatpush.msra.mxu0 0.0
        %847 = vmatpush.msra.mxu0 0.0
        %848 = vmatpush.msra.mxu0 0.0
        %849 = vmatpush.msra.mxu0 0.0
        %850 = vmatpush.msra.mxu0 0.0
        %851 = vmatpush.msra.mxu0 %v416
        %852 = vmatpush.msra.mxu0 %v415
        %853 = vmatpush.msra.mxu0 %v414
        %854 = vmatpush.msra.mxu0 %v413
        %855 = vmatmul.f32.gmra.mxu0 %v814
        %v856 = vpop.f32.mrf.mxu0
        %v857 = vadd.f32 0.0, %v856
        %858 = vdwg.mxu0
        %v859 = vadd.f32 %v838, %v857
        %v860 = vxor.u32 %v836, 2147483648
        %v861 = vmul.f32 %v860, 1.442695
        %v862 = vpow.pop %v861
        %v863 = vadd.f32 %v862, 1.0
        %v864 = vrcp.pop %v863
        %v865 = vmul.f32 %v863, %v864
        %v866 = vsub.f32 1.0, %v865
        %v867 = vmul.f32 %v864, %v866
        %v868 = vadd.f32 %v864, %v867
        %vm869 = vweird.f32 %v863
        %vm870 = vweird.f32 %v864
        %vm871 = vmor %vm869, %vm870
        %v872 = vsel %vm871, %v864, %v868
        %v873 = vand.u32 2147483647, %v863
        %vm874 = vcmp.eq.f32.partialorder %v873, 8.507059e+37
        %v875 = vand.u32 %v863, 2147483648
        %v876 = vor.u32 1.1754944e-38, %v875
        %v877 = vsel %vm874, %v876, %v872
        %v878 = vmul.f32 1.0, %v877
        %v879 = vtanh.pop %v859
        %v880 = vsub.f32 %v879, %v808
        %v881 = vmul.f32 %v878, %v880
        %v882 = vadd.f32 %v808, %v881
        %v884 = vsel %vm457, %v882, 0
        %886 = vmatpush.msra.mxu0 0.0
        %887 = vmatpush.msra.mxu0 0.0
        %888 = vmatpush.msra.mxu0 0.0
        %889 = vmatpush.msra.mxu0 0.0
        %890 = vmatpush.msra.mxu0 0.0
        %891 = vmatpush.msra.mxu0 0.0
        %892 = vmatpush.msra.mxu0 0.0
        %893 = vmatpush.msra.mxu0 0.0
        %894 = vmatpush.msra.mxu0 0.0
        %895 = vmatpush.msra.mxu0 0.0
        %896 = vmatpush.msra.mxu0 0.0
        %897 = vmatpush.msra.mxu0 0.0
        %898 = vmatpush.msra.mxu0 %v420
        %899 = vmatpush.msra.mxu0 %v419
        %900 = vmatpush.msra.mxu0 %v418
        %901 = vmatpush.msra.mxu0 %v417
        %902 = vmatmul.f32.gmra.mxu0 %v884
        %v903 = vpop.f32.mrf.mxu0
        %v904 = vadd.f32 0.0, %v903
        %905 = vdwg.mxu0
        %v906 = vxor.u32 %v904, 2147483648
        %v907 = vmul.f32 %v906, 1.442695
        %v908 = vpow.pop %v907
        %v909 = vadd.f32 %v908, 1.0
        %v910 = vrcp.pop %v909
        %v911 = vmul.f32 %v909, %v910
        %v912 = vsub.f32 1.0, %v911
        %v913 = vmul.f32 %v910, %v912
        %v914 = vadd.f32 %v910, %v913
        %vm915 = vweird.f32 %v909
        %vm916 = vweird.f32 %v910
        %vm917 = vmor %vm915, %vm916
        %v918 = vsel %vm917, %v910, %v914
        %v919 = vand.u32 2147483647, %v909
        %vm920 = vcmp.eq.f32.partialorder %v919, 8.507059e+37
        %v921 = vand.u32 %v909, 2147483648
        %v922 = vor.u32 1.1754944e-38, %v921
        %v923 = vsel %vm920, %v922, %v918
        %v924 = vmul.f32 1.0, %v923
        %925 = vmatpush.msra.mxu0 0.0
        %926 = vmatpush.msra.mxu0 0.0
        %927 = vmatpush.msra.mxu0 0.0
        %928 = vmatpush.msra.mxu0 0.0
        %929 = vmatpush.msra.mxu0 0.0
        %930 = vmatpush.msra.mxu0 0.0
        %931 = vmatpush.msra.mxu0 0.0
        %932 = vmatpush.msra.mxu0 0.0
        %933 = vmatpush.msra.mxu0 0.0
        %934 = vmatpush.msra.mxu0 0.0
        %935 = vmatpush.msra.mxu0 0.0
        %936 = vmatpush.msra.mxu0 0.0
        %937 = vmatpush.msra.mxu0 %v439
        %938 = vmatpush.msra.mxu0 %v438
        %939 = vmatpush.msra.mxu0 %v437
        %940 = vmatpush.msra.mxu0 %v436
        %941 = vmatmul.f32.gmra.mxu0 %v884
        %v942 = vpop.f32.mrf.mxu0
        %v943 = vadd.f32 0.0, %v942
        %944 = vdwg.mxu0
        %v945 = vmax.f32 %v943, 0.0
        %v946 = vsub.f32 %v945, %v882
        %v947 = vmul.f32 %v924, %v946
        %v948 = vadd.f32 %v882, %v947
        %v950 = vsel %vm457, %v948, 0
        %952 = vmatpush.msra.mxu0 0.0
        %953 = vmatpush.msra.mxu0 0.0
        %954 = vmatpush.msra.mxu0 0.0
        %955 = vmatpush.msra.mxu0 0.0
        %956 = vmatpush.msra.mxu0 0.0
        %957 = vmatpush.msra.mxu0 0.0
        %958 = vmatpush.msra.mxu0 0.0
        %959 = vmatpush.msra.mxu0 0.0
        %960 = vmatpush.msra.mxu0 0.0
        %961 = vmatpush.msra.mxu0 0.0
        %962 = vmatpush.msra.mxu0 0.0
        %963 = vmatpush.msra.mxu0 0.0
        %964 = vmatpush.msra.mxu0 %v425
        %965 = vmatpush.msra.mxu0 %v424
        %966 = vmatpush.msra.mxu0 %v423
        %967 = vmatpush.msra.mxu0 %v422
        %968 = vmatmul.f32.gmra.mxu0 %v950
        %v969 = vpop.f32.mrf.mxu0
        %v970 = vadd.f32 0.0, %v969
        %971 = vdwg.mxu0
        %v972 = vxor.u32 %v970, 2147483648
        %v973 = vmul.f32 %v972, 1.442695
        %v974 = vpow.pop %v973
        %v975 = vadd.f32 %v974, 1.0
        %v976 = vrcp.pop %v975
        %v977 = vmul.f32 %v975, %v976
        %v978 = vsub.f32 1.0, %v977
        %v979 = vmul.f32 %v976, %v978
        %v980 = vadd.f32 %v976, %v979
        %vm981 = vweird.f32 %v975
        %vm982 = vweird.f32 %v976
        %vm983 = vmor %vm981, %vm982
        %v984 = vsel %vm983, %v976, %v980
        %v985 = vand.u32 2147483647, %v975
        %vm986 = vcmp.eq.f32.partialorder %v985, 8.507059e+37
        %v987 = vand.u32 %v975, 2147483648
        %v988 = vor.u32 1.1754944e-38, %v987
        %v989 = vsel %vm986, %v988, %v984
        %v990 = vmul.f32 1.0, %v989
        %991 = vmatpush.msra.mxu0 0.0
        %992 = vmatpush.msra.mxu0 0.0
        %993 = vmatpush.msra.mxu0 0.0
        %994 = vmatpush.msra.mxu0 0.0
        %995 = vmatpush.msra.mxu0 0.0
        %996 = vmatpush.msra.mxu0 0.0
        %997 = vmatpush.msra.mxu0 0.0
        %998 = vmatpush.msra.mxu0 0.0
        %999 = vmatpush.msra.mxu0 0.0
        %1000 = vmatpush.msra.mxu0 0.0
        %1001 = vmatpush.msra.mxu0 0.0
        %1002 = vmatpush.msra.mxu0 0.0
        %1003 = vmatpush.msra.mxu0 %v444
        %1004 = vmatpush.msra.mxu0 %v443
        %1005 = vmatpush.msra.mxu0 %v442
        %1006 = vmatpush.msra.mxu0 %v441
        %1007 = vmatmul.f32.gmra.mxu0 %v950
        %v1008 = vpop.f32.mrf.mxu0
        %v1009 = vadd.f32 0.0, %v1008
        %1010 = vdwg.mxu0
        %v1011 = vtanh.pop %v1009
        %v1012 = vsub.f32 %v1011, %v948
        %v1013 = vmul.f32 %v990, %v1012
        %v1014 = vadd.f32 %v948, %v1013
        %1015 = vmatpush.msra.mxu0 0.0
        %1016 = vmatpush.msra.mxu0 0.0
        %1017 = vmatpush.msra.mxu0 0.0
        %1018 = vmatpush.msra.mxu0 0.0
        %1019 = vmatpush.msra.mxu0 0.0
        %1020 = vmatpush.msra.mxu0 0.0
        %1021 = vmatpush.msra.mxu0 0.0
        %1022 = vmatpush.msra.mxu0 0.0
        %1023 = vmatpush.msra.mxu0 0.0
        %1024 = vmatpush.msra.mxu0 0.0
        %1025 = vmatpush.msra.mxu0 0.0
        %1026 = vmatpush.msra.mxu0 0.0
        %1027 = vmatpush.msra.mxu0 %v430
        %1028 = vmatpush.msra.mxu0 %v429
        %1029 = vmatpush.msra.mxu0 %v428
        %1030 = vmatpush.msra.mxu0 %v427
        %1031 = vmatmul.f32.gmra.mxu0 %v950
        %v1032 = vpop.f32.mrf.mxu0
        %v1033 = vadd.f32 0.0, %v1032
        %1034 = vdwg.mxu0
        %v1035 = vxor.u32 %v1033, 2147483648
        %v1036 = vmul.f32 %v1035, 1.442695
        %v1037 = vpow.pop %v1036
        %v1038 = vadd.f32 %v1037, 1.0
        %v1039 = vrcp.pop %v1038
        %v1040 = vmul.f32 %v1038, %v1039
        %v1041 = vsub.f32 1.0, %v1040
        %v1042 = vmul.f32 %v1039, %v1041
        %v1043 = vadd.f32 %v1039, %v1042
        %vm1044 = vweird.f32 %v1038
        %vm1045 = vweird.f32 %v1039
        %vm1046 = vmor %vm1044, %vm1045
        %v1047 = vsel %vm1046, %v1039, %v1043
        %v1048 = vand.u32 2147483647, %v1038
        %vm1049 = vcmp.eq.f32.partialorder %v1048, 8.507059e+37
        %v1050 = vand.u32 %v1038, 2147483648
        %v1051 = vor.u32 1.1754944e-38, %v1050
        %v1052 = vsel %vm1049, %v1051, %v1047
        %v1053 = vmul.f32 1.0, %v1052
        %1054 = vmatpush.msra.mxu0 0.0
        %1055 = vmatpush.msra.mxu0 0.0
        %1056 = vmatpush.msra.mxu0 0.0
        %1057 = vmatpush.msra.mxu0 0.0
        %1058 = vmatpush.msra.mxu0 0.0
        %1059 = vmatpush.msra.mxu0 0.0
        %1060 = vmatpush.msra.mxu0 0.0
        %1061 = vmatpush.msra.mxu0 0.0
        %1062 = vmatpush.msra.mxu0 0.0
        %1063 = vmatpush.msra.mxu0 0.0
        %1064 = vmatpush.msra.mxu0 0.0
        %1065 = vmatpush.msra.mxu0 0.0
        %1066 = vmatpush.msra.mxu0 %v449
        %1067 = vmatpush.msra.mxu0 %v448
        %1068 = vmatpush.msra.mxu0 %v447
        %1069 = vmatpush.msra.mxu0 %v446
        %1070 = vmatmul.f32.gmra.mxu0 %v950
        %v1071 = vpop.f32.mrf.mxu0
        %v1072 = vadd.f32 0.0, %v1071
        %1073 = vdwg.mxu0
        %v1074 = vxor.u32 %v1072, 2147483648
        %v1075 = vmul.f32 %v1074, 1.442695
        %v1076 = vpow.pop %v1075
        %v1077 = vadd.f32 %v1076, 1.0
        %v1078 = vrcp.pop %v1077
        %v1079 = vmul.f32 %v1077, %v1078
        %v1080 = vsub.f32 1.0, %v1079
        %v1081 = vmul.f32 %v1078, %v1080
        %v1082 = vadd.f32 %v1078, %v1081
        %vm1083 = vweird.f32 %v1077
        %vm1084 = vweird.f32 %v1078
        %vm1085 = vmor %vm1083, %vm1084
        %v1086 = vsel %vm1085, %v1078, %v1082
        %v1087 = vand.u32 2147483647, %v1077
        %vm1088 = vcmp.eq.f32.partialorder %v1087, 8.507059e+37
        %v1089 = vand.u32 %v1077, 2147483648
        %v1090 = vor.u32 1.1754944e-38, %v1089
        %v1091 = vsel %vm1088, %v1090, %v1086
        %v1092 = vmul.f32 1.0, %v1091
        %v1093 = vsub.f32 %v1092, %v948
        %v1094 = vmul.f32 %v1053, %v1093
        %v1095 = vadd.f32 %v948, %v1094
        %v1097 = vsel %vm457, %v1014, 0
        %1099 = vmatpush.msra.mxu0 0.0
        %1100 = vmatpush.msra.mxu0 0.0
        %1101 = vmatpush.msra.mxu0 0.0
        %1102 = vmatpush.msra.mxu0 0.0
        %1103 = vmatpush.msra.mxu0 0.0
        %1104 = vmatpush.msra.mxu0 0.0
        %1105 = vmatpush.msra.mxu0 0.0
        %1106 = vmatpush.msra.mxu0 0.0
        %1107 = vmatpush.msra.mxu0 0.0
        %1108 = vmatpush.msra.mxu0 0.0
        %1109 = vmatpush.msra.mxu0 0.0
        %1110 = vmatpush.msra.mxu0 0.0
        %1111 = vmatpush.msra.mxu0 %v435
        %1112 = vmatpush.msra.mxu0 %v434
        %1113 = vmatpush.msra.mxu0 %v433
        %1114 = vmatpush.msra.mxu0 %v432
        %1115 = vmatmul.f32.gmra.mxu0 %v1097
        %v1116 = vpop.f32.mrf.mxu0
        %v1117 = vadd.f32 0.0, %v1116
        %1118 = vdwg.mxu0
        %v1119 = vxor.u32 %v1117, 2147483648
        %v1120 = vmul.f32 %v1119, 1.442695
        %v1121 = vpow.pop %v1120
        %v1122 = vadd.f32 %v1121, 1.0
        %v1123 = vrcp.pop %v1122
        %v1124 = vmul.f32 %v1122, %v1123
        %v1125 = vsub.f32 1.0, %v1124
        %v1126 = vmul.f32 %v1123, %v1125
        %v1127 = vadd.f32 %v1123, %v1126
        %vm1128 = vweird.f32 %v1122
        %vm1129 = vweird.f32 %v1123
        %vm1130 = vmor %vm1128, %vm1129
        %v1131 = vsel %vm1130, %v1123, %v1127
        %v1132 = vand.u32 2147483647, %v1122
        %vm1133 = vcmp.eq.f32.partialorder %v1132, 8.507059e+37
        %v1134 = vand.u32 %v1122, 2147483648
        %v1135 = vor.u32 1.1754944e-38, %v1134
        %v1136 = vsel %vm1133, %v1135, %v1131
        %v1137 = vmul.f32 1.0, %v1136
        %1138 = vmatpush.msra.mxu0 0.0
        %1139 = vmatpush.msra.mxu0 0.0
        %1140 = vmatpush.msra.mxu0 0.0
        %1141 = vmatpush.msra.mxu0 0.0
        %1142 = vmatpush.msra.mxu0 0.0
        %1143 = vmatpush.msra.mxu0 0.0
        %1144 = vmatpush.msra.mxu0 0.0
        %1145 = vmatpush.msra.mxu0 0.0
        %1146 = vmatpush.msra.mxu0 0.0
        %1147 = vmatpush.msra.mxu0 0.0
        %1148 = vmatpush.msra.mxu0 0.0
        %1149 = vmatpush.msra.mxu0 0.0
        %1150 = vmatpush.msra.mxu0 %v454
        %1151 = vmatpush.msra.mxu0 %v453
        %1152 = vmatpush.msra.mxu0 %v452
        %1153 = vmatpush.msra.mxu0 %v451
        %1154 = vmatmul.f32.gmra.mxu0 %v1097
        %v1155 = vpop.f32.mrf.mxu0
        %v1156 = vadd.f32 0.0, %v1155
        %1157 = vdwg.mxu0
        %v1158 = vsub.f32 %v1156, %v1014
        %v1159 = vmul.f32 %v1137, %v1158
        %v1160 = vadd.f32 %v1014, %v1159
        %v1161 = vadd.f32 %v948, %v1014
        %v1162 = vadd.f32 %v1161, %v1095
        %v1163 = vadd.f32 %v1162, %v1160
        %v1164 = vmul.f32 %v1163, 0.25
        %s1165 = scalar_lea.vmem %s399, 2 [#allocation14]
        %1166 = vst.msk [vmem:[%s1165] sm:$0x3] %vm809, %v1164
        %1167 = vst.msk [vmem:[#allocation2] sm:$0x3] %vm809, %v1164
        %s1168 = sand.u32 %s190, 1
        %s1169 = scalar_lea.sflag [#allocation5], %s1168
        %s1170 = sand.u32 %s190, 1
        %s1171 = smul.addr %s1170, 4
        %s1172 = scalar_lea.vmem [#allocation14], %s1171
        // Predicated region
        $region73: #{tpu_custom_call.1} parent=43 // pred_check
          %p1173 = pneg %p200
        $region74: #{tpu_custom_call.1} parent=43 // pred_check_branch
          %1175 = sbr.rel (%p1173) target = $region76
        $region75: #{tpu_custom_call.1} parent=43 // pred_region
          %s1176 = smul.u32 2, %s33
          %1178 = vsyncadd %s1169, 0
          %s1179 = sadd.s32 %s32, %s1176
          %s1180 = smul.addr %s1179, 2
          %s1181 = scalar_lea.hbm %s6, %s1180
          %s1182 = sshll.u32 %s1172, 4
          %s1183 = int_to_ptr.vmem [resolvable:$true] %s1182
          %s1184 = sshll.u32 %s1181, 4
          %s1185 = int_to_ptr.hbm [resolvable:$true] %s1184
          %1190 = dma.vmem_to_hbm [thread:$0]  %s1183, 64, %s1185, %s1169, 32, 32, 2
        $region76: #{tpu_custom_call.1} parent=43 // pred_fallthru
          _
      $region44: #{tpu_custom_call.1} parent=5 // pred_fallthru
        _
      %p1191 = scmp.le.s32.totalorder 2, %s23
      // Predicated region
      $region77: #{tpu_custom_call.1} parent=5 // pred_check
        %p1192 = pneg %p1191
      $region78: #{tpu_custom_call.1} parent=5 // pred_check_branch
        %1194 = sbr.rel (%p1192) target = $region80
      $region79: #{tpu_custom_call.1} parent=5 // pred_region
        %s1195 = ssub.s32 %s23, 2
        // Predicated region
        $region81: #{tpu_custom_call.1} parent=79 // pred_check
          %p1196 = pneg %p206
        $region82: #{tpu_custom_call.1} parent=79 // pred_check_branch
          %1198 = sbr.rel (%p1196) target = $region84
        $region83: #{tpu_custom_call.1} parent=79 // pred_region
          %s1199 = sand.u32 %s191, 1
          %s1200 = scalar_lea.sflag [#allocation5], %s1199
          %s1201 = sand.u32 %s191, 1
          %s1202 = smul.addr %s1201, 4
          %s1203 = scalar_lea.vmem [#allocation14], %s1202
          %1205 = dma.done %s1200, 64
        $region84: #{tpu_custom_call.1} parent=79 // pred_fallthru
          _
      $region80: #{tpu_custom_call.1} parent=5 // pred_fallthru
        _
    $region6: #{tpu_custom_call.1} parent=1 // loop_footer
      %s27 = sadd.s32 1, %s23
    $region7: #{tpu_custom_call.1} parent=1 // loop_footer_branch
      %22 = sbr.rel target = $region3
    $region8: #{tpu_custom_call.1} parent=1 // loop_exit
      _
    %1206 = vsyncpa [#allocation4], 1
    %s1207 = scalar_lea.sflag [#allocation4], 1
    %1208 = vsyncpa %s1207, 1
    %1209 = vsyncpa [#allocation7], 1
    %s1210 = scalar_lea.sflag [#allocation7], 1
    %1211 = vsyncpa %s1210, 1
    %1212 = vsyncpa [#allocation10], 1
    %1213 = vsyncpa [#allocation13], 1
    %1214 = vsyncpa [#allocation5], 1
    %s1215 = scalar_lea.sflag [#allocation5], 1
    %1216 = vsyncpa %s1215, 1

</llo_original>
